<compile_context>
chip_gen: v7x
topology: tpu7x:2x2x1
jax: 0.10.0
libtpu: 0.0.40
codegen_flags: <defaults>
</compile_context>

<pallas_src>
import functools

import jax
import jax.numpy as jnp
from jax.experimental import pallas as pl
from jax.experimental.pallas import tpu as pltpu


_VMEM_LIMIT = 32 * 1024 * 1024   # explicit scoped-VMEM budget (fits v5e..v7x)
_SLOPE = 0.2                     # LeakyReLU negative slope
_EPS = 1e-5                      # BatchNorm2d default eps


def _compiler_params():
    return pltpu.CompilerParams(
        dimension_semantics=("arbitrary",),
        vmem_limit_bytes=_VMEM_LIMIT)


# ----------------------------------------------------------------------------
# Pallas kernels (single grid step each; every ref is a full-extent block)
# ----------------------------------------------------------------------------
def _mm_bias_act_kernel(a_ref, w_ref, b_ref, o_ref, *, apply_act, slope):
    """o = [leaky_relu](A @ W + b); bf16 operands, f32 MXU accumulation."""
    y = jnp.dot(a_ref[...], w_ref[...], preferred_element_type=jnp.float32)
    y = y + b_ref[...]
    if apply_act:
        y = jnp.maximum(y, slope * y)          # LeakyReLU without cmp/select
    o_ref[...] = y.astype(o_ref.dtype)


def _mm_bn_act_kernel(a_ref, w_ref, g_ref, be_ref, o_ref, *,
                      inv_rows, slope, eps):
    """o = leaky_relu(batchnorm_train(A @ W)) written once as bf16.

    Training-mode BatchNorm: per-channel batch mean and biased variance over
    the M rows (= N*OH*OW positions).  The conv bias is intentionally omitted
    by the caller (it cancels exactly against the batch-mean subtraction).
    """
    y = jnp.dot(a_ref[...], w_ref[...], preferred_element_type=jnp.float32)
    mean = jnp.sum(y, axis=0, keepdims=True) * inv_rows
    var = jnp.sum(y * y, axis=0, keepdims=True) * inv_rows - mean * mean
    var = jnp.maximum(var, 0.0)
    scale = g_ref[...] * jax.lax.rsqrt(var + eps)       # rsqrt -> EUP slot
    shift = be_ref[...] - mean * scale
    z = y * scale + shift
    o_ref[...] = jnp.maximum(z, slope * z).astype(o_ref.dtype)


def _mm_bn_act_head_kernel(a_ref, w_ref, g_ref, be_ref,
                           w4_ref, sel_ref, b4_ref, o_ref, *,
                           inv_rows, slope, eps):
    """Layer 3 (conv+BN+LeakyReLU) with the 1x1-output head conv fused.

    z      : (M, C)  f32  BN+LeakyReLU activation (kept in VMEM, never stored)
    w4_ref : (M, C)  f32  per-row center taps of the head conv weight
    sel_ref: (Nb, M) f32  row->sample summing matrix
    o      : (Nb, 1) f32  head conv output (one scalar per sample)
    """
    y = jnp.dot(a_ref[...], w_ref[...], preferred_element_type=jnp.float32)
    mean = jnp.sum(y, axis=0, keepdims=True) * inv_rows
    var = jnp.sum(y * y, axis=0, keepdims=True) * inv_rows - mean * mean
    var = jnp.maximum(var, 0.0)
    scale = g_ref[...] * jax.lax.rsqrt(var + eps)
    shift = be_ref[...] - mean * scale
    z = y * scale + shift
    z = jnp.maximum(z, slope * z)                              # (M, C) f32
    p = z * w4_ref[...]                                        # VPU multiply
    per_sample = jnp.dot(sel_ref[...], p,
                         preferred_element_type=jnp.float32)   # (Nb, C)
    o_ref[...] = (jnp.sum(per_sample, axis=1, keepdims=True)
                  + b4_ref[...])                               # (Nb, 1)


# ----------------------------------------------------------------------------
# Pallas wrappers (grid=(1,), full-extent blocks -> everything lives in VMEM)
# ----------------------------------------------------------------------------
def matmul_bias_act(a, w, b, *, apply_act, slope=_SLOPE,
                    out_dtype=jnp.bfloat16):
    M, K = a.shape
    C = w.shape[1]
    kernel = functools.partial(_mm_bias_act_kernel,
                               apply_act=apply_act, slope=slope)
    return pl.pallas_call(
        kernel,
        out_shape=jax.ShapeDtypeStruct((M, C), out_dtype),
        grid=(1,),
        in_specs=[pl.BlockSpec((M, K), lambda i: (0, 0)),
                  pl.BlockSpec((K, C), lambda i: (0, 0)),
                  pl.BlockSpec((1, C), lambda i: (0, 0))],
        out_specs=pl.BlockSpec((M, C), lambda i: (0, 0)),
        compiler_params=_compiler_params(),
    )(a, w, b)


def matmul_bn_act(a, w, gamma, beta, *, slope=_SLOPE, eps=_EPS):
    M, K = a.shape
    C = w.shape[1]
    kernel = functools.partial(_mm_bn_act_kernel,
                               inv_rows=1.0 / M, slope=slope, eps=eps)
    return pl.pallas_call(
        kernel,
        out_shape=jax.ShapeDtypeStruct((M, C), jnp.bfloat16),
        grid=(1,),
        in_specs=[pl.BlockSpec((M, K), lambda i: (0, 0)),
                  pl.BlockSpec((K, C), lambda i: (0, 0)),
                  pl.BlockSpec((1, C), lambda i: (0, 0)),
                  pl.BlockSpec((1, C), lambda i: (0, 0))],
        out_specs=pl.BlockSpec((M, C), lambda i: (0, 0)),
        compiler_params=_compiler_params(),
    )(a, w, gamma, beta)


def matmul_bn_act_head(a, w, gamma, beta, w4_center, b4, *, n_batch,
                       slope=_SLOPE, eps=_EPS):
    """Layer 3 matmul + BN + LeakyReLU with the final 1x1-output conv fused."""
    M, K = a.shape
    C = w.shape[1]
    pos = M // n_batch                       # spatial positions per sample
    assert pos * n_batch == M and pos == w4_center.shape[0]
    # Per-row head weights (row r of sample n <-> center tap (r//2, r%2)).
    w4t = jnp.tile(w4_center, (n_batch, 1))                      # (M, C) f32
    sel = jnp.repeat(jnp.eye(n_batch, dtype=jnp.float32), pos, axis=1)  # (Nb, M)
    kernel = functools.partial(_mm_bn_act_head_kernel,
                               inv_rows=1.0 / M, slope=slope, eps=eps)
    return pl.pallas_call(
        kernel,
        out_shape=jax.ShapeDtypeStruct((n_batch, 1), jnp.float32),
        grid=(1,),
        in_specs=[pl.BlockSpec((M, K), lambda i: (0, 0)),
                  pl.BlockSpec((K, C), lambda i: (0, 0)),
                  pl.BlockSpec((1, C), lambda i: (0, 0)),
                  pl.BlockSpec((1, C), lambda i: (0, 0)),
                  pl.BlockSpec((M, C), lambda i: (0, 0)),
                  pl.BlockSpec((n_batch, M), lambda i: (0, 0)),
                  pl.BlockSpec((1, 1), lambda i: (0, 0))],
        out_specs=pl.BlockSpec((n_batch, 1), lambda i: (0, 0)),
        compiler_params=_compiler_params(),
    )(a, w, gamma, beta, w4t, sel, b4)


# ----------------------------------------------------------------------------
# Conv glue (host-side im2col in plain XLA; all FLOPs happen in Pallas)
# ----------------------------------------------------------------------------
def im2col(x_nhwc, k, s, p):
    """Patch matrix (N*OH*OW, k*k*C), feature order (kh, kw, cin)."""
    N, H, W, C = x_nhwc.shape
    xp = jnp.pad(x_nhwc, ((0, 0), (p, p), (p, p), (0, 0)))
    OH = (H + 2 * p - k) // s + 1
    OW = (W + 2 * p - k) // s + 1
    cols = []
    for i in range(k):
        for j in range(k):
            cols.append(xp[:, i:i + s * OH:s, j:j + s * OW:s, :])
    patches = jnp.concatenate(cols, axis=-1)        # (N, OH, OW, k*k*C)
    return patches.reshape(N * OH * OW, k * k * C), OH, OW


# ----------------------------------------------------------------------------
# Parameters
# ----------------------------------------------------------------------------
def init_params(key, in_channels=1):
    ks = jax.random.split(key, 8)

    def conv_init(kw_, kb_, cin, cout):
        w = jax.random.normal(kw_, (4, 4, cin, cout), jnp.float32) * 0.05
        b = jax.random.normal(kb_, (cout,), jnp.float32) * 0.05
        return w, b

    w1, b1 = conv_init(ks[0], ks[1], in_channels, 64)
    w2, b2 = conv_init(ks[2], ks[3], 64, 128)
    w3, b3 = conv_init(ks[4], ks[5], 128, 256)
    w4, b4 = conv_init(ks[6], ks[7], 256, 1)
    return dict(
        w1=w1, b1=b1,
        w2=w2, b2=b2, g2=jnp.ones((128,), jnp.float32), be2=jnp.zeros((128,), jnp.float32),
        w3=w3, b3=b3, g3=jnp.ones((256,), jnp.float32), be3=jnp.zeros((256,), jnp.float32),
        w4=w4, b4=b4,
    )


def prepare_params(p):
    """One-time host-side prep (run OUTSIDE the jitted forward): reshape the
    HWIO conv weights to matmul layout (KH*KW*Cin, Cout), cast to bf16, and
    build the row-vector affine/bias terms.  b2/b3 are intentionally dropped:
    training-mode BatchNorm's batch-mean subtraction cancels them exactly."""
    def mm(w):
        kh, kw, cin, cout = w.shape
        return w.reshape(kh * kw * cin, cout).astype(jnp.bfloat16)

    f32row = lambda v: v.reshape(1, -1).astype(jnp.float32)
    return dict(
        w1m=mm(p["w1"]), b1r=f32row(p["b1"]),
        w2m=mm(p["w2"]), g2r=f32row(p["g2"]), be2r=f32row(p["be2"]),
        w3m=mm(p["w3"]), g3r=f32row(p["g3"]), be3r=f32row(p["be3"]),
        # center 2x2 taps of the head conv (used when its output is 1x1):
        w4c=p["w4"][1:3, 1:3, :, 0].reshape(4, -1).astype(jnp.float32),
        w4m=mm(p["w4"]),                      # generic fallback path
        b4r=p["b4"].reshape(1, 1).astype(jnp.float32),
    )


# ----------------------------------------------------------------------------
# Discriminator forward
# ----------------------------------------------------------------------------
def discriminator_forward(x_nchw, p):
    N = x_nchw.shape[0]
    x = jnp.transpose(x_nchw, (0, 2, 3, 1)).astype(jnp.bfloat16)  # NCHW->NHWC

    # Layer 1: Conv(cin->64, 4, 2, 1) + LeakyReLU
    a1, oh1, ow1 = im2col(x, 4, 2, 1)
    c1 = p["w1m"].shape[1]
    x1 = matmul_bias_act(a1, p["w1m"], p["b1r"],
                         apply_act=True).reshape(N, oh1, ow1, c1)

    # Layer 2: Conv(64->128, 4, 2, 1) + BatchNorm(train) + LeakyReLU (fused)
    a2, oh2, ow2 = im2col(x1, 4, 2, 1)
    c2 = p["w2m"].shape[1]
    x2 = matmul_bn_act(a2, p["w2m"], p["g2r"],
                       p["be2r"]).reshape(N, oh2, ow2, c2)

    # Layer 3: Conv(128->256, 4, 2, 1) + BN(train) + LeakyReLU
    # Layer 4: Conv(256->1, 4, 1, 1)
    a3, oh3, ow3 = im2col(x2, 4, 2, 1)
    if oh3 == 2 and ow3 == 2:
        # Head conv output is 1x1: fuse it into layer 3's epilogue
        # (layer-3 activation never leaves VMEM).
        out = matmul_bn_act_head(a3, p["w3m"], p["g3r"], p["be3r"],
                                 p["w4c"], p["b4r"], n_batch=N)    # (N, 1)
        return out.reshape(N, 1, 1, 1)                             # NCHW
    # Generic fallback for other input sizes.
    c3 = p["w3m"].shape[1]
    x3 = matmul_bn_act(a3, p["w3m"], p["g3r"],
                       p["be3r"]).reshape(N, oh3, ow3, c3)
    a4, oh4, ow4 = im2col(x3, 4, 1, 1)
    y4 = matmul_bias_act(a4, p["w4m"], p["b4r"], apply_act=False,
                         out_dtype=jnp.float32)
    return jnp.transpose(y4.reshape(N, oh4, ow4, 1), (0, 3, 1, 2))


if __name__ == "__main__":
    key = jax.random.PRNGKey(0)
    kx, kp = jax.random.split(key)
    x = jax.random.normal(kx, (2, 1, 16, 16), jnp.float32)        # NCHW input
    raw_params = init_params(kp, in_channels=1)
    params = prepare_params(raw_params)      # one-time prep, outside jit

    fwd = jax.jit(discriminator_forward)
    out = jax.block_until_ready(fwd(x, params))

    assert out.shape == (2, 1, 1, 1), out.shape
    assert bool(jnp.all(jnp.isfinite(out)))
    print("KERNEL_OK")
</pallas_src>

<mosaic_0001>
module attributes {stable_mosaic.version = 11 : i64} {
  func.func @_mm_bias_act_kernel(%arg0: i32, %arg1: memref<128x16xbf16, #tpu.memory_space<vmem>>, %arg2: memref<16x64xbf16, #tpu.memory_space<vmem>>, %arg3: memref<1x64xf32, #tpu.memory_space<vmem>>, %arg4: memref<128x64xbf16, #tpu.memory_space<vmem>>) attributes {dimension_semantics = [#tpu.dimension_semantics<arbitrary>], iteration_bounds = array<i64: 1>, scalar_prefetch = 0 : i64, scratch_operands = 0 : i64, tpu.core_type = #tpu.core_type<tc>, window_params = [{pipeline_mode = #tpu.pipeline_mode<synchronous>, transform_indices = @transform_0, window_bounds = array<i64: 128, 16>}, {pipeline_mode = #tpu.pipeline_mode<synchronous>, transform_indices = @transform_1, window_bounds = array<i64: 16, 64>}, {pipeline_mode = #tpu.pipeline_mode<synchronous>, transform_indices = @transform_2, window_bounds = array<i64: 1, 64>}, {pipeline_mode = #tpu.pipeline_mode<synchronous>, transform_indices = @transform_3, window_bounds = array<i64: 128, 64>}]} {
    %c0 = arith.constant 0 : index
    %c0_0 = arith.constant 0 : index
    %0 = vector.load %arg1[%c0, %c0_0] : memref<128x16xbf16, #tpu.memory_space<vmem>>, vector<128x16xbf16>
    %c0_1 = arith.constant 0 : index
    %c0_2 = arith.constant 0 : index
    %1 = vector.load %arg2[%c0_1, %c0_2] : memref<16x64xbf16, #tpu.memory_space<vmem>>, vector<16x64xbf16>
    %cst = arith.constant dense<0.000000e+00> : vector<128x64xf32>
    %2 = tpu.matmul %0, %1, %cst {dimension_numbers = #tpu.dot_dimension_numbers<[1], [0], [0], [1], [0, 0, 1, 1], [], []>} : vector<128x16xbf16>, vector<16x64xbf16>, vector<128x64xf32> -> vector<128x64xf32>
    %c0_3 = arith.constant 0 : index
    %c0_4 = arith.constant 0 : index
    %3 = vector.load %arg3[%c0_3, %c0_4] : memref<1x64xf32, #tpu.memory_space<vmem>>, vector<1x64xf32>
    %4 = vector.broadcast %3 : vector<1x64xf32> to vector<128x64xf32>
    %5 = arith.addf %2, %4 : vector<128x64xf32>
    %cst_5 = arith.constant 2.000000e-01 : f32
    %6 = vector.broadcast %cst_5 : f32 to vector<128x64xf32>
    %7 = arith.mulf %6, %5 : vector<128x64xf32>
    %8 = arith.maximumf %5, %7 : vector<128x64xf32>
    %9 = arith.truncf %8 : vector<128x64xf32> to vector<128x64xbf16>
    %c0_6 = arith.constant 0 : index
    %c0_7 = arith.constant 0 : index
    %10 = vector.load %arg4[%c0_6, %c0_7] : memref<128x64xbf16, #tpu.memory_space<vmem>>, vector<128x64xbf16>
    tpu.vector_store %arg4[%c0_6, %c0_7], %9 {strides = array<i32>} : memref<128x64xbf16, #tpu.memory_space<vmem>>, vector<128x64xbf16>,
    return
  }
  func.func @transform_0(%arg0: i32) -> (i32, i32) {
    %c0_i32 = arith.constant 0 : i32
    %c0_i32_0 = arith.constant 0 : i32
    %c0_i32_1 = arith.constant 0 : i32
    return %c0_i32, %c0_i32_0 : i32, i32
  }
  func.func @transform_1(%arg0: i32) -> (i32, i32) {
    %c0_i32 = arith.constant 0 : i32
    %c0_i32_0 = arith.constant 0 : i32
    %c0_i32_1 = arith.constant 0 : i32
    return %c0_i32, %c0_i32_0 : i32, i32
  }
  func.func @transform_2(%arg0: i32) -> (i32, i32) {
    %c0_i32 = arith.constant 0 : i32
    %c0_i32_0 = arith.constant 0 : i32
    %c0_i32_1 = arith.constant 0 : i32
    return %c0_i32, %c0_i32_0 : i32, i32
  }
  func.func @transform_3(%arg0: i32) -> (i32, i32) {
    %c0_i32 = arith.constant 0 : i32
    %c0_i32_0 = arith.constant 0 : i32
    %c0_i32_1 = arith.constant 0 : i32
    return %c0_i32, %c0_i32_0 : i32, i32
  }
}

module attributes {stable_mosaic.version = 11 : i64} {
  func.func @_mm_bn_act_kernel(%arg0: i32, %arg1: memref<32x1024xbf16, #tpu.memory_space<vmem>>, %arg2: memref<1024x128xbf16, #tpu.memory_space<vmem>>, %arg3: memref<1x128xf32, #tpu.memory_space<vmem>>, %arg4: memref<1x128xf32, #tpu.memory_space<vmem>>, %arg5: memref<32x128xbf16, #tpu.memory_space<vmem>>) attributes {dimension_semantics = [#tpu.dimension_semantics<arbitrary>], iteration_bounds = array<i64: 1>, scalar_prefetch = 0 : i64, scratch_operands = 0 : i64, tpu.core_type = #tpu.core_type<tc>, window_params = [{pipeline_mode = #tpu.pipeline_mode<synchronous>, transform_indices = @transform_0, window_bounds = array<i64: 32, 1024>}, {pipeline_mode = #tpu.pipeline_mode<synchronous>, transform_indices = @transform_1, window_bounds = array<i64: 1024, 128>}, {pipeline_mode = #tpu.pipeline_mode<synchronous>, transform_indices = @transform_2, window_bounds = array<i64: 1, 128>}, {pipeline_mode = #tpu.pipeline_mode<synchronous>, transform_indices = @transform_3, window_bounds = array<i64: 1, 128>}, {pipeline_mode = #tpu.pipeline_mode<synchronous>, transform_indices = @transform_4, window_bounds = array<i64: 32, 128>}]} {
    %c0 = arith.constant 0 : index
    %c0_0 = arith.constant 0 : index
    %0 = vector.load %arg1[%c0, %c0_0] : memref<32x1024xbf16, #tpu.memory_space<vmem>>, vector<32x1024xbf16>
    %c0_1 = arith.constant 0 : index
    %c0_2 = arith.constant 0 : index
    %1 = vector.load %arg2[%c0_1, %c0_2] : memref<1024x128xbf16, #tpu.memory_space<vmem>>, vector<1024x128xbf16>
    %cst = arith.constant dense<0.000000e+00> : vector<32x128xf32>
    %2 = tpu.matmul %0, %1, %cst {dimension_numbers = #tpu.dot_dimension_numbers<[1], [0], [0], [1], [0, 0, 1, 1], [], []>} : vector<32x1024xbf16>, vector<1024x128xbf16>, vector<32x128xf32> -> vector<32x128xf32>
    %cst_3 = arith.constant dense<0.000000e+00> : vector<128xf32>
    %3 = vector.multi_reduction <add>, %2, %cst_3 [0] : vector<32x128xf32> to vector<128xf32>
    %4 = vector.shape_cast %3 : vector<128xf32> to vector<1x128xf32>
    %cst_4 = arith.constant 3.125000e-02 : f32
    %5 = vector.broadcast %cst_4 : f32 to vector<1x128xf32>
    %6 = arith.mulf %4, %5 : vector<1x128xf32>
    %7 = arith.mulf %2, %2 : vector<32x128xf32>
    %cst_5 = arith.constant dense<0.000000e+00> : vector<128xf32>
    %8 = vector.multi_reduction <add>, %7, %cst_5 [0] : vector<32x128xf32> to vector<128xf32>
    %9 = vector.shape_cast %8 : vector<128xf32> to vector<1x128xf32>
    %cst_6 = arith.constant 3.125000e-02 : f32
    %10 = vector.broadcast %cst_6 : f32 to vector<1x128xf32>
    %11 = arith.mulf %9, %10 : vector<1x128xf32>
    %12 = arith.mulf %6, %6 : vector<1x128xf32>
    %13 = arith.subf %11, %12 : vector<1x128xf32>
    %cst_7 = arith.constant 0.000000e+00 : f32
    %14 = vector.broadcast %cst_7 : f32 to vector<1x128xf32>
    %15 = arith.maximumf %13, %14 : vector<1x128xf32>
    %c0_8 = arith.constant 0 : index
    %c0_9 = arith.constant 0 : index
    %16 = vector.load %arg3[%c0_8, %c0_9] : memref<1x128xf32, #tpu.memory_space<vmem>>, vector<1x128xf32>
    %cst_10 = arith.constant 9.99999974E-6 : f32
    %17 = vector.broadcast %cst_10 : f32 to vector<1x128xf32>
    %18 = arith.addf %15, %17 : vector<1x128xf32>
    %19 = math.rsqrt %18 : vector<1x128xf32>
    %20 = arith.mulf %16, %19 : vector<1x128xf32>
    %c0_11 = arith.constant 0 : index
    %c0_12 = arith.constant 0 : index
    %21 = vector.load %arg4[%c0_11, %c0_12] : memref<1x128xf32, #tpu.memory_space<vmem>>, vector<1x128xf32>
    %22 = arith.mulf %6, %20 : vector<1x128xf32>
    %23 = arith.subf %21, %22 : vector<1x128xf32>
    %24 = vector.broadcast %20 : vector<1x128xf32> to vector<32x128xf32>
    %25 = arith.mulf %2, %24 : vector<32x128xf32>
    %26 = vector.broadcast %23 : vector<1x128xf32> to vector<32x128xf32>
    %27 = arith.addf %25, %26 : vector<32x128xf32>
    %cst_13 = arith.constant 2.000000e-01 : f32
    %28 = vector.broadcast %cst_13 : f32 to vector<32x128xf32>
    %29 = arith.mulf %28, %27 : vector<32x128xf32>
    %30 = arith.maximumf %27, %29 : vector<32x128xf32>
    %31 = arith.truncf %30 : vector<32x128xf32> to vector<32x128xbf16>
    %c0_14 = arith.constant 0 : index
    %c0_15 = arith.constant 0 : index
    %32 = vector.load %arg5[%c0_14, %c0_15] : memref<32x128xbf16, #tpu.memory_space<vmem>>, vector<32x128xbf16>
    tpu.vector_store %arg5[%c0_14, %c0_15], %31 {strides = array<i32>} : memref<32x128xbf16, #tpu.memory_space<vmem>>, vector<32x128xbf16>,
    return
  }
  func.func @transform_0(%arg0: i32) -> (i32, i32) {
    %c0_i32 = arith.constant 0 : i32
    %c0_i32_0 = arith.constant 0 : i32
    %c0_i32_1 = arith.constant 0 : i32
    return %c0_i32, %c0_i32_0 : i32, i32
  }
  func.func @transform_1(%arg0: i32) -> (i32, i32) {
    %c0_i32 = arith.constant 0 : i32
    %c0_i32_0 = arith.constant 0 : i32
    %c0_i32_1 = arith.constant 0 : i32
    return %c0_i32, %c0_i32_0 : i32, i32
  }
  func.func @transform_2(%arg0: i32) -> (i32, i32) {
    %c0_i32 = arith.constant 0 : i32
    %c0_i32_0 = arith.constant 0 : i32
    %c0_i32_1 = arith.constant 0 : i32
    return %c0_i32, %c0_i32_0 : i32, i32
  }
  func.func @transform_3(%arg0: i32) -> (i32, i32) {
    %c0_i32 = arith.constant 0 : i32
    %c0_i32_0 = arith.constant 0 : i32
    %c0_i32_1 = arith.constant 0 : i32
    return %c0_i32, %c0_i32_0 : i32, i32
  }
  func.func @transform_4(%arg0: i32) -> (i32, i32) {
    %c0_i32 = arith.constant 0 : i32
    %c0_i32_0 = arith.constant 0 : i32
    %c0_i32_1 = arith.constant 0 : i32
    return %c0_i32, %c0_i32_0 : i32, i32
  }
}

module attributes {stable_mosaic.version = 11 : i64} {
  func.func @_mm_bn_act_head_kernel(%arg0: i32, %arg1: memref<8x2048xbf16, #tpu.memory_space<vmem>>, %arg2: memref<2048x256xbf16, #tpu.memory_space<vmem>>, %arg3: memref<1x256xf32, #tpu.memory_space<vmem>>, %arg4: memref<1x256xf32, #tpu.memory_space<vmem>>, %arg5: memref<8x256xf32, #tpu.memory_space<vmem>>, %arg6: memref<2x8xf32, #tpu.memory_space<vmem>>, %arg7: memref<1x1xf32, #tpu.memory_space<vmem>>, %arg8: memref<2x1xf32, #tpu.memory_space<vmem>>) attributes {dimension_semantics = [#tpu.dimension_semantics<arbitrary>], iteration_bounds = array<i64: 1>, scalar_prefetch = 0 : i64, scratch_operands = 0 : i64, tpu.core_type = #tpu.core_type<tc>, window_params = [{pipeline_mode = #tpu.pipeline_mode<synchronous>, transform_indices = @transform_0, window_bounds = array<i64: 8, 2048>}, {pipeline_mode = #tpu.pipeline_mode<synchronous>, transform_indices = @transform_1, window_bounds = array<i64: 2048, 256>}, {pipeline_mode = #tpu.pipeline_mode<synchronous>, transform_indices = @transform_2, window_bounds = array<i64: 1, 256>}, {pipeline_mode = #tpu.pipeline_mode<synchronous>, transform_indices = @transform_3, window_bounds = array<i64: 1, 256>}, {pipeline_mode = #tpu.pipeline_mode<synchronous>, transform_indices = @transform_4, window_bounds = array<i64: 8, 256>}, {pipeline_mode = #tpu.pipeline_mode<synchronous>, transform_indices = @transform_5, window_bounds = array<i64: 2, 8>}, {pipeline_mode = #tpu.pipeline_mode<synchronous>, transform_indices = @transform_6, window_bounds = array<i64: 1, 1>}, {pipeline_mode = #tpu.pipeline_mode<synchronous>, transform_indices = @transform_7, window_bounds = array<i64: 2, 1>}]} {
    %c0 = arith.constant 0 : index
    %c0_0 = arith.constant 0 : index
    %0 = vector.load %arg1[%c0, %c0_0] : memref<8x2048xbf16, #tpu.memory_space<vmem>>, vector<8x2048xbf16>
    %c0_1 = arith.constant 0 : index
    %c0_2 = arith.constant 0 : index
    %1 = vector.load %arg2[%c0_1, %c0_2] : memref<2048x256xbf16, #tpu.memory_space<vmem>>, vector<2048x256xbf16>
    %cst = arith.constant dense<0.000000e+00> : vector<8x256xf32>
    %2 = tpu.matmul %0, %1, %cst {dimension_numbers = #tpu.dot_dimension_numbers<[1], [0], [0], [1], [0, 0, 1, 1], [], []>} : vector<8x2048xbf16>, vector<2048x256xbf16>, vector<8x256xf32> -> vector<8x256xf32>
    %cst_3 = arith.constant dense<0.000000e+00> : vector<256xf32>
    %3 = vector.multi_reduction <add>, %2, %cst_3 [0] : vector<8x256xf32> to vector<256xf32>
    %4 = vector.shape_cast %3 : vector<256xf32> to vector<1x256xf32>
    %cst_4 = arith.constant 1.250000e-01 : f32
    %5 = vector.broadcast %cst_4 : f32 to vector<1x256xf32>
    %6 = arith.mulf %4, %5 : vector<1x256xf32>
    %7 = arith.mulf %2, %2 : vector<8x256xf32>
    %cst_5 = arith.constant dense<0.000000e+00> : vector<256xf32>
    %8 = vector.multi_reduction <add>, %7, %cst_5 [0] : vector<8x256xf32> to vector<256xf32>
    %9 = vector.shape_cast %8 : vector<256xf32> to vector<1x256xf32>
    %cst_6 = arith.constant 1.250000e-01 : f32
    %10 = vector.broadcast %cst_6 : f32 to vector<1x256xf32>
    %11 = arith.mulf %9, %10 : vector<1x256xf32>
    %12 = arith.mulf %6, %6 : vector<1x256xf32>
    %13 = arith.subf %11, %12 : vector<1x256xf32>
    %cst_7 = arith.constant 0.000000e+00 : f32
    %14 = vector.broadcast %cst_7 : f32 to vector<1x256xf32>
    %15 = arith.maximumf %13, %14 : vector<1x256xf32>
    %c0_8 = arith.constant 0 : index
    %c0_9 = arith.constant 0 : index
    %16 = vector.load %arg3[%c0_8, %c0_9] : memref<1x256xf32, #tpu.memory_space<vmem>>, vector<1x256xf32>
    %cst_10 = arith.constant 9.99999974E-6 : f32
    %17 = vector.broadcast %cst_10 : f32 to vector<1x256xf32>
    %18 = arith.addf %15, %17 : vector<1x256xf32>
    %19 = math.rsqrt %18 : vector<1x256xf32>
    %20 = arith.mulf %16, %19 : vector<1x256xf32>
    %c0_11 = arith.constant 0 : index
    %c0_12 = arith.constant 0 : index
    %21 = vector.load %arg4[%c0_11, %c0_12] : memref<1x256xf32, #tpu.memory_space<vmem>>, vector<1x256xf32>
    %22 = arith.mulf %6, %20 : vector<1x256xf32>
    %23 = arith.subf %21, %22 : vector<1x256xf32>
    %24 = vector.broadcast %20 : vector<1x256xf32> to vector<8x256xf32>
    %25 = arith.mulf %2, %24 : vector<8x256xf32>
    %26 = vector.broadcast %23 : vector<1x256xf32> to vector<8x256xf32>
    %27 = arith.addf %25, %26 : vector<8x256xf32>
    %cst_13 = arith.constant 2.000000e-01 : f32
    %28 = vector.broadcast %cst_13 : f32 to vector<8x256xf32>
    %29 = arith.mulf %28, %27 : vector<8x256xf32>
    %30 = arith.maximumf %27, %29 : vector<8x256xf32>
    %c0_14 = arith.constant 0 : index
    %c0_15 = arith.constant 0 : index
    %31 = vector.load %arg5[%c0_14, %c0_15] : memref<8x256xf32, #tpu.memory_space<vmem>>, vector<8x256xf32>
    %32 = arith.mulf %30, %31 : vector<8x256xf32>
    %c0_16 = arith.constant 0 : index
    %c0_17 = arith.constant 0 : index
    %33 = vector.load %arg6[%c0_16, %c0_17] : memref<2x8xf32, #tpu.memory_space<vmem>>, vector<2x8xf32>
    %cst_18 = arith.constant dense<0.000000e+00> : vector<2x256xf32>
    %34 = tpu.matmul %33, %32, %cst_18 {dimension_numbers = #tpu.dot_dimension_numbers<[1], [0], [0], [1], [0, 0, 1, 1], [], []>} : vector<2x8xf32>, vector<8x256xf32>, vector<2x256xf32> -> vector<2x256xf32>
    %cst_19 = arith.constant dense<0.000000e+00> : vector<2xf32>
    %35 = vector.multi_reduction <add>, %34, %cst_19 [1] : vector<2x256xf32> to vector<2xf32>
    %36 = vector.shape_cast %35 : vector<2xf32> to vector<2x1xf32>
    %c0_20 = arith.constant 0 : index
    %c0_21 = arith.constant 0 : index
    %37 = vector.load %arg7[%c0_20, %c0_21] : memref<1x1xf32, #tpu.memory_space<vmem>>, vector<1x1xf32>
    %38 = vector.broadcast %37 : vector<1x1xf32> to vector<2x1xf32>
    %39 = arith.addf %36, %38 : vector<2x1xf32>
    %c0_22 = arith.constant 0 : index
    %c0_23 = arith.constant 0 : index
    %40 = vector.load %arg8[%c0_22, %c0_23] : memref<2x1xf32, #tpu.memory_space<vmem>>, vector<2x1xf32>
    tpu.vector_store %arg8[%c0_22, %c0_23], %39 {strides = array<i32>} : memref<2x1xf32, #tpu.memory_space<vmem>>, vector<2x1xf32>,
    return
  }
  func.func @transform_0(%arg0: i32) -> (i32, i32) {
    %c0_i32 = arith.constant 0 : i32
    %c0_i32_0 = arith.constant 0 : i32
    %c0_i32_1 = arith.constant 0 : i32
    return %c0_i32, %c0_i32_0 : i32, i32
  }
  func.func @transform_1(%arg0: i32) -> (i32, i32) {
    %c0_i32 = arith.constant 0 : i32
    %c0_i32_0 = arith.constant 0 : i32
    %c0_i32_1 = arith.constant 0 : i32
    return %c0_i32, %c0_i32_0 : i32, i32
  }
  func.func @transform_2(%arg0: i32) -> (i32, i32) {
    %c0_i32 = arith.constant 0 : i32
    %c0_i32_0 = arith.constant 0 : i32
    %c0_i32_1 = arith.constant 0 : i32
    return %c0_i32, %c0_i32_0 : i32, i32
  }
  func.func @transform_3(%arg0: i32) -> (i32, i32) {
    %c0_i32 = arith.constant 0 : i32
    %c0_i32_0 = arith.constant 0 : i32
    %c0_i32_1 = arith.constant 0 : i32
    return %c0_i32, %c0_i32_0 : i32, i32
  }
  func.func @transform_4(%arg0: i32) -> (i32, i32) {
    %c0_i32 = arith.constant 0 : i32
    %c0_i32_0 = arith.constant 0 : i32
    %c0_i32_1 = arith.constant 0 : i32
    return %c0_i32, %c0_i32_0 : i32, i32
  }
  func.func @transform_5(%arg0: i32) -> (i32, i32) {
    %c0_i32 = arith.constant 0 : i32
    %c0_i32_0 = arith.constant 0 : i32
    %c0_i32_1 = arith.constant 0 : i32
    return %c0_i32, %c0_i32_0 : i32, i32
  }
  func.func @transform_6(%arg0: i32) -> (i32, i32) {
    %c0_i32 = arith.constant 0 : i32
    %c0_i32_0 = arith.constant 0 : i32
    %c0_i32_1 = arith.constant 0 : i32
    return %c0_i32, %c0_i32_0 : i32, i32
  }
  func.func @transform_7(%arg0: i32) -> (i32, i32) {
    %c0_i32 = arith.constant 0 : i32
    %c0_i32_0 = arith.constant 0 : i32
    %c0_i32_1 = arith.constant 0 : i32
    return %c0_i32, %c0_i32_0 : i32, i32
  }
}

</mosaic_0001>

<llo_original>
// kernel: discriminator_forward.3
$region0: #{discriminator_forward.3}
  #allocation0 [shape = 'u32[]', space=smem, size = 0x4, offset = 0x4, fixed_abs, tag = 'smem constant byte address 0x4 - core index']
  #allocation1 [shape = 'u32[144,128]{1,0:T(1,128)}', space=vmem, size = 0x12000, scoped, tag = 'internal scratch']
  %s0 = inlined_call_operand.vmem [shape: bf16[128,16], index: 0, kind: input, shape index: {}]
  %s1 = inlined_call_operand.vmem [shape: bf16[16,64], index: 1, kind: input, shape index: {}]
  %s2 = inlined_call_operand.vmem [shape: f32[1,64], index: 2, kind: input, shape index: {}]
  %s3 = inlined_call_operand.vmem [shape: bf16[128,64], index: 3, kind: output, shape index: {}]
  %s4 = sld [smem:[#allocation0]]
  $region22: #{discriminator_forward.3} parent=0
    _
  %s6 = ssub.s32 1, %s4
  %s7 = scalar_select 0, %s6, %s4
  // Predicated region
  $region2: #{discriminator_forward.3} parent=0 // pred_check
    _
  $region3: #{discriminator_forward.3} parent=0 // pred_check_branch
    %9 = sbr.rel (0) target = $region5
  $region4: #{discriminator_forward.3} parent=0 // pred_region
    _
  $region5: #{discriminator_forward.3} parent=0 // pred_fallthru
    _
  // Predicated region
  $region6: #{discriminator_forward.3} parent=0 // pred_check
    _
  $region7: #{discriminator_forward.3} parent=0 // pred_check_branch
    %11 = sbr.rel (0) target = $region9
  $region8: #{discriminator_forward.3} parent=0 // pred_region
    _
  $region9: #{discriminator_forward.3} parent=0 // pred_fallthru
    _
  // Predicated region
  $region10: #{discriminator_forward.3} parent=0 // pred_check
    _
  $region11: #{discriminator_forward.3} parent=0 // pred_check_branch
    %13 = sbr.rel (0) target = $region13
  $region12: #{discriminator_forward.3} parent=0 // pred_region
    _
  $region13: #{discriminator_forward.3} parent=0 // pred_fallthru
    _
  %v15 = vld [vmem:[%s0] sm:$0xf]
  %v16 = vld [vmem:[%s0 + $0x4] sm:$0xf]
  %v17 = vld [vmem:[%s0 + $0x8] sm:$0xf]
  %v18 = vld [vmem:[%s0 + $0xc] sm:$0xf]
  %v19 = vld [vmem:[%s0 + $0x10] sm:$0xf]
  %v20 = vld [vmem:[%s0 + $0x14] sm:$0xf]
  %v21 = vld [vmem:[%s0 + $0x18] sm:$0xf]
  %v22 = vld [vmem:[%s0 + $0x1c] sm:$0xf]
  %v23 = vld [vmem:[%s0 + $0x20] sm:$0xf]
  %v24 = vld [vmem:[%s0 + $0x24] sm:$0xf]
  %v25 = vld [vmem:[%s0 + $0x28] sm:$0xf]
  %v26 = vld [vmem:[%s0 + $0x2c] sm:$0xf]
  %v27 = vld [vmem:[%s0 + $0x30] sm:$0xf]
  %v28 = vld [vmem:[%s0 + $0x34] sm:$0xf]
  %v29 = vld [vmem:[%s0 + $0x38] sm:$0xf]
  %v30 = vld [vmem:[%s0 + $0x3c] sm:$0xf]
  %v31 = vld [vmem:[%s1] sm:$0xf]
  %v32 = vld [vmem:[%s1 + $0x4] sm:$0xf]
  %v33 = vld [vmem:[%s2] sm:$0x1]
  %v35 = vlaneseq
  %v36 = vshrl.u32 %v35, 7
  %v37 = vsub.s32 0, %v36
  %v38 = vrot.slane %v33, %v37
  %v56 = vunpack.c.l.b16 %v15
  %v57 = vunpack.c.l.b16 %v16
  %v58 = vunpack.c.l.b16 %v17
  %v59 = vunpack.c.l.b16 %v18
  %v60 = vunpack.c.l.b16 %v19
  %v61 = vunpack.c.l.b16 %v20
  %v62 = vunpack.c.l.b16 %v21
  %v63 = vunpack.c.l.b16 %v22
  %v64 = vunpack.c.l.b16 %v23
  %v65 = vunpack.c.l.b16 %v24
  %v66 = vunpack.c.l.b16 %v25
  %v67 = vunpack.c.l.b16 %v26
  %v68 = vunpack.c.l.b16 %v27
  %v69 = vunpack.c.l.b16 %v28
  %v70 = vunpack.c.l.b16 %v29
  %v71 = vunpack.c.l.b16 %v30
  %v72 = vpack.c.b16 %v57, %v56
  %v73 = vpack.c.b16 %v59, %v58
  %v74 = vpack.c.b16 %v61, %v60
  %v75 = vpack.c.b16 %v63, %v62
  %v76 = vpack.c.b16 %v65, %v64
  %v77 = vpack.c.b16 %v67, %v66
  %v78 = vpack.c.b16 %v69, %v68
  %v79 = vpack.c.b16 %v71, %v70
  %v82 = vunpack.c.l.b16 %v31
  %v83 = vunpack.c.l.b16 %v32
  %v84 = vpack.c.b16 %v83, %v82
  %vm86 = vcmask 130048
  %v88 = vsel %vm86, %v72, 0
  %v91 = vsel %vm86, %v73, 0
  %v94 = vsel %vm86, %v74, 0
  %v97 = vsel %vm86, %v75, 0
  %v100 = vsel %vm86, %v76, 0
  %v103 = vsel %vm86, %v77, 0
  %v106 = vsel %vm86, %v78, 0
  %v109 = vsel %vm86, %v79, 0
  %111 = vmatprep.subr.bf16.mxu0 0
  %112 = vmatpush1.bf16.msra.mxu0 %v84
  %113 = vmatprep.subr.bf16.mxu0 0
  %114 = vmatpush1.bf16.msra.mxu0 0
  %115 = vmatprep.subr.bf16.mxu0 0
  %116 = vmatpush1.bf16.msra.mxu0 0
  %117 = vmatprep.subr.bf16.mxu0 0
  %118 = vmatpush1.bf16.msra.mxu0 0
  %119 = vmatprep.subr.bf16.mxu0 0
  %120 = vmatpush1.bf16.msra.mxu0 0
  %121 = vmatprep.subr.bf16.mxu0 0
  %122 = vmatpush1.bf16.msra.mxu0 0
  %123 = vmatprep.subr.bf16.mxu0 0
  %124 = vmatpush1.bf16.msra.mxu0 0
  %125 = vmatprep.subr.bf16.mxu0 0
  %126 = vmatpush1.bf16.msra.mxu0 0
  %127 = vmatprep.subr.bf16.mxu0 0
  %128 = vmatpush1.bf16.msra.mxu0 0
  %129 = vmatprep.subr.bf16.mxu0 0
  %130 = vmatpush1.bf16.msra.mxu0 0
  %131 = vmatprep.subr.bf16.mxu0 0
  %132 = vmatpush1.bf16.msra.mxu0 0
  %133 = vmatprep.subr.bf16.mxu0 0
  %134 = vmatpush1.bf16.msra.mxu0 0
  %135 = vmatprep.subr.bf16.mxu0 0
  %136 = vmatpush1.bf16.msra.mxu0 0
  %137 = vmatprep.subr.bf16.mxu0 0
  %138 = vmatpush1.bf16.msra.mxu0 0
  %139 = vmatprep.subr.bf16.mxu0 0
  %140 = vmatpush1.bf16.msra.mxu0 0
  %141 = vmatprep.subr.bf16.mxu0 0
  %142 = vmatpush1.bf16.msra.mxu0 0
  %143 = vmatprep.mubr.bf16.mxu0 0
  %144 = vmatmul.mubr.bf16.gmra.mrb[0].mxu0 %v88
  %v145 = vpop.f32.mrb[0].mxu0
  %v146 = vadd.f32 %v38, %v145
  %v147 = vpop.f32.mrb[0].mxu0
  %v148 = vpop.f32.mrb[0].mxu0
  %v149 = vadd.f32 %v38, %v148
  %v150 = vpop.f32.mrb[0].mxu0
  %151 = vmatprep.mubr.bf16.mxu0 0
  %152 = vmatmul.mubr.bf16.gmra.mrb[0].mxu0 %v91
  %v153 = vpop.f32.mrb[0].mxu0
  %v154 = vadd.f32 %v38, %v153
  %v155 = vpop.f32.mrb[0].mxu0
  %v156 = vpop.f32.mrb[0].mxu0
  %v157 = vadd.f32 %v38, %v156
  %v158 = vpop.f32.mrb[0].mxu0
  %159 = vmatprep.mubr.bf16.mxu0 0
  %160 = vmatmul.mubr.bf16.gmra.mrb[0].mxu0 %v94
  %v161 = vpop.f32.mrb[0].mxu0
  %v162 = vadd.f32 %v38, %v161
  %v163 = vpop.f32.mrb[0].mxu0
  %v164 = vpop.f32.mrb[0].mxu0
  %v165 = vadd.f32 %v38, %v164
  %v166 = vpop.f32.mrb[0].mxu0
  %167 = vmatprep.mubr.bf16.mxu0 0
  %168 = vmatmul.mubr.bf16.gmra.mrb[0].mxu0 %v97
  %v169 = vpop.f32.mrb[0].mxu0
  %v170 = vadd.f32 %v38, %v169
  %v171 = vpop.f32.mrb[0].mxu0
  %v172 = vpop.f32.mrb[0].mxu0
  %v173 = vadd.f32 %v38, %v172
  %v174 = vpop.f32.mrb[0].mxu0
  %175 = vmatprep.mubr.bf16.mxu0 0
  %176 = vmatmul.mubr.bf16.gmra.mrb[0].mxu0 %v100
  %v177 = vpop.f32.mrb[0].mxu0
  %v178 = vadd.f32 %v38, %v177
  %v179 = vpop.f32.mrb[0].mxu0
  %v180 = vpop.f32.mrb[0].mxu0
  %v181 = vadd.f32 %v38, %v180
  %v182 = vpop.f32.mrb[0].mxu0
  %183 = vmatprep.mubr.bf16.mxu0 0
  %184 = vmatmul.mubr.bf16.gmra.mrb[0].mxu0 %v103
  %v185 = vpop.f32.mrb[0].mxu0
  %v186 = vadd.f32 %v38, %v185
  %v187 = vpop.f32.mrb[0].mxu0
  %v188 = vpop.f32.mrb[0].mxu0
  %v189 = vadd.f32 %v38, %v188
  %v190 = vpop.f32.mrb[0].mxu0
  %191 = vmatprep.mubr.bf16.mxu0 0
  %192 = vmatmul.mubr.bf16.gmra.mrb[0].mxu0 %v106
  %v193 = vpop.f32.mrb[0].mxu0
  %v194 = vadd.f32 %v38, %v193
  %v195 = vpop.f32.mrb[0].mxu0
  %v196 = vpop.f32.mrb[0].mxu0
  %v197 = vadd.f32 %v38, %v196
  %v198 = vpop.f32.mrb[0].mxu0
  %199 = vmatprep.mubr.bf16.mxu0 0
  %200 = vmatmul.mubr.bf16.gmra.mrb[0].mxu0 %v109
  %v201 = vpop.f32.mrb[0].mxu0
  %v202 = vadd.f32 %v38, %v201
  %v203 = vpop.f32.mrb[0].mxu0
  %v204 = vpop.f32.mrb[0].mxu0
  %v205 = vadd.f32 %v38, %v204
  %v206 = vpop.f32.mrb[0].mxu0
  %207 = vdwg.mxu0
  %v208 = vmul.f32 %v146, 0.2
  %v209 = vmul.f32 %v149, 0.2
  %v210 = vmul.f32 %v154, 0.2
  %v211 = vmul.f32 %v157, 0.2
  %v212 = vmul.f32 %v162, 0.2
  %v213 = vmul.f32 %v165, 0.2
  %v214 = vmul.f32 %v170, 0.2
  %v215 = vmul.f32 %v173, 0.2
  %v216 = vmul.f32 %v178, 0.2
  %v217 = vmul.f32 %v181, 0.2
  %v218 = vmul.f32 %v186, 0.2
  %v219 = vmul.f32 %v189, 0.2
  %v220 = vmul.f32 %v194, 0.2
  %v221 = vmul.f32 %v197, 0.2
  %v222 = vmul.f32 %v202, 0.2
  %v223 = vmul.f32 %v205, 0.2
  %v224 = vmax.f32 %v146, %v208
  %v225 = vmax.f32 %v149, %v209
  %v226 = vmax.f32 %v154, %v210
  %v227 = vmax.f32 %v157, %v211
  %v228 = vmax.f32 %v162, %v212
  %v229 = vmax.f32 %v165, %v213
  %v230 = vmax.f32 %v170, %v214
  %v231 = vmax.f32 %v173, %v215
  %v232 = vmax.f32 %v178, %v216
  %v233 = vmax.f32 %v181, %v217
  %v234 = vmax.f32 %v186, %v218
  %v235 = vmax.f32 %v189, %v219
  %v236 = vmax.f32 %v194, %v220
  %v237 = vmax.f32 %v197, %v221
  %v238 = vmax.f32 %v202, %v222
  %v239 = vmax.f32 %v205, %v223
  %v240 = vpack.c.bf16 %v225, %v224
  %v241 = vpack.c.bf16 %v227, %v226
  %v242 = vpack.c.bf16 %v229, %v228
  %v243 = vpack.c.bf16 %v231, %v230
  %v244 = vpack.c.bf16 %v233, %v232
  %v245 = vpack.c.bf16 %v235, %v234
  %v246 = vpack.c.bf16 %v237, %v236
  %v247 = vpack.c.bf16 %v239, %v238
  %v256 = vunpack.c.l.b16 %v240
  %v257 = vunpack.c.h.b16 %v240
  %v258 = vunpack.c.l.b16 %v241
  %v259 = vunpack.c.h.b16 %v241
  %v260 = vunpack.c.l.b16 %v242
  %v261 = vunpack.c.h.b16 %v242
  %v262 = vunpack.c.l.b16 %v243
  %v263 = vunpack.c.h.b16 %v243
  %v264 = vunpack.c.l.b16 %v244
  %v265 = vunpack.c.h.b16 %v244
  %v266 = vunpack.c.l.b16 %v245
  %v267 = vunpack.c.h.b16 %v245
  %v268 = vunpack.c.l.b16 %v246
  %v269 = vunpack.c.h.b16 %v246
  %v270 = vunpack.c.l.b16 %v247
  %v271 = vunpack.c.h.b16 %v247
  %v272 = vpack.c.b16 %v256, %v256
  %v273 = vpack.c.b16 %v257, %v257
  %v274 = vpack.c.b16 %v258, %v258
  %v275 = vpack.c.b16 %v259, %v259
  %v276 = vpack.c.b16 %v260, %v260
  %v277 = vpack.c.b16 %v261, %v261
  %v278 = vpack.c.b16 %v262, %v262
  %v279 = vpack.c.b16 %v263, %v263
  %v280 = vpack.c.b16 %v264, %v264
  %v281 = vpack.c.b16 %v265, %v265
  %v282 = vpack.c.b16 %v266, %v266
  %v283 = vpack.c.b16 %v267, %v267
  %v284 = vpack.c.b16 %v268, %v268
  %v285 = vpack.c.b16 %v269, %v269
  %v286 = vpack.c.b16 %v270, %v270
  %v287 = vpack.c.b16 %v271, %v271
  %vm304 = vcmask 519168
  %305 = vst.msk [vmem:[%s3] sm:$0xf] %vm304, %v272
  %306 = vst.msk [vmem:[%s3 + $0x4] sm:$0xf] %vm304, %v273
  %307 = vst.msk [vmem:[%s3 + $0x8] sm:$0xf] %vm304, %v274
  %308 = vst.msk [vmem:[%s3 + $0xc] sm:$0xf] %vm304, %v275
  %309 = vst.msk [vmem:[%s3 + $0x10] sm:$0xf] %vm304, %v276
  %310 = vst.msk [vmem:[%s3 + $0x14] sm:$0xf] %vm304, %v277
  %311 = vst.msk [vmem:[%s3 + $0x18] sm:$0xf] %vm304, %v278
  %312 = vst.msk [vmem:[%s3 + $0x1c] sm:$0xf] %vm304, %v279
  %313 = vst.msk [vmem:[%s3 + $0x20] sm:$0xf] %vm304, %v280
  %314 = vst.msk [vmem:[%s3 + $0x24] sm:$0xf] %vm304, %v281
  %315 = vst.msk [vmem:[%s3 + $0x28] sm:$0xf] %vm304, %v282
  %316 = vst.msk [vmem:[%s3 + $0x2c] sm:$0xf] %vm304, %v283
  %317 = vst.msk [vmem:[%s3 + $0x30] sm:$0xf] %vm304, %v284
  %318 = vst.msk [vmem:[%s3 + $0x34] sm:$0xf] %vm304, %v285
  %319 = vst.msk [vmem:[%s3 + $0x38] sm:$0xf] %vm304, %v286
  %320 = vst.msk [vmem:[%s3 + $0x3c] sm:$0xf] %vm304, %v287
  // Predicated region
  $region14: #{discriminator_forward.3} parent=0 // pred_check
    _
  $region15: #{discriminator_forward.3} parent=0 // pred_check_branch
    %322 = sbr.rel (0) target = $region17
  $region16: #{discriminator_forward.3} parent=0 // pred_region
    _
  $region17: #{discriminator_forward.3} parent=0 // pred_fallthru
    _
  // Predicated region
  $region18: #{discriminator_forward.3} parent=0 // pred_check
    _
  $region19: #{discriminator_forward.3} parent=0 // pred_check_branch
    %324 = sbr.rel (0) target = $region21
  $region20: #{discriminator_forward.3} parent=0 // pred_region
    _
  $region21: #{discriminator_forward.3} parent=0 // pred_fallthru
    _

// kernel: discriminator_forward.4
$region0: #{discriminator_forward.4}
  #allocation0 [shape = 'u32[]', space=smem, size = 0x4, offset = 0x4, fixed_abs, tag = 'smem constant byte address 0x4 - core index']
  #allocation1 [shape = 'u32[144,128]{1,0:T(1,128)}', space=vmem, size = 0x12000, scoped, tag = 'internal scratch']
  %s0 = inlined_call_operand.vmem [shape: bf16[32,1024], index: 0, kind: input, shape index: {}]
  %s1 = inlined_call_operand.hbm [shape: bf16[1024,128], index: 1, kind: input, shape index: {}]
  %s2 = inlined_call_operand.vmem [shape: f32[1,128], index: 2, kind: input, shape index: {}]
  %s3 = inlined_call_operand.vmem [shape: f32[1,128], index: 3, kind: input, shape index: {}]
  %s4 = inlined_call_operand.vmem [shape: bf16[32,128], index: 4, kind: output, shape index: {}]
  %s5 = sld [smem:[#allocation0]]
  $region30: #{discriminator_forward.4} parent=0
    _
  %s7 = ssub.s32 1, %s5
  %s8 = scalar_select 0, %s7, %s5
  $region1: #{discriminator_forward.4} parent=0
    #allocation2 [shape = 'u8[262144]{0}', space=vmem, size = 0x40000, scoped, tag = 'input window, operand 1, single buffered']
    #allocation3 [shape = 's32[1]{0}', space=sflag, size = 0x4, scoped, tag = 'scoped memory for discriminator_forward.4']
    %9 = vsyncpa [#allocation3], 0
    // Predicated region
    $region2: #{discriminator_forward.4} parent=1 // pred_check
      _
    $region3: #{discriminator_forward.4} parent=1 // pred_check_branch
      %11 = sbr.rel (0) target = $region5
    $region4: #{discriminator_forward.4} parent=1 // pred_region
      _
    $region5: #{discriminator_forward.4} parent=1 // pred_fallthru
      _
    // Predicated region
    $region6: #{discriminator_forward.4} parent=1 // pred_check
      _
    $region7: #{discriminator_forward.4} parent=1 // pred_check_branch
      %13 = sbr.rel (0) target = $region9
    $region8: #{discriminator_forward.4} parent=1 // pred_region
      %s15 = ssub.s32 8192, 8192
      %16 = vsyncadd [#allocation3], %s15
      %s17 = sshll.u32 [#allocation2], 4
      %s18 = int_to_ptr.vmem [resolvable:$true] %s17
      %23 = dma.hbm_to_vmem [thread:$0]  %s1, 8192, %s18, [#allocation3], 64, 64, 4
    $region9: #{discriminator_forward.4} parent=1 // pred_fallthru
      _
    // Predicated region
    $region10: #{discriminator_forward.4} parent=1 // pred_check
      _
    $region11: #{discriminator_forward.4} parent=1 // pred_check_branch
      %25 = sbr.rel (0) target = $region13
    $region12: #{discriminator_forward.4} parent=1 // pred_region
      _
    $region13: #{discriminator_forward.4} parent=1 // pred_fallthru
      _
    // Predicated region
    $region14: #{discriminator_forward.4} parent=1 // pred_check
      _
    $region15: #{discriminator_forward.4} parent=1 // pred_check_branch
      %27 = sbr.rel (0) target = $region17
    $region16: #{discriminator_forward.4} parent=1 // pred_region
      _
    $region17: #{discriminator_forward.4} parent=1 // pred_fallthru
      _
    // Predicated region
    $region18: #{discriminator_forward.4} parent=1 // pred_check
      _
    $region19: #{discriminator_forward.4} parent=1 // pred_check_branch
      %29 = sbr.rel (0) target = $region21
    $region20: #{discriminator_forward.4} parent=1 // pred_region
      %30 = dma.done [#allocation3], 8192
    $region21: #{discriminator_forward.4} parent=1 // pred_fallthru
      _
    %v32 = vld [vmem:[%s0] sm:$0xff]
    %v33 = vld [vmem:[%s0 + $0x8] sm:$0xff]
    %v34 = vld [vmem:[%s0 + $0x10] sm:$0xff]
    %v35 = vld [vmem:[%s0 + $0x18] sm:$0xff]
    %v36 = vld [vmem:[%s0 + $0x20] sm:$0xff]
    %v37 = vld [vmem:[%s0 + $0x28] sm:$0xff]
    %v38 = vld [vmem:[%s0 + $0x30] sm:$0xff]
    %v39 = vld [vmem:[%s0 + $0x38] sm:$0xff]
    %v40 = vld [vmem:[%s0 + $0x40] sm:$0xff]
    %v41 = vld [vmem:[%s0 + $0x48] sm:$0xff]
    %v42 = vld [vmem:[%s0 + $0x50] sm:$0xff]
    %v43 = vld [vmem:[%s0 + $0x58] sm:$0xff]
    %v44 = vld [vmem:[%s0 + $0x60] sm:$0xff]
    %v45 = vld [vmem:[%s0 + $0x68] sm:$0xff]
    %v46 = vld [vmem:[%s0 + $0x70] sm:$0xff]
    %v47 = vld [vmem:[%s0 + $0x78] sm:$0xff]
    %v48 = vld [vmem:[#allocation2] sm:$0xf]
    %v49 = vld [vmem:[#allocation2 + $0x4] sm:$0xf]
    %v50 = vld [vmem:[#allocation2 + $0x8] sm:$0xf]
    %v51 = vld [vmem:[#allocation2 + $0xc] sm:$0xf]
    %v52 = vld [vmem:[#allocation2 + $0x10] sm:$0xf]
    %v53 = vld [vmem:[#allocation2 + $0x14] sm:$0xf]
    %v54 = vld [vmem:[#allocation2 + $0x18] sm:$0xf]
    %v55 = vld [vmem:[#allocation2 + $0x1c] sm:$0xf]
    %v56 = vld [vmem:[#allocation2 + $0x20] sm:$0xf]
    %v57 = vld [vmem:[#allocation2 + $0x24] sm:$0xf]
    %v58 = vld [vmem:[#allocation2 + $0x28] sm:$0xf]
    %v59 = vld [vmem:[#allocation2 + $0x2c] sm:$0xf]
    %v60 = vld [vmem:[#allocation2 + $0x30] sm:$0xf]
    %v61 = vld [vmem:[#allocation2 + $0x34] sm:$0xf]
    %v62 = vld [vmem:[#allocation2 + $0x38] sm:$0xf]
    %v63 = vld [vmem:[#allocation2 + $0x3c] sm:$0xf]
    %v64 = vld [vmem:[#allocation2 + $0x40] sm:$0xf]
    %v65 = vld [vmem:[#allocation2 + $0x44] sm:$0xf]
    %v66 = vld [vmem:[#allocation2 + $0x48] sm:$0xf]
    %v67 = vld [vmem:[#allocation2 + $0x4c] sm:$0xf]
    %v68 = vld [vmem:[#allocation2 + $0x50] sm:$0xf]
    %v69 = vld [vmem:[#allocation2 + $0x54] sm:$0xf]
    %v70 = vld [vmem:[#allocation2 + $0x58] sm:$0xf]
    %v71 = vld [vmem:[#allocation2 + $0x5c] sm:$0xf]
    %v72 = vld [vmem:[#allocation2 + $0x60] sm:$0xf]
    %v73 = vld [vmem:[#allocation2 + $0x64] sm:$0xf]
    %v74 = vld [vmem:[#allocation2 + $0x68] sm:$0xf]
    %v75 = vld [vmem:[#allocation2 + $0x6c] sm:$0xf]
    %v76 = vld [vmem:[#allocation2 + $0x70] sm:$0xf]
    %v77 = vld [vmem:[#allocation2 + $0x74] sm:$0xf]
    %v78 = vld [vmem:[#allocation2 + $0x78] sm:$0xf]
    %v79 = vld [vmem:[#allocation2 + $0x7c] sm:$0xf]
    %v80 = vld [vmem:[#allocation2 + $0x80] sm:$0xf]
    %v81 = vld [vmem:[#allocation2 + $0x84] sm:$0xf]
    %v82 = vld [vmem:[#allocation2 + $0x88] sm:$0xf]
    %v83 = vld [vmem:[#allocation2 + $0x8c] sm:$0xf]
    %v84 = vld [vmem:[#allocation2 + $0x90] sm:$0xf]
    %v85 = vld [vmem:[#allocation2 + $0x94] sm:$0xf]
    %v86 = vld [vmem:[#allocation2 + $0x98] sm:$0xf]
    %v87 = vld [vmem:[#allocation2 + $0x9c] sm:$0xf]
    %v88 = vld [vmem:[#allocation2 + $0xa0] sm:$0xf]
    %v89 = vld [vmem:[#allocation2 + $0xa4] sm:$0xf]
    %v90 = vld [vmem:[#allocation2 + $0xa8] sm:$0xf]
    %v91 = vld [vmem:[#allocation2 + $0xac] sm:$0xf]
    %v92 = vld [vmem:[#allocation2 + $0xb0] sm:$0xf]
    %v93 = vld [vmem:[#allocation2 + $0xb4] sm:$0xf]
    %v94 = vld [vmem:[#allocation2 + $0xb8] sm:$0xf]
    %v95 = vld [vmem:[#allocation2 + $0xbc] sm:$0xf]
    %v96 = vld [vmem:[#allocation2 + $0xc0] sm:$0xf]
    %v97 = vld [vmem:[#allocation2 + $0xc4] sm:$0xf]
    %v98 = vld [vmem:[#allocation2 + $0xc8] sm:$0xf]
    %v99 = vld [vmem:[#allocation2 + $0xcc] sm:$0xf]
    %v100 = vld [vmem:[#allocation2 + $0xd0] sm:$0xf]
    %v101 = vld [vmem:[#allocation2 + $0xd4] sm:$0xf]
    %v102 = vld [vmem:[#allocation2 + $0xd8] sm:$0xf]
    %v103 = vld [vmem:[#allocation2 + $0xdc] sm:$0xf]
    %v104 = vld [vmem:[#allocation2 + $0xe0] sm:$0xf]
    %v105 = vld [vmem:[#allocation2 + $0xe4] sm:$0xf]
    %v106 = vld [vmem:[#allocation2 + $0xe8] sm:$0xf]
    %v107 = vld [vmem:[#allocation2 + $0xec] sm:$0xf]
    %v108 = vld [vmem:[#allocation2 + $0xf0] sm:$0xf]
    %v109 = vld [vmem:[#allocation2 + $0xf4] sm:$0xf]
    %v110 = vld [vmem:[#allocation2 + $0xf8] sm:$0xf]
    %v111 = vld [vmem:[#allocation2 + $0xfc] sm:$0xf]
    %v112 = vld [vmem:[#allocation2 + $0x100] sm:$0xf]
    %v113 = vld [vmem:[#allocation2 + $0x104] sm:$0xf]
    %v114 = vld [vmem:[#allocation2 + $0x108] sm:$0xf]
    %v115 = vld [vmem:[#allocation2 + $0x10c] sm:$0xf]
    %v116 = vld [vmem:[#allocation2 + $0x110] sm:$0xf]
    %v117 = vld [vmem:[#allocation2 + $0x114] sm:$0xf]
    %v118 = vld [vmem:[#allocation2 + $0x118] sm:$0xf]
    %v119 = vld [vmem:[#allocation2 + $0x11c] sm:$0xf]
    %v120 = vld [vmem:[#allocation2 + $0x120] sm:$0xf]
    %v121 = vld [vmem:[#allocation2 + $0x124] sm:$0xf]
    %v122 = vld [vmem:[#allocation2 + $0x128] sm:$0xf]
    %v123 = vld [vmem:[#allocation2 + $0x12c] sm:$0xf]
    %v124 = vld [vmem:[#allocation2 + $0x130] sm:$0xf]
    %v125 = vld [vmem:[#allocation2 + $0x134] sm:$0xf]
    %v126 = vld [vmem:[#allocation2 + $0x138] sm:$0xf]
    %v127 = vld [vmem:[#allocation2 + $0x13c] sm:$0xf]
    %v128 = vld [vmem:[#allocation2 + $0x140] sm:$0xf]
    %v129 = vld [vmem:[#allocation2 + $0x144] sm:$0xf]
    %v130 = vld [vmem:[#allocation2 + $0x148] sm:$0xf]
    %v131 = vld [vmem:[#allocation2 + $0x14c] sm:$0xf]
    %v132 = vld [vmem:[#allocation2 + $0x150] sm:$0xf]
    %v133 = vld [vmem:[#allocation2 + $0x154] sm:$0xf]
    %v134 = vld [vmem:[#allocation2 + $0x158] sm:$0xf]
    %v135 = vld [vmem:[#allocation2 + $0x15c] sm:$0xf]
    %v136 = vld [vmem:[#allocation2 + $0x160] sm:$0xf]
    %v137 = vld [vmem:[#allocation2 + $0x164] sm:$0xf]
    %v138 = vld [vmem:[#allocation2 + $0x168] sm:$0xf]
    %v139 = vld [vmem:[#allocation2 + $0x16c] sm:$0xf]
    %v140 = vld [vmem:[#allocation2 + $0x170] sm:$0xf]
    %v141 = vld [vmem:[#allocation2 + $0x174] sm:$0xf]
    %v142 = vld [vmem:[#allocation2 + $0x178] sm:$0xf]
    %v143 = vld [vmem:[#allocation2 + $0x17c] sm:$0xf]
    %v144 = vld [vmem:[#allocation2 + $0x180] sm:$0xf]
    %v145 = vld [vmem:[#allocation2 + $0x184] sm:$0xf]
    %v146 = vld [vmem:[#allocation2 + $0x188] sm:$0xf]
    %v147 = vld [vmem:[#allocation2 + $0x18c] sm:$0xf]
    %v148 = vld [vmem:[#allocation2 + $0x190] sm:$0xf]
    %v149 = vld [vmem:[#allocation2 + $0x194] sm:$0xf]
    %v150 = vld [vmem:[#allocation2 + $0x198] sm:$0xf]
    %v151 = vld [vmem:[#allocation2 + $0x19c] sm:$0xf]
    %v152 = vld [vmem:[#allocation2 + $0x1a0] sm:$0xf]
    %v153 = vld [vmem:[#allocation2 + $0x1a4] sm:$0xf]
    %v154 = vld [vmem:[#allocation2 + $0x1a8] sm:$0xf]
    %v155 = vld [vmem:[#allocation2 + $0x1ac] sm:$0xf]
    %v156 = vld [vmem:[#allocation2 + $0x1b0] sm:$0xf]
    %v157 = vld [vmem:[#allocation2 + $0x1b4] sm:$0xf]
    %v158 = vld [vmem:[#allocation2 + $0x1b8] sm:$0xf]
    %v159 = vld [vmem:[#allocation2 + $0x1bc] sm:$0xf]
    %v160 = vld [vmem:[#allocation2 + $0x1c0] sm:$0xf]
    %v161 = vld [vmem:[#allocation2 + $0x1c4] sm:$0xf]
    %v162 = vld [vmem:[#allocation2 + $0x1c8] sm:$0xf]
    %v163 = vld [vmem:[#allocation2 + $0x1cc] sm:$0xf]
    %v164 = vld [vmem:[#allocation2 + $0x1d0] sm:$0xf]
    %v165 = vld [vmem:[#allocation2 + $0x1d4] sm:$0xf]
    %v166 = vld [vmem:[#allocation2 + $0x1d8] sm:$0xf]
    %v167 = vld [vmem:[#allocation2 + $0x1dc] sm:$0xf]
    %v168 = vld [vmem:[#allocation2 + $0x1e0] sm:$0xf]
    %v169 = vld [vmem:[#allocation2 + $0x1e4] sm:$0xf]
    %v170 = vld [vmem:[#allocation2 + $0x1e8] sm:$0xf]
    %v171 = vld [vmem:[#allocation2 + $0x1ec] sm:$0xf]
    %v172 = vld [vmem:[#allocation2 + $0x1f0] sm:$0xf]
    %v173 = vld [vmem:[#allocation2 + $0x1f4] sm:$0xf]
    %v174 = vld [vmem:[#allocation2 + $0x1f8] sm:$0xf]
    %v175 = vld [vmem:[#allocation2 + $0x1fc] sm:$0xf]
    %v192 = vunpack.c.l.b16 %v32
    %v193 = vunpack.c.h.b16 %v32
    %v194 = vunpack.c.l.b16 %v33
    %v195 = vunpack.c.h.b16 %v33
    %v196 = vunpack.c.l.b16 %v34
    %v197 = vunpack.c.h.b16 %v34
    %v198 = vunpack.c.l.b16 %v35
    %v199 = vunpack.c.h.b16 %v35
    %v200 = vunpack.c.l.b16 %v36
    %v201 = vunpack.c.h.b16 %v36
    %v202 = vunpack.c.l.b16 %v37
    %v203 = vunpack.c.h.b16 %v37
    %v204 = vunpack.c.l.b16 %v38
    %v205 = vunpack.c.h.b16 %v38
    %v206 = vunpack.c.l.b16 %v39
    %v207 = vunpack.c.h.b16 %v39
    %v208 = vunpack.c.l.b16 %v40
    %v209 = vunpack.c.h.b16 %v40
    %v210 = vunpack.c.l.b16 %v41
    %v211 = vunpack.c.h.b16 %v41
    %v212 = vunpack.c.l.b16 %v42
    %v213 = vunpack.c.h.b16 %v42
    %v214 = vunpack.c.l.b16 %v43
    %v215 = vunpack.c.h.b16 %v43
    %v216 = vunpack.c.l.b16 %v44
    %v217 = vunpack.c.h.b16 %v44
    %v218 = vunpack.c.l.b16 %v45
    %v219 = vunpack.c.h.b16 %v45
    %v220 = vunpack.c.l.b16 %v46
    %v221 = vunpack.c.h.b16 %v46
    %v222 = vunpack.c.l.b16 %v47
    %v223 = vunpack.c.h.b16 %v47
    %v224 = vpack.c.b16 %v200, %v192
    %v225 = vpack.c.b16 %v201, %v193
    %v226 = vpack.c.b16 %v202, %v194
    %v227 = vpack.c.b16 %v203, %v195
    %v228 = vpack.c.b16 %v204, %v196
    %v229 = vpack.c.b16 %v205, %v197
    %v230 = vpack.c.b16 %v206, %v198
    %v231 = vpack.c.b16 %v207, %v199
    %v232 = vpack.c.b16 %v216, %v208
    %v233 = vpack.c.b16 %v217, %v209
    %v234 = vpack.c.b16 %v218, %v210
    %v235 = vpack.c.b16 %v219, %v211
    %v236 = vpack.c.b16 %v220, %v212
    %v237 = vpack.c.b16 %v221, %v213
    %v238 = vpack.c.b16 %v222, %v214
    %v239 = vpack.c.b16 %v223, %v215
    %v384 = vunpack.c.l.b16 %v48
    %v385 = vunpack.c.l.b16 %v49
    %v386 = vunpack.c.l.b16 %v50
    %v387 = vunpack.c.l.b16 %v51
    %v388 = vunpack.c.l.b16 %v52
    %v389 = vunpack.c.l.b16 %v53
    %v390 = vunpack.c.l.b16 %v54
    %v391 = vunpack.c.l.b16 %v55
    %v392 = vunpack.c.l.b16 %v56
    %v393 = vunpack.c.l.b16 %v57
    %v394 = vunpack.c.l.b16 %v58
    %v395 = vunpack.c.l.b16 %v59
    %v396 = vunpack.c.l.b16 %v60
    %v397 = vunpack.c.l.b16 %v61
    %v398 = vunpack.c.l.b16 %v62
    %v399 = vunpack.c.l.b16 %v63
    %v400 = vunpack.c.l.b16 %v64
    %v401 = vunpack.c.l.b16 %v65
    %v402 = vunpack.c.l.b16 %v66
    %v403 = vunpack.c.l.b16 %v67
    %v404 = vunpack.c.l.b16 %v68
    %v405 = vunpack.c.l.b16 %v69
    %v406 = vunpack.c.l.b16 %v70
    %v407 = vunpack.c.l.b16 %v71
    %v408 = vunpack.c.l.b16 %v72
    %v409 = vunpack.c.l.b16 %v73
    %v410 = vunpack.c.l.b16 %v74
    %v411 = vunpack.c.l.b16 %v75
    %v412 = vunpack.c.l.b16 %v76
    %v413 = vunpack.c.l.b16 %v77
    %v414 = vunpack.c.l.b16 %v78
    %v415 = vunpack.c.l.b16 %v79
    %v416 = vunpack.c.l.b16 %v80
    %v417 = vunpack.c.l.b16 %v81
    %v418 = vunpack.c.l.b16 %v82
    %v419 = vunpack.c.l.b16 %v83
    %v420 = vunpack.c.l.b16 %v84
    %v421 = vunpack.c.l.b16 %v85
    %v422 = vunpack.c.l.b16 %v86
    %v423 = vunpack.c.l.b16 %v87
    %v424 = vunpack.c.l.b16 %v88
    %v425 = vunpack.c.l.b16 %v89
    %v426 = vunpack.c.l.b16 %v90
    %v427 = vunpack.c.l.b16 %v91
    %v428 = vunpack.c.l.b16 %v92
    %v429 = vunpack.c.l.b16 %v93
    %v430 = vunpack.c.l.b16 %v94
    %v431 = vunpack.c.l.b16 %v95
    %v432 = vunpack.c.l.b16 %v96
    %v433 = vunpack.c.l.b16 %v97
    %v434 = vunpack.c.l.b16 %v98
    %v435 = vunpack.c.l.b16 %v99
    %v436 = vunpack.c.l.b16 %v100
    %v437 = vunpack.c.l.b16 %v101
    %v438 = vunpack.c.l.b16 %v102
    %v439 = vunpack.c.l.b16 %v103
    %v440 = vunpack.c.l.b16 %v104
    %v441 = vunpack.c.l.b16 %v105
    %v442 = vunpack.c.l.b16 %v106
    %v443 = vunpack.c.l.b16 %v107
    %v444 = vunpack.c.l.b16 %v108
    %v445 = vunpack.c.l.b16 %v109
    %v446 = vunpack.c.l.b16 %v110
    %v447 = vunpack.c.l.b16 %v111
    %v448 = vunpack.c.l.b16 %v112
    %v449 = vunpack.c.l.b16 %v113
    %v450 = vunpack.c.l.b16 %v114
    %v451 = vunpack.c.l.b16 %v115
    %v452 = vunpack.c.l.b16 %v116
    %v453 = vunpack.c.l.b16 %v117
    %v454 = vunpack.c.l.b16 %v118
    %v455 = vunpack.c.l.b16 %v119
    %v456 = vunpack.c.l.b16 %v120
    %v457 = vunpack.c.l.b16 %v121
    %v458 = vunpack.c.l.b16 %v122
    %v459 = vunpack.c.l.b16 %v123
    %v460 = vunpack.c.l.b16 %v124
    %v461 = vunpack.c.l.b16 %v125
    %v462 = vunpack.c.l.b16 %v126
    %v463 = vunpack.c.l.b16 %v127
    %v464 = vunpack.c.l.b16 %v128
    %v465 = vunpack.c.l.b16 %v129
    %v466 = vunpack.c.l.b16 %v130
    %v467 = vunpack.c.l.b16 %v131
    %v468 = vunpack.c.l.b16 %v132
    %v469 = vunpack.c.l.b16 %v133
    %v470 = vunpack.c.l.b16 %v134
    %v471 = vunpack.c.l.b16 %v135
    %v472 = vunpack.c.l.b16 %v136
    %v473 = vunpack.c.l.b16 %v137
    %v474 = vunpack.c.l.b16 %v138
    %v475 = vunpack.c.l.b16 %v139
    %v476 = vunpack.c.l.b16 %v140
    %v477 = vunpack.c.l.b16 %v141
    %v478 = vunpack.c.l.b16 %v142
    %v479 = vunpack.c.l.b16 %v143
    %v480 = vunpack.c.l.b16 %v144
    %v481 = vunpack.c.l.b16 %v145
    %v482 = vunpack.c.l.b16 %v146
    %v483 = vunpack.c.l.b16 %v147
    %v484 = vunpack.c.l.b16 %v148
    %v485 = vunpack.c.l.b16 %v149
    %v486 = vunpack.c.l.b16 %v150
    %v487 = vunpack.c.l.b16 %v151
    %v488 = vunpack.c.l.b16 %v152
    %v489 = vunpack.c.l.b16 %v153
    %v490 = vunpack.c.l.b16 %v154
    %v491 = vunpack.c.l.b16 %v155
    %v492 = vunpack.c.l.b16 %v156
    %v493 = vunpack.c.l.b16 %v157
    %v494 = vunpack.c.l.b16 %v158
    %v495 = vunpack.c.l.b16 %v159
    %v496 = vunpack.c.l.b16 %v160
    %v497 = vunpack.c.l.b16 %v161
    %v498 = vunpack.c.l.b16 %v162
    %v499 = vunpack.c.l.b16 %v163
    %v500 = vunpack.c.l.b16 %v164
    %v501 = vunpack.c.l.b16 %v165
    %v502 = vunpack.c.l.b16 %v166
    %v503 = vunpack.c.l.b16 %v167
    %v504 = vunpack.c.l.b16 %v168
    %v505 = vunpack.c.l.b16 %v169
    %v506 = vunpack.c.l.b16 %v170
    %v507 = vunpack.c.l.b16 %v171
    %v508 = vunpack.c.l.b16 %v172
    %v509 = vunpack.c.l.b16 %v173
    %v510 = vunpack.c.l.b16 %v174
    %v511 = vunpack.c.l.b16 %v175
    %v512 = vpack.c.b16 %v385, %v384
    %v513 = vpack.c.b16 %v387, %v386
    %v514 = vpack.c.b16 %v389, %v388
    %v515 = vpack.c.b16 %v391, %v390
    %v516 = vpack.c.b16 %v393, %v392
    %v517 = vpack.c.b16 %v395, %v394
    %v518 = vpack.c.b16 %v397, %v396
    %v519 = vpack.c.b16 %v399, %v398
    %v520 = vpack.c.b16 %v401, %v400
    %v521 = vpack.c.b16 %v403, %v402
    %v522 = vpack.c.b16 %v405, %v404
    %v523 = vpack.c.b16 %v407, %v406
    %v524 = vpack.c.b16 %v409, %v408
    %v525 = vpack.c.b16 %v411, %v410
    %v526 = vpack.c.b16 %v413, %v412
    %v527 = vpack.c.b16 %v415, %v414
    %v528 = vpack.c.b16 %v417, %v416
    %v529 = vpack.c.b16 %v419, %v418
    %v530 = vpack.c.b16 %v421, %v420
    %v531 = vpack.c.b16 %v423, %v422
    %v532 = vpack.c.b16 %v425, %v424
    %v533 = vpack.c.b16 %v427, %v426
    %v534 = vpack.c.b16 %v429, %v428
    %v535 = vpack.c.b16 %v431, %v430
    %v536 = vpack.c.b16 %v433, %v432
    %v537 = vpack.c.b16 %v435, %v434
    %v538 = vpack.c.b16 %v437, %v436
    %v539 = vpack.c.b16 %v439, %v438
    %v540 = vpack.c.b16 %v441, %v440
    %v541 = vpack.c.b16 %v443, %v442
    %v542 = vpack.c.b16 %v445, %v444
    %v543 = vpack.c.b16 %v447, %v446
    %v544 = vpack.c.b16 %v449, %v448
    %v545 = vpack.c.b16 %v451, %v450
    %v546 = vpack.c.b16 %v453, %v452
    %v547 = vpack.c.b16 %v455, %v454
    %v548 = vpack.c.b16 %v457, %v456
    %v549 = vpack.c.b16 %v459, %v458
    %v550 = vpack.c.b16 %v461, %v460
    %v551 = vpack.c.b16 %v463, %v462
    %v552 = vpack.c.b16 %v465, %v464
    %v553 = vpack.c.b16 %v467, %v466
    %v554 = vpack.c.b16 %v469, %v468
    %v555 = vpack.c.b16 %v471, %v470
    %v556 = vpack.c.b16 %v473, %v472
    %v557 = vpack.c.b16 %v475, %v474
    %v558 = vpack.c.b16 %v477, %v476
    %v559 = vpack.c.b16 %v479, %v478
    %v560 = vpack.c.b16 %v481, %v480
    %v561 = vpack.c.b16 %v483, %v482
    %v562 = vpack.c.b16 %v485, %v484
    %v563 = vpack.c.b16 %v487, %v486
    %v564 = vpack.c.b16 %v489, %v488
    %v565 = vpack.c.b16 %v491, %v490
    %v566 = vpack.c.b16 %v493, %v492
    %v567 = vpack.c.b16 %v495, %v494
    %v568 = vpack.c.b16 %v497, %v496
    %v569 = vpack.c.b16 %v499, %v498
    %v570 = vpack.c.b16 %v501, %v500
    %v571 = vpack.c.b16 %v503, %v502
    %v572 = vpack.c.b16 %v505, %v504
    %v573 = vpack.c.b16 %v507, %v506
    %v574 = vpack.c.b16 %v509, %v508
    %v575 = vpack.c.b16 %v511, %v510
    %640 = vmatprep.subr.bf16.mxu0 0
    %641 = vmatpush1.bf16.msra.mxu0 %v512
    %642 = vmatprep.subr.bf16.mxu0 0
    %643 = vmatpush1.bf16.msra.mxu0 %v513
    %644 = vmatprep.subr.bf16.mxu0 0
    %645 = vmatpush1.bf16.msra.mxu0 %v514
    %646 = vmatprep.subr.bf16.mxu0 0
    %647 = vmatpush1.bf16.msra.mxu0 %v515
    %648 = vmatprep.subr.bf16.mxu0 0
    %649 = vmatpush1.bf16.msra.mxu0 %v516
    %650 = vmatprep.subr.bf16.mxu0 0
    %651 = vmatpush1.bf16.msra.mxu0 %v517
    %652 = vmatprep.subr.bf16.mxu0 0
    %653 = vmatpush1.bf16.msra.mxu0 %v518
    %654 = vmatprep.subr.bf16.mxu0 0
    %655 = vmatpush1.bf16.msra.mxu0 %v519
    %656 = vmatprep.subr.bf16.mxu0 0
    %657 = vmatpush1.bf16.msra.mxu0 %v520
    %658 = vmatprep.subr.bf16.mxu0 0
    %659 = vmatpush1.bf16.msra.mxu0 %v521
    %660 = vmatprep.subr.bf16.mxu0 0
    %661 = vmatpush1.bf16.msra.mxu0 %v522
    %662 = vmatprep.subr.bf16.mxu0 0
    %663 = vmatpush1.bf16.msra.mxu0 %v523
    %664 = vmatprep.subr.bf16.mxu0 0
    %665 = vmatpush1.bf16.msra.mxu0 %v524
    %666 = vmatprep.subr.bf16.mxu0 0
    %667 = vmatpush1.bf16.msra.mxu0 %v525
    %668 = vmatprep.subr.bf16.mxu0 0
    %669 = vmatpush1.bf16.msra.mxu0 %v526
    %670 = vmatprep.subr.bf16.mxu0 0
    %671 = vmatpush1.bf16.msra.mxu0 %v527
    %672 = vmatprep.mubr.bf16.mxu0 %v225
    %673 = vmatmul.mubr.bf16.gmra.mrb[0].mxu0 %v224
    %v674 = vpop.f32.mrb[0].mxu0
    %v675 = vadd.f32 0.0, %v674
    %v676 = vpop.f32.mrb[0].mxu0
    %v677 = vpop.f32.mrb[0].mxu0
    %v678 = vadd.f32 0.0, %v677
    %v679 = vpop.f32.mrb[0].mxu0
    %680 = vmatprep.mubr.bf16.mxu0 %v233
    %681 = vmatmul.mubr.bf16.gmra.mrb[0].mxu0 %v232
    %v682 = vpop.f32.mrb[0].mxu0
    %v683 = vadd.f32 0.0, %v682
    %v684 = vpop.f32.mrb[0].mxu0
    %v685 = vpop.f32.mrb[0].mxu0
    %v686 = vadd.f32 0.0, %v685
    %v687 = vpop.f32.mrb[0].mxu0
    %688 = vdwg.mxu0
    %689 = vmatprep.subr.bf16.mxu0 0
    %690 = vmatpush1.bf16.msra.mxu0 %v528
    %691 = vmatprep.subr.bf16.mxu0 0
    %692 = vmatpush1.bf16.msra.mxu0 %v529
    %693 = vmatprep.subr.bf16.mxu0 0
    %694 = vmatpush1.bf16.msra.mxu0 %v530
    %695 = vmatprep.subr.bf16.mxu0 0
    %696 = vmatpush1.bf16.msra.mxu0 %v531
    %697 = vmatprep.subr.bf16.mxu0 0
    %698 = vmatpush1.bf16.msra.mxu0 %v532
    %699 = vmatprep.subr.bf16.mxu0 0
    %700 = vmatpush1.bf16.msra.mxu0 %v533
    %701 = vmatprep.subr.bf16.mxu0 0
    %702 = vmatpush1.bf16.msra.mxu0 %v534
    %703 = vmatprep.subr.bf16.mxu0 0
    %704 = vmatpush1.bf16.msra.mxu0 %v535
    %705 = vmatprep.subr.bf16.mxu0 0
    %706 = vmatpush1.bf16.msra.mxu0 %v536
    %707 = vmatprep.subr.bf16.mxu0 0
    %708 = vmatpush1.bf16.msra.mxu0 %v537
    %709 = vmatprep.subr.bf16.mxu0 0
    %710 = vmatpush1.bf16.msra.mxu0 %v538
    %711 = vmatprep.subr.bf16.mxu0 0
    %712 = vmatpush1.bf16.msra.mxu0 %v539
    %713 = vmatprep.subr.bf16.mxu0 0
    %714 = vmatpush1.bf16.msra.mxu0 %v540
    %715 = vmatprep.subr.bf16.mxu0 0
    %716 = vmatpush1.bf16.msra.mxu0 %v541
    %717 = vmatprep.subr.bf16.mxu0 0
    %718 = vmatpush1.bf16.msra.mxu0 %v542
    %719 = vmatprep.subr.bf16.mxu0 0
    %720 = vmatpush1.bf16.msra.mxu0 %v543
    %721 = vmatprep.mubr.bf16.mxu0 %v227
    %722 = vmatmul.mubr.bf16.gmra.mrb[0].mxu0 %v226
    %v723 = vpop.f32.mrb[0].mxu0
    %v724 = vadd.f32 %v675, %v723
    %v725 = vpop.f32.mrb[0].mxu0
    %v726 = vpop.f32.mrb[0].mxu0
    %v727 = vadd.f32 %v678, %v726
    %v728 = vpop.f32.mrb[0].mxu0
    %729 = vmatprep.mubr.bf16.mxu0 %v235
    %730 = vmatmul.mubr.bf16.gmra.mrb[0].mxu0 %v234
    %v731 = vpop.f32.mrb[0].mxu0
    %v732 = vadd.f32 %v683, %v731
    %v733 = vpop.f32.mrb[0].mxu0
    %v734 = vpop.f32.mrb[0].mxu0
    %v735 = vadd.f32 %v686, %v734
    %v736 = vpop.f32.mrb[0].mxu0
    %737 = vdwg.mxu0
    %738 = vmatprep.subr.bf16.mxu0 0
    %739 = vmatpush1.bf16.msra.mxu0 %v544
    %740 = vmatprep.subr.bf16.mxu0 0
    %741 = vmatpush1.bf16.msra.mxu0 %v545
    %742 = vmatprep.subr.bf16.mxu0 0
    %743 = vmatpush1.bf16.msra.mxu0 %v546
    %744 = vmatprep.subr.bf16.mxu0 0
    %745 = vmatpush1.bf16.msra.mxu0 %v547
    %746 = vmatprep.subr.bf16.mxu0 0
    %747 = vmatpush1.bf16.msra.mxu0 %v548
    %748 = vmatprep.subr.bf16.mxu0 0
    %749 = vmatpush1.bf16.msra.mxu0 %v549
    %750 = vmatprep.subr.bf16.mxu0 0
    %751 = vmatpush1.bf16.msra.mxu0 %v550
    %752 = vmatprep.subr.bf16.mxu0 0
    %753 = vmatpush1.bf16.msra.mxu0 %v551
    %754 = vmatprep.subr.bf16.mxu0 0
    %755 = vmatpush1.bf16.msra.mxu0 %v552
    %756 = vmatprep.subr.bf16.mxu0 0
    %757 = vmatpush1.bf16.msra.mxu0 %v553
    %758 = vmatprep.subr.bf16.mxu0 0
    %759 = vmatpush1.bf16.msra.mxu0 %v554
    %760 = vmatprep.subr.bf16.mxu0 0
    %761 = vmatpush1.bf16.msra.mxu0 %v555
    %762 = vmatprep.subr.bf16.mxu0 0
    %763 = vmatpush1.bf16.msra.mxu0 %v556
    %764 = vmatprep.subr.bf16.mxu0 0
    %765 = vmatpush1.bf16.msra.mxu0 %v557
    %766 = vmatprep.subr.bf16.mxu0 0
    %767 = vmatpush1.bf16.msra.mxu0 %v558
    %768 = vmatprep.subr.bf16.mxu0 0
    %769 = vmatpush1.bf16.msra.mxu0 %v559
    %770 = vmatprep.mubr.bf16.mxu0 %v229
    %771 = vmatmul.mubr.bf16.gmra.mrb[0].mxu0 %v228
    %v772 = vpop.f32.mrb[0].mxu0
    %v773 = vadd.f32 %v724, %v772
    %v774 = vpop.f32.mrb[0].mxu0
    %v775 = vpop.f32.mrb[0].mxu0
    %v776 = vadd.f32 %v727, %v775
    %v777 = vpop.f32.mrb[0].mxu0
    %778 = vmatprep.mubr.bf16.mxu0 %v237
    %779 = vmatmul.mubr.bf16.gmra.mrb[0].mxu0 %v236
    %v780 = vpop.f32.mrb[0].mxu0
    %v781 = vadd.f32 %v732, %v780
    %v782 = vpop.f32.mrb[0].mxu0
    %v783 = vpop.f32.mrb[0].mxu0
    %v784 = vadd.f32 %v735, %v783
    %v785 = vpop.f32.mrb[0].mxu0
    %786 = vdwg.mxu0
    %787 = vmatprep.subr.bf16.mxu0 0
    %788 = vmatpush1.bf16.msra.mxu0 %v560
    %789 = vmatprep.subr.bf16.mxu0 0
    %790 = vmatpush1.bf16.msra.mxu0 %v561
    %791 = vmatprep.subr.bf16.mxu0 0
    %792 = vmatpush1.bf16.msra.mxu0 %v562
    %793 = vmatprep.subr.bf16.mxu0 0
    %794 = vmatpush1.bf16.msra.mxu0 %v563
    %795 = vmatprep.subr.bf16.mxu0 0
    %796 = vmatpush1.bf16.msra.mxu0 %v564
    %797 = vmatprep.subr.bf16.mxu0 0
    %798 = vmatpush1.bf16.msra.mxu0 %v565
    %799 = vmatprep.subr.bf16.mxu0 0
    %800 = vmatpush1.bf16.msra.mxu0 %v566
    %801 = vmatprep.subr.bf16.mxu0 0
    %802 = vmatpush1.bf16.msra.mxu0 %v567
    %803 = vmatprep.subr.bf16.mxu0 0
    %804 = vmatpush1.bf16.msra.mxu0 %v568
    %805 = vmatprep.subr.bf16.mxu0 0
    %806 = vmatpush1.bf16.msra.mxu0 %v569
    %807 = vmatprep.subr.bf16.mxu0 0
    %808 = vmatpush1.bf16.msra.mxu0 %v570
    %809 = vmatprep.subr.bf16.mxu0 0
    %810 = vmatpush1.bf16.msra.mxu0 %v571
    %811 = vmatprep.subr.bf16.mxu0 0
    %812 = vmatpush1.bf16.msra.mxu0 %v572
    %813 = vmatprep.subr.bf16.mxu0 0
    %814 = vmatpush1.bf16.msra.mxu0 %v573
    %815 = vmatprep.subr.bf16.mxu0 0
    %816 = vmatpush1.bf16.msra.mxu0 %v574
    %817 = vmatprep.subr.bf16.mxu0 0
    %818 = vmatpush1.bf16.msra.mxu0 %v575
    %819 = vmatprep.mubr.bf16.mxu0 %v231
    %820 = vmatmul.mubr.bf16.gmra.mrb[0].mxu0 %v230
    %v821 = vpop.f32.mrb[0].mxu0
    %v822 = vadd.f32 %v773, %v821
    %v823 = vpop.f32.mrb[0].mxu0
    %v824 = vpop.f32.mrb[0].mxu0
    %v825 = vadd.f32 %v776, %v824
    %v826 = vpop.f32.mrb[0].mxu0
    %827 = vmatprep.mubr.bf16.mxu0 %v239
    %828 = vmatmul.mubr.bf16.gmra.mrb[0].mxu0 %v238
    %v829 = vpop.f32.mrb[0].mxu0
    %v830 = vadd.f32 %v781, %v829
    %v831 = vpop.f32.mrb[0].mxu0
    %v832 = vpop.f32.mrb[0].mxu0
    %v833 = vadd.f32 %v784, %v832
    %v834 = vpop.f32.mrb[0].mxu0
    %835 = vdwg.mxu0
    %v836 = vadd.f32 %v822, %v825
    %v837 = vadd.f32 %v836, %v830
    %v838 = vadd.f32 %v837, %v833
    %v839 = vrot.slane %v838, 4
    %v840 = vadd.f32 %v838, %v839
    %v841 = vrot.slane %v840, 2
    %v842 = vadd.f32 %v840, %v841
    %v843 = vrot.slane %v842, 1
    %v844 = vadd.f32 %v842, %v843
    %v845 = vmul.f32 %v844, 0.03125
    %v846 = vmul.f32 %v822, %v822
    %v847 = vmul.f32 %v825, %v825
    %v848 = vmul.f32 %v830, %v830
    %v849 = vmul.f32 %v833, %v833
    %v850 = vadd.f32 %v846, %v847
    %v851 = vadd.f32 %v850, %v848
    %v852 = vadd.f32 %v851, %v849
    %v853 = vrot.slane %v852, 4
    %v854 = vadd.f32 %v852, %v853
    %v855 = vrot.slane %v854, 2
    %v856 = vadd.f32 %v854, %v855
    %v857 = vrot.slane %v856, 1
    %v858 = vadd.f32 %v856, %v857
    %v859 = vmul.f32 %v858, 0.03125
    %v860 = vmul.f32 %v845, %v845
    %v861 = vsub.f32 %v859, %v860
    %v862 = vmax.f32 %v861, 0.0
    %v863 = vld [vmem:[%s2] sm:$0x1]
    %v864 = vadd.f32 %v862, 1e-05
    %v865 = vrsqrt.pop %v864
    %v866 = vmul.f32 %v863, %v865
    %v867 = vld [vmem:[%s3] sm:$0x1]
    %v868 = vmul.f32 %v845, %v866
    %v869 = vsub.f32 %v867, %v868
    %v871 = vlaneseq
    %v872 = vshrl.u32 %v871, 7
    %v873 = vsub.s32 0, %v872
    %v874 = vrot.slane %v866, %v873
    %v876 = vmul.f32 %v822, %v874
    %v877 = vmul.f32 %v825, %v874
    %v878 = vmul.f32 %v830, %v874
    %v879 = vmul.f32 %v833, %v874
    %v881 = vlaneseq
    %v882 = vshrl.u32 %v881, 7
    %v883 = vsub.s32 0, %v882
    %v884 = vrot.slane %v869, %v883
    %v886 = vadd.f32 %v876, %v884
    %v887 = vadd.f32 %v877, %v884
    %v888 = vadd.f32 %v878, %v884
    %v889 = vadd.f32 %v879, %v884
    %v890 = vmul.f32 %v886, 0.2
    %v891 = vmul.f32 %v887, 0.2
    %v892 = vmul.f32 %v888, 0.2
    %v893 = vmul.f32 %v889, 0.2
    %v894 = vmax.f32 %v886, %v890
    %v895 = vmax.f32 %v887, %v891
    %v896 = vmax.f32 %v888, %v892
    %v897 = vmax.f32 %v889, %v893
    %v898 = vpack.c.bf16 %v895, %v894
    %v899 = vpack.c.bf16 %v897, %v896
    %v902 = vunpack.c.l.b16 %v898
    %v903 = vunpack.c.h.b16 %v898
    %v904 = vunpack.c.l.b16 %v899
    %v905 = vunpack.c.h.b16 %v899
    %v906 = vpack.c.b16 %v902, %v902
    %v907 = vpack.c.b16 %v903, %v903
    %v908 = vpack.c.b16 %v904, %v904
    %v909 = vpack.c.b16 %v905, %v905
    %914 = vst [vmem:[%s4] sm:$0xf] %v906
    %915 = vst [vmem:[%s4 + $0x4] sm:$0xf] %v907
    %916 = vst [vmem:[%s4 + $0x8] sm:$0xf] %v908
    %917 = vst [vmem:[%s4 + $0xc] sm:$0xf] %v909
    // Predicated region
    $region22: #{discriminator_forward.4} parent=1 // pred_check
      _
    $region23: #{discriminator_forward.4} parent=1 // pred_check_branch
      %919 = sbr.rel (0) target = $region25
    $region24: #{discriminator_forward.4} parent=1 // pred_region
      _
    $region25: #{discriminator_forward.4} parent=1 // pred_fallthru
      _
    // Predicated region
    $region26: #{discriminator_forward.4} parent=1 // pred_check
      _
    $region27: #{discriminator_forward.4} parent=1 // pred_check_branch
      %921 = sbr.rel (0) target = $region29
    $region28: #{discriminator_forward.4} parent=1 // pred_region
      _
    $region29: #{discriminator_forward.4} parent=1 // pred_fallthru
      _
    %922 = vsyncpa [#allocation3], 1

// kernel: tile.9
$region0: #{tile.9}
  %s0 = inlined_call_operand.vmem [shape: f32[2,4,256], index: 0, kind: input, shape index: {}]
  %s1 = inlined_call_operand.vmem [shape: f32[8,256], index: 1, kind: output, shape index: {}]
  $region1: #{tile.9} parent=0
    #allocation0 [shape = 'u8[16384]{0}', space=vmem, size = 0x4000, scoped, tag = 'scoped mem for input reshape']
    %s3 = sshllo.u32 0, 4
    %s4 = smul.addr 4, 3
    %s5 = scalar_lea.vmem %s0, %s4
    %v6 = vld [vmem:[%s5] sm:%s3]
    %s7 = scalar_lea.vmem [#allocation0], 24
    %8 = vst [vmem:[%s7] sm:%s3] %v6
    %s9 = smul.addr 4, 2
    %s10 = scalar_lea.vmem %s0, %s9
    %v11 = vld [vmem:[%s10] sm:%s3]
    %s12 = scalar_lea.vmem [#allocation0], 16
    %13 = vst [vmem:[%s12] sm:%s3] %v11
    %s14 = scalar_lea.vmem %s0, 4
    %v15 = vld [vmem:[%s14] sm:%s3]
    %s16 = scalar_lea.vmem [#allocation0], 8
    %17 = vst [vmem:[%s16] sm:%s3] %v15
    %v18 = vld [vmem:[%s0] sm:%s3]
    %19 = vst [vmem:[#allocation0] sm:%s3] %v18
    %v20 = vld [vmem:[#allocation0] sm:$0xf]
    %21 = vst [vmem:[%s1] sm:$0xf] %v20
    %s22 = scalar_lea.vmem [#allocation0], 8
    %v23 = vld [vmem:[%s22] sm:$0xf]
    %s24 = scalar_lea.vmem %s1, 8
    %25 = vst [vmem:[%s24] sm:$0xf] %v23
    %s26 = scalar_lea.vmem [#allocation0], 16
    %v27 = vld [vmem:[%s26] sm:$0xf]
    %s28 = scalar_lea.vmem %s1, 4
    %29 = vst [vmem:[%s28] sm:$0xf] %v27
    %s30 = scalar_lea.vmem [#allocation0], 24
    %v31 = vld [vmem:[%s30] sm:$0xf]
    %s32 = scalar_lea.vmem %s1, 12
    %33 = vst [vmem:[%s32] sm:$0xf] %v31

// kernel: discriminator_forward.5
$region0: #{discriminator_forward.5}
  #allocation0 [shape = 'u32[]', space=smem, size = 0x4, offset = 0x4, fixed_abs, tag = 'smem constant byte address 0x4 - core index']
  #allocation1 [shape = 'u32[144,128]{1,0:T(1,128)}', space=vmem, size = 0x12000, scoped, tag = 'internal scratch']
  #allocation2 [shape = 'f32[1,1]{1,0:T(1,128)S(1)}', space=vmem, size = 0x200, scoped, tag = 'scoped memory for discriminator_forward.5']
  %s0 = inlined_call_operand.vmem [shape: bf16[8,2048], index: 0, kind: input, shape index: {}]
  %s1 = inlined_call_operand.vmem [shape: bf16[2048,256], index: 1, kind: input, shape index: {}]
  %s2 = inlined_call_operand.vmem [shape: f32[1,256], index: 2, kind: input, shape index: {}]
  %s3 = inlined_call_operand.vmem [shape: f32[1,256], index: 3, kind: input, shape index: {}]
  %s4 = inlined_call_operand.vmem [shape: f32[8,256], index: 4, kind: input, shape index: {}]
  %s5 = inlined_call_operand.vmem [shape: f32[2,8], index: 5, kind: input, shape index: {}]
  %s6 = inlined_call_operand.<no memory space> [shape: f32[1,1], index: 6, kind: input, shape index: {}]
  %s7 = inlined_call_operand.vmem [shape: f32[2,1], index: 7, kind: output, shape index: {}]
  %s8 = sld [smem:[#allocation0]]
  $region38: #{discriminator_forward.5} parent=0
    _
  %s10 = ssub.s32 1, %s8
  %s11 = scalar_select 0, %s10, %s8
  %v12 = vstv %s6
  %13 = vst [vmem:[#allocation2] sm:$0x1] %v12
  // Predicated region
  $region2: #{discriminator_forward.5} parent=0 // pred_check
    _
  $region3: #{discriminator_forward.5} parent=0 // pred_check_branch
    %15 = sbr.rel (0) target = $region5
  $region4: #{discriminator_forward.5} parent=0 // pred_region
    _
  $region5: #{discriminator_forward.5} parent=0 // pred_fallthru
    _
  // Predicated region
  $region6: #{discriminator_forward.5} parent=0 // pred_check
    _
  $region7: #{discriminator_forward.5} parent=0 // pred_check_branch
    %17 = sbr.rel (0) target = $region9
  $region8: #{discriminator_forward.5} parent=0 // pred_region
    _
  $region9: #{discriminator_forward.5} parent=0 // pred_fallthru
    _
  // Predicated region
  $region10: #{discriminator_forward.5} parent=0 // pred_check
    _
  $region11: #{discriminator_forward.5} parent=0 // pred_check_branch
    %19 = sbr.rel (0) target = $region13
  $region12: #{discriminator_forward.5} parent=0 // pred_region
    _
  $region13: #{discriminator_forward.5} parent=0 // pred_fallthru
    _
  // Predicated region
  $region14: #{discriminator_forward.5} parent=0 // pred_check
    _
  $region15: #{discriminator_forward.5} parent=0 // pred_check_branch
    %21 = sbr.rel (0) target = $region17
  $region16: #{discriminator_forward.5} parent=0 // pred_region
    _
  $region17: #{discriminator_forward.5} parent=0 // pred_fallthru
    _
  // Predicated region
  $region18: #{discriminator_forward.5} parent=0 // pred_check
    _
  $region19: #{discriminator_forward.5} parent=0 // pred_check_branch
    %23 = sbr.rel (0) target = $region21
  $region20: #{discriminator_forward.5} parent=0 // pred_region
    _
  $region21: #{discriminator_forward.5} parent=0 // pred_fallthru
    _
  // Predicated region
  $region22: #{discriminator_forward.5} parent=0 // pred_check
    _
  $region23: #{discriminator_forward.5} parent=0 // pred_check_branch
    %25 = sbr.rel (0) target = $region25
  $region24: #{discriminator_forward.5} parent=0 // pred_region
    _
  $region25: #{discriminator_forward.5} parent=0 // pred_fallthru
    _
  // Predicated region
  $region26: #{discriminator_forward.5} parent=0 // pred_check
    _
  $region27: #{discriminator_forward.5} parent=0 // pred_check_branch
    %27 = sbr.rel (0) target = $region29
  $region28: #{discriminator_forward.5} parent=0 // pred_region
    _
  $region29: #{discriminator_forward.5} parent=0 // pred_fallthru
    _
  %v28 = vld [vmem:[%s0] sm:$0xff]
  %v29 = vld [vmem:[%s0 + $0x8] sm:$0xff]
  %v30 = vld [vmem:[%s0 + $0x10] sm:$0xff]
  %v31 = vld [vmem:[%s0 + $0x18] sm:$0xff]
  %v32 = vld [vmem:[%s0 + $0x20] sm:$0xff]
  %v33 = vld [vmem:[%s0 + $0x28] sm:$0xff]
  %v34 = vld [vmem:[%s0 + $0x30] sm:$0xff]
  %v35 = vld [vmem:[%s0 + $0x38] sm:$0xff]
  %v36 = vld [vmem:[%s1] sm:$0xff]
  %v37 = vld [vmem:[%s1 + $0x8] sm:$0xff]
  %v38 = vld [vmem:[%s1 + $0x10] sm:$0xff]
  %v39 = vld [vmem:[%s1 + $0x18] sm:$0xff]
  %v40 = vld [vmem:[%s1 + $0x20] sm:$0xff]
  %v41 = vld [vmem:[%s1 + $0x28] sm:$0xff]
  %v42 = vld [vmem:[%s1 + $0x30] sm:$0xff]
  %v43 = vld [vmem:[%s1 + $0x38] sm:$0xff]
  %v44 = vld [vmem:[%s1 + $0x40] sm:$0xff]
  %v45 = vld [vmem:[%s1 + $0x48] sm:$0xff]
  %v46 = vld [vmem:[%s1 + $0x50] sm:$0xff]
  %v47 = vld [vmem:[%s1 + $0x58] sm:$0xff]
  %v48 = vld [vmem:[%s1 + $0x60] sm:$0xff]
  %v49 = vld [vmem:[%s1 + $0x68] sm:$0xff]
  %v50 = vld [vmem:[%s1 + $0x70] sm:$0xff]
  %v51 = vld [vmem:[%s1 + $0x78] sm:$0xff]
  %v52 = vld [vmem:[%s1 + $0x80] sm:$0xff]
  %v53 = vld [vmem:[%s1 + $0x88] sm:$0xff]
  %v54 = vld [vmem:[%s1 + $0x90] sm:$0xff]
  %v55 = vld [vmem:[%s1 + $0x98] sm:$0xff]
  %v56 = vld [vmem:[%s1 + $0xa0] sm:$0xff]
  %v57 = vld [vmem:[%s1 + $0xa8] sm:$0xff]
  %v58 = vld [vmem:[%s1 + $0xb0] sm:$0xff]
  %v59 = vld [vmem:[%s1 + $0xb8] sm:$0xff]
  %v60 = vld [vmem:[%s1 + $0xc0] sm:$0xff]
  %v61 = vld [vmem:[%s1 + $0xc8] sm:$0xff]
  %v62 = vld [vmem:[%s1 + $0xd0] sm:$0xff]
  %v63 = vld [vmem:[%s1 + $0xd8] sm:$0xff]
  %v64 = vld [vmem:[%s1 + $0xe0] sm:$0xff]
  %v65 = vld [vmem:[%s1 + $0xe8] sm:$0xff]
  %v66 = vld [vmem:[%s1 + $0xf0] sm:$0xff]
  %v67 = vld [vmem:[%s1 + $0xf8] sm:$0xff]
  %v68 = vld [vmem:[%s1 + $0x100] sm:$0xff]
  %v69 = vld [vmem:[%s1 + $0x108] sm:$0xff]
  %v70 = vld [vmem:[%s1 + $0x110] sm:$0xff]
  %v71 = vld [vmem:[%s1 + $0x118] sm:$0xff]
  %v72 = vld [vmem:[%s1 + $0x120] sm:$0xff]
  %v73 = vld [vmem:[%s1 + $0x128] sm:$0xff]
  %v74 = vld [vmem:[%s1 + $0x130] sm:$0xff]
  %v75 = vld [vmem:[%s1 + $0x138] sm:$0xff]
  %v76 = vld [vmem:[%s1 + $0x140] sm:$0xff]
  %v77 = vld [vmem:[%s1 + $0x148] sm:$0xff]
  %v78 = vld [vmem:[%s1 + $0x150] sm:$0xff]
  %v79 = vld [vmem:[%s1 + $0x158] sm:$0xff]
  %v80 = vld [vmem:[%s1 + $0x160] sm:$0xff]
  %v81 = vld [vmem:[%s1 + $0x168] sm:$0xff]
  %v82 = vld [vmem:[%s1 + $0x170] sm:$0xff]
  %v83 = vld [vmem:[%s1 + $0x178] sm:$0xff]
  %v84 = vld [vmem:[%s1 + $0x180] sm:$0xff]
  %v85 = vld [vmem:[%s1 + $0x188] sm:$0xff]
  %v86 = vld [vmem:[%s1 + $0x190] sm:$0xff]
  %v87 = vld [vmem:[%s1 + $0x198] sm:$0xff]
  %v88 = vld [vmem:[%s1 + $0x1a0] sm:$0xff]
  %v89 = vld [vmem:[%s1 + $0x1a8] sm:$0xff]
  %v90 = vld [vmem:[%s1 + $0x1b0] sm:$0xff]
  %v91 = vld [vmem:[%s1 + $0x1b8] sm:$0xff]
  %v92 = vld [vmem:[%s1 + $0x1c0] sm:$0xff]
  %v93 = vld [vmem:[%s1 + $0x1c8] sm:$0xff]
  %v94 = vld [vmem:[%s1 + $0x1d0] sm:$0xff]
  %v95 = vld [vmem:[%s1 + $0x1d8] sm:$0xff]
  %v96 = vld [vmem:[%s1 + $0x1e0] sm:$0xff]
  %v97 = vld [vmem:[%s1 + $0x1e8] sm:$0xff]
  %v98 = vld [vmem:[%s1 + $0x1f0] sm:$0xff]
  %v99 = vld [vmem:[%s1 + $0x1f8] sm:$0xff]
  %v100 = vld [vmem:[%s1 + $0x200] sm:$0xff]
  %v101 = vld [vmem:[%s1 + $0x208] sm:$0xff]
  %v102 = vld [vmem:[%s1 + $0x210] sm:$0xff]
  %v103 = vld [vmem:[%s1 + $0x218] sm:$0xff]
  %v104 = vld [vmem:[%s1 + $0x220] sm:$0xff]
  %v105 = vld [vmem:[%s1 + $0x228] sm:$0xff]
  %v106 = vld [vmem:[%s1 + $0x230] sm:$0xff]
  %v107 = vld [vmem:[%s1 + $0x238] sm:$0xff]
  %v108 = vld [vmem:[%s1 + $0x240] sm:$0xff]
  %v109 = vld [vmem:[%s1 + $0x248] sm:$0xff]
  %v110 = vld [vmem:[%s1 + $0x250] sm:$0xff]
  %v111 = vld [vmem:[%s1 + $0x258] sm:$0xff]
  %v112 = vld [vmem:[%s1 + $0x260] sm:$0xff]
  %v113 = vld [vmem:[%s1 + $0x268] sm:$0xff]
  %v114 = vld [vmem:[%s1 + $0x270] sm:$0xff]
  %v115 = vld [vmem:[%s1 + $0x278] sm:$0xff]
  %v116 = vld [vmem:[%s1 + $0x280] sm:$0xff]
  %v117 = vld [vmem:[%s1 + $0x288] sm:$0xff]
  %v118 = vld [vmem:[%s1 + $0x290] sm:$0xff]
  %v119 = vld [vmem:[%s1 + $0x298] sm:$0xff]
  %v120 = vld [vmem:[%s1 + $0x2a0] sm:$0xff]
  %v121 = vld [vmem:[%s1 + $0x2a8] sm:$0xff]
  %v122 = vld [vmem:[%s1 + $0x2b0] sm:$0xff]
  %v123 = vld [vmem:[%s1 + $0x2b8] sm:$0xff]
  %v124 = vld [vmem:[%s1 + $0x2c0] sm:$0xff]
  %v125 = vld [vmem:[%s1 + $0x2c8] sm:$0xff]
  %v126 = vld [vmem:[%s1 + $0x2d0] sm:$0xff]
  %v127 = vld [vmem:[%s1 + $0x2d8] sm:$0xff]
  %v128 = vld [vmem:[%s1 + $0x2e0] sm:$0xff]
  %v129 = vld [vmem:[%s1 + $0x2e8] sm:$0xff]
  %v130 = vld [vmem:[%s1 + $0x2f0] sm:$0xff]
  %v131 = vld [vmem:[%s1 + $0x2f8] sm:$0xff]
  %v132 = vld [vmem:[%s1 + $0x300] sm:$0xff]
  %v133 = vld [vmem:[%s1 + $0x308] sm:$0xff]
  %v134 = vld [vmem:[%s1 + $0x310] sm:$0xff]
  %v135 = vld [vmem:[%s1 + $0x318] sm:$0xff]
  %v136 = vld [vmem:[%s1 + $0x320] sm:$0xff]
  %v137 = vld [vmem:[%s1 + $0x328] sm:$0xff]
  %v138 = vld [vmem:[%s1 + $0x330] sm:$0xff]
  %v139 = vld [vmem:[%s1 + $0x338] sm:$0xff]
  %v140 = vld [vmem:[%s1 + $0x340] sm:$0xff]
  %v141 = vld [vmem:[%s1 + $0x348] sm:$0xff]
  %v142 = vld [vmem:[%s1 + $0x350] sm:$0xff]
  %v143 = vld [vmem:[%s1 + $0x358] sm:$0xff]
  %v144 = vld [vmem:[%s1 + $0x360] sm:$0xff]
  %v145 = vld [vmem:[%s1 + $0x368] sm:$0xff]
  %v146 = vld [vmem:[%s1 + $0x370] sm:$0xff]
  %v147 = vld [vmem:[%s1 + $0x378] sm:$0xff]
  %v148 = vld [vmem:[%s1 + $0x380] sm:$0xff]
  %v149 = vld [vmem:[%s1 + $0x388] sm:$0xff]
  %v150 = vld [vmem:[%s1 + $0x390] sm:$0xff]
  %v151 = vld [vmem:[%s1 + $0x398] sm:$0xff]
  %v152 = vld [vmem:[%s1 + $0x3a0] sm:$0xff]
  %v153 = vld [vmem:[%s1 + $0x3a8] sm:$0xff]
  %v154 = vld [vmem:[%s1 + $0x3b0] sm:$0xff]
  %v155 = vld [vmem:[%s1 + $0x3b8] sm:$0xff]
  %v156 = vld [vmem:[%s1 + $0x3c0] sm:$0xff]
  %v157 = vld [vmem:[%s1 + $0x3c8] sm:$0xff]
  %v158 = vld [vmem:[%s1 + $0x3d0] sm:$0xff]
  %v159 = vld [vmem:[%s1 + $0x3d8] sm:$0xff]
  %v160 = vld [vmem:[%s1 + $0x3e0] sm:$0xff]
  %v161 = vld [vmem:[%s1 + $0x3e8] sm:$0xff]
  %v162 = vld [vmem:[%s1 + $0x3f0] sm:$0xff]
  %v163 = vld [vmem:[%s1 + $0x3f8] sm:$0xff]
  %v164 = vld [vmem:[%s1 + $0x400] sm:$0xff]
  %v165 = vld [vmem:[%s1 + $0x408] sm:$0xff]
  %v166 = vld [vmem:[%s1 + $0x410] sm:$0xff]
  %v167 = vld [vmem:[%s1 + $0x418] sm:$0xff]
  %v168 = vld [vmem:[%s1 + $0x420] sm:$0xff]
  %v169 = vld [vmem:[%s1 + $0x428] sm:$0xff]
  %v170 = vld [vmem:[%s1 + $0x430] sm:$0xff]
  %v171 = vld [vmem:[%s1 + $0x438] sm:$0xff]
  %v172 = vld [vmem:[%s1 + $0x440] sm:$0xff]
  %v173 = vld [vmem:[%s1 + $0x448] sm:$0xff]
  %v174 = vld [vmem:[%s1 + $0x450] sm:$0xff]
  %v175 = vld [vmem:[%s1 + $0x458] sm:$0xff]
  %v176 = vld [vmem:[%s1 + $0x460] sm:$0xff]
  %v177 = vld [vmem:[%s1 + $0x468] sm:$0xff]
  %v178 = vld [vmem:[%s1 + $0x470] sm:$0xff]
  %v179 = vld [vmem:[%s1 + $0x478] sm:$0xff]
  %v180 = vld [vmem:[%s1 + $0x480] sm:$0xff]
  %v181 = vld [vmem:[%s1 + $0x488] sm:$0xff]
  %v182 = vld [vmem:[%s1 + $0x490] sm:$0xff]
  %v183 = vld [vmem:[%s1 + $0x498] sm:$0xff]
  %v184 = vld [vmem:[%s1 + $0x4a0] sm:$0xff]
  %v185 = vld [vmem:[%s1 + $0x4a8] sm:$0xff]
  %v186 = vld [vmem:[%s1 + $0x4b0] sm:$0xff]
  %v187 = vld [vmem:[%s1 + $0x4b8] sm:$0xff]
  %v188 = vld [vmem:[%s1 + $0x4c0] sm:$0xff]
  %v189 = vld [vmem:[%s1 + $0x4c8] sm:$0xff]
  %v190 = vld [vmem:[%s1 + $0x4d0] sm:$0xff]
  %v191 = vld [vmem:[%s1 + $0x4d8] sm:$0xff]
  %v192 = vld [vmem:[%s1 + $0x4e0] sm:$0xff]
  %v193 = vld [vmem:[%s1 + $0x4e8] sm:$0xff]
  %v194 = vld [vmem:[%s1 + $0x4f0] sm:$0xff]
  %v195 = vld [vmem:[%s1 + $0x4f8] sm:$0xff]
  %v196 = vld [vmem:[%s1 + $0x500] sm:$0xff]
  %v197 = vld [vmem:[%s1 + $0x508] sm:$0xff]
  %v198 = vld [vmem:[%s1 + $0x510] sm:$0xff]
  %v199 = vld [vmem:[%s1 + $0x518] sm:$0xff]
  %v200 = vld [vmem:[%s1 + $0x520] sm:$0xff]
  %v201 = vld [vmem:[%s1 + $0x528] sm:$0xff]
  %v202 = vld [vmem:[%s1 + $0x530] sm:$0xff]
  %v203 = vld [vmem:[%s1 + $0x538] sm:$0xff]
  %v204 = vld [vmem:[%s1 + $0x540] sm:$0xff]
  %v205 = vld [vmem:[%s1 + $0x548] sm:$0xff]
  %v206 = vld [vmem:[%s1 + $0x550] sm:$0xff]
  %v207 = vld [vmem:[%s1 + $0x558] sm:$0xff]
  %v208 = vld [vmem:[%s1 + $0x560] sm:$0xff]
  %v209 = vld [vmem:[%s1 + $0x568] sm:$0xff]
  %v210 = vld [vmem:[%s1 + $0x570] sm:$0xff]
  %v211 = vld [vmem:[%s1 + $0x578] sm:$0xff]
  %v212 = vld [vmem:[%s1 + $0x580] sm:$0xff]
  %v213 = vld [vmem:[%s1 + $0x588] sm:$0xff]
  %v214 = vld [vmem:[%s1 + $0x590] sm:$0xff]
  %v215 = vld [vmem:[%s1 + $0x598] sm:$0xff]
  %v216 = vld [vmem:[%s1 + $0x5a0] sm:$0xff]
  %v217 = vld [vmem:[%s1 + $0x5a8] sm:$0xff]
  %v218 = vld [vmem:[%s1 + $0x5b0] sm:$0xff]
  %v219 = vld [vmem:[%s1 + $0x5b8] sm:$0xff]
  %v220 = vld [vmem:[%s1 + $0x5c0] sm:$0xff]
  %v221 = vld [vmem:[%s1 + $0x5c8] sm:$0xff]
  %v222 = vld [vmem:[%s1 + $0x5d0] sm:$0xff]
  %v223 = vld [vmem:[%s1 + $0x5d8] sm:$0xff]
  %v224 = vld [vmem:[%s1 + $0x5e0] sm:$0xff]
  %v225 = vld [vmem:[%s1 + $0x5e8] sm:$0xff]
  %v226 = vld [vmem:[%s1 + $0x5f0] sm:$0xff]
  %v227 = vld [vmem:[%s1 + $0x5f8] sm:$0xff]
  %v228 = vld [vmem:[%s1 + $0x600] sm:$0xff]
  %v229 = vld [vmem:[%s1 + $0x608] sm:$0xff]
  %v230 = vld [vmem:[%s1 + $0x610] sm:$0xff]
  %v231 = vld [vmem:[%s1 + $0x618] sm:$0xff]
  %v232 = vld [vmem:[%s1 + $0x620] sm:$0xff]
  %v233 = vld [vmem:[%s1 + $0x628] sm:$0xff]
  %v234 = vld [vmem:[%s1 + $0x630] sm:$0xff]
  %v235 = vld [vmem:[%s1 + $0x638] sm:$0xff]
  %v236 = vld [vmem:[%s1 + $0x640] sm:$0xff]
  %v237 = vld [vmem:[%s1 + $0x648] sm:$0xff]
  %v238 = vld [vmem:[%s1 + $0x650] sm:$0xff]
  %v239 = vld [vmem:[%s1 + $0x658] sm:$0xff]
  %v240 = vld [vmem:[%s1 + $0x660] sm:$0xff]
  %v241 = vld [vmem:[%s1 + $0x668] sm:$0xff]
  %v242 = vld [vmem:[%s1 + $0x670] sm:$0xff]
  %v243 = vld [vmem:[%s1 + $0x678] sm:$0xff]
  %v244 = vld [vmem:[%s1 + $0x680] sm:$0xff]
  %v245 = vld [vmem:[%s1 + $0x688] sm:$0xff]
  %v246 = vld [vmem:[%s1 + $0x690] sm:$0xff]
  %v247 = vld [vmem:[%s1 + $0x698] sm:$0xff]
  %v248 = vld [vmem:[%s1 + $0x6a0] sm:$0xff]
  %v249 = vld [vmem:[%s1 + $0x6a8] sm:$0xff]
  %v250 = vld [vmem:[%s1 + $0x6b0] sm:$0xff]
  %v251 = vld [vmem:[%s1 + $0x6b8] sm:$0xff]
  %v252 = vld [vmem:[%s1 + $0x6c0] sm:$0xff]
  %v253 = vld [vmem:[%s1 + $0x6c8] sm:$0xff]
  %v254 = vld [vmem:[%s1 + $0x6d0] sm:$0xff]
  %v255 = vld [vmem:[%s1 + $0x6d8] sm:$0xff]
  %v256 = vld [vmem:[%s1 + $0x6e0] sm:$0xff]
  %v257 = vld [vmem:[%s1 + $0x6e8] sm:$0xff]
  %v258 = vld [vmem:[%s1 + $0x6f0] sm:$0xff]
  %v259 = vld [vmem:[%s1 + $0x6f8] sm:$0xff]
  %v260 = vld [vmem:[%s1 + $0x700] sm:$0xff]
  %v261 = vld [vmem:[%s1 + $0x708] sm:$0xff]
  %v262 = vld [vmem:[%s1 + $0x710] sm:$0xff]
  %v263 = vld [vmem:[%s1 + $0x718] sm:$0xff]
  %v264 = vld [vmem:[%s1 + $0x720] sm:$0xff]
  %v265 = vld [vmem:[%s1 + $0x728] sm:$0xff]
  %v266 = vld [vmem:[%s1 + $0x730] sm:$0xff]
  %v267 = vld [vmem:[%s1 + $0x738] sm:$0xff]
  %v268 = vld [vmem:[%s1 + $0x740] sm:$0xff]
  %v269 = vld [vmem:[%s1 + $0x748] sm:$0xff]
  %v270 = vld [vmem:[%s1 + $0x750] sm:$0xff]
  %v271 = vld [vmem:[%s1 + $0x758] sm:$0xff]
  %v272 = vld [vmem:[%s1 + $0x760] sm:$0xff]
  %v273 = vld [vmem:[%s1 + $0x768] sm:$0xff]
  %v274 = vld [vmem:[%s1 + $0x770] sm:$0xff]
  %v275 = vld [vmem:[%s1 + $0x778] sm:$0xff]
  %v276 = vld [vmem:[%s1 + $0x780] sm:$0xff]
  %v277 = vld [vmem:[%s1 + $0x788] sm:$0xff]
  %v278 = vld [vmem:[%s1 + $0x790] sm:$0xff]
  %v279 = vld [vmem:[%s1 + $0x798] sm:$0xff]
  %v280 = vld [vmem:[%s1 + $0x7a0] sm:$0xff]
  %v281 = vld [vmem:[%s1 + $0x7a8] sm:$0xff]
  %v282 = vld [vmem:[%s1 + $0x7b0] sm:$0xff]
  %v283 = vld [vmem:[%s1 + $0x7b8] sm:$0xff]
  %v284 = vld [vmem:[%s1 + $0x7c0] sm:$0xff]
  %v285 = vld [vmem:[%s1 + $0x7c8] sm:$0xff]
  %v286 = vld [vmem:[%s1 + $0x7d0] sm:$0xff]
  %v287 = vld [vmem:[%s1 + $0x7d8] sm:$0xff]
  %v288 = vld [vmem:[%s1 + $0x7e0] sm:$0xff]
  %v289 = vld [vmem:[%s1 + $0x7e8] sm:$0xff]
  %v290 = vld [vmem:[%s1 + $0x7f0] sm:$0xff]
  %v291 = vld [vmem:[%s1 + $0x7f8] sm:$0xff]
  %v300 = vunpack.c.l.b16 %v28
  %v301 = vunpack.c.h.b16 %v28
  %v302 = vunpack.c.l.b16 %v29
  %v303 = vunpack.c.h.b16 %v29
  %v304 = vunpack.c.l.b16 %v30
  %v305 = vunpack.c.h.b16 %v30
  %v306 = vunpack.c.l.b16 %v31
  %v307 = vunpack.c.h.b16 %v31
  %v308 = vunpack.c.l.b16 %v32
  %v309 = vunpack.c.h.b16 %v32
  %v310 = vunpack.c.l.b16 %v33
  %v311 = vunpack.c.h.b16 %v33
  %v312 = vunpack.c.l.b16 %v34
  %v313 = vunpack.c.h.b16 %v34
  %v314 = vunpack.c.l.b16 %v35
  %v315 = vunpack.c.h.b16 %v35
  %v316 = vpack.c.b16 %v300, %v300
  %v317 = vpack.c.b16 %v301, %v301
  %v318 = vpack.c.b16 %v302, %v302
  %v319 = vpack.c.b16 %v303, %v303
  %v320 = vpack.c.b16 %v304, %v304
  %v321 = vpack.c.b16 %v305, %v305
  %v322 = vpack.c.b16 %v306, %v306
  %v323 = vpack.c.b16 %v307, %v307
  %v324 = vpack.c.b16 %v308, %v308
  %v325 = vpack.c.b16 %v309, %v309
  %v326 = vpack.c.b16 %v310, %v310
  %v327 = vpack.c.b16 %v311, %v311
  %v328 = vpack.c.b16 %v312, %v312
  %v329 = vpack.c.b16 %v313, %v313
  %v330 = vpack.c.b16 %v314, %v314
  %v331 = vpack.c.b16 %v315, %v315
  %v604 = vunpack.c.l.b16 %v36
  %v605 = vunpack.c.h.b16 %v36
  %v606 = vunpack.c.l.b16 %v37
  %v607 = vunpack.c.h.b16 %v37
  %v608 = vunpack.c.l.b16 %v38
  %v609 = vunpack.c.h.b16 %v38
  %v610 = vunpack.c.l.b16 %v39
  %v611 = vunpack.c.h.b16 %v39
  %v612 = vunpack.c.l.b16 %v40
  %v613 = vunpack.c.h.b16 %v40
  %v614 = vunpack.c.l.b16 %v41
  %v615 = vunpack.c.h.b16 %v41
  %v616 = vunpack.c.l.b16 %v42
  %v617 = vunpack.c.h.b16 %v42
  %v618 = vunpack.c.l.b16 %v43
  %v619 = vunpack.c.h.b16 %v43
  %v620 = vunpack.c.l.b16 %v44
  %v621 = vunpack.c.h.b16 %v44
  %v622 = vunpack.c.l.b16 %v45
  %v623 = vunpack.c.h.b16 %v45
  %v624 = vunpack.c.l.b16 %v46
  %v625 = vunpack.c.h.b16 %v46
  %v626 = vunpack.c.l.b16 %v47
  %v627 = vunpack.c.h.b16 %v47
  %v628 = vunpack.c.l.b16 %v48
  %v629 = vunpack.c.h.b16 %v48
  %v630 = vunpack.c.l.b16 %v49
  %v631 = vunpack.c.h.b16 %v49
  %v632 = vunpack.c.l.b16 %v50
  %v633 = vunpack.c.h.b16 %v50
  %v634 = vunpack.c.l.b16 %v51
  %v635 = vunpack.c.h.b16 %v51
  %v636 = vunpack.c.l.b16 %v52
  %v637 = vunpack.c.h.b16 %v52
  %v638 = vunpack.c.l.b16 %v53
  %v639 = vunpack.c.h.b16 %v53
  %v640 = vunpack.c.l.b16 %v54
  %v641 = vunpack.c.h.b16 %v54
  %v642 = vunpack.c.l.b16 %v55
  %v643 = vunpack.c.h.b16 %v55
  %v644 = vunpack.c.l.b16 %v56
  %v645 = vunpack.c.h.b16 %v56
  %v646 = vunpack.c.l.b16 %v57
  %v647 = vunpack.c.h.b16 %v57
  %v648 = vunpack.c.l.b16 %v58
  %v649 = vunpack.c.h.b16 %v58
  %v650 = vunpack.c.l.b16 %v59
  %v651 = vunpack.c.h.b16 %v59
  %v652 = vunpack.c.l.b16 %v60
  %v653 = vunpack.c.h.b16 %v60
  %v654 = vunpack.c.l.b16 %v61
  %v655 = vunpack.c.h.b16 %v61
  %v656 = vunpack.c.l.b16 %v62
  %v657 = vunpack.c.h.b16 %v62
  %v658 = vunpack.c.l.b16 %v63
  %v659 = vunpack.c.h.b16 %v63
  %v660 = vunpack.c.l.b16 %v64
  %v661 = vunpack.c.h.b16 %v64
  %v662 = vunpack.c.l.b16 %v65
  %v663 = vunpack.c.h.b16 %v65
  %v664 = vunpack.c.l.b16 %v66
  %v665 = vunpack.c.h.b16 %v66
  %v666 = vunpack.c.l.b16 %v67
  %v667 = vunpack.c.h.b16 %v67
  %v668 = vunpack.c.l.b16 %v68
  %v669 = vunpack.c.h.b16 %v68
  %v670 = vunpack.c.l.b16 %v69
  %v671 = vunpack.c.h.b16 %v69
  %v672 = vunpack.c.l.b16 %v70
  %v673 = vunpack.c.h.b16 %v70
  %v674 = vunpack.c.l.b16 %v71
  %v675 = vunpack.c.h.b16 %v71
  %v676 = vunpack.c.l.b16 %v72
  %v677 = vunpack.c.h.b16 %v72
  %v678 = vunpack.c.l.b16 %v73
  %v679 = vunpack.c.h.b16 %v73
  %v680 = vunpack.c.l.b16 %v74
  %v681 = vunpack.c.h.b16 %v74
  %v682 = vunpack.c.l.b16 %v75
  %v683 = vunpack.c.h.b16 %v75
  %v684 = vunpack.c.l.b16 %v76
  %v685 = vunpack.c.h.b16 %v76
  %v686 = vunpack.c.l.b16 %v77
  %v687 = vunpack.c.h.b16 %v77
  %v688 = vunpack.c.l.b16 %v78
  %v689 = vunpack.c.h.b16 %v78
  %v690 = vunpack.c.l.b16 %v79
  %v691 = vunpack.c.h.b16 %v79
  %v692 = vunpack.c.l.b16 %v80
  %v693 = vunpack.c.h.b16 %v80
  %v694 = vunpack.c.l.b16 %v81
  %v695 = vunpack.c.h.b16 %v81
  %v696 = vunpack.c.l.b16 %v82
  %v697 = vunpack.c.h.b16 %v82
  %v698 = vunpack.c.l.b16 %v83
  %v699 = vunpack.c.h.b16 %v83
  %v700 = vunpack.c.l.b16 %v84
  %v701 = vunpack.c.h.b16 %v84
  %v702 = vunpack.c.l.b16 %v85
  %v703 = vunpack.c.h.b16 %v85
  %v704 = vunpack.c.l.b16 %v86
  %v705 = vunpack.c.h.b16 %v86
  %v706 = vunpack.c.l.b16 %v87
  %v707 = vunpack.c.h.b16 %v87
  %v708 = vunpack.c.l.b16 %v88
  %v709 = vunpack.c.h.b16 %v88
  %v710 = vunpack.c.l.b16 %v89
  %v711 = vunpack.c.h.b16 %v89
  %v712 = vunpack.c.l.b16 %v90
  %v713 = vunpack.c.h.b16 %v90
  %v714 = vunpack.c.l.b16 %v91
  %v715 = vunpack.c.h.b16 %v91
  %v716 = vunpack.c.l.b16 %v92
  %v717 = vunpack.c.h.b16 %v92
  %v718 = vunpack.c.l.b16 %v93
  %v719 = vunpack.c.h.b16 %v93
  %v720 = vunpack.c.l.b16 %v94
  %v721 = vunpack.c.h.b16 %v94
  %v722 = vunpack.c.l.b16 %v95
  %v723 = vunpack.c.h.b16 %v95
  %v724 = vunpack.c.l.b16 %v96
  %v725 = vunpack.c.h.b16 %v96
  %v726 = vunpack.c.l.b16 %v97
  %v727 = vunpack.c.h.b16 %v97
  %v728 = vunpack.c.l.b16 %v98
  %v729 = vunpack.c.h.b16 %v98
  %v730 = vunpack.c.l.b16 %v99
  %v731 = vunpack.c.h.b16 %v99
  %v732 = vunpack.c.l.b16 %v100
  %v733 = vunpack.c.h.b16 %v100
  %v734 = vunpack.c.l.b16 %v101
  %v735 = vunpack.c.h.b16 %v101
  %v736 = vunpack.c.l.b16 %v102
  %v737 = vunpack.c.h.b16 %v102
  %v738 = vunpack.c.l.b16 %v103
  %v739 = vunpack.c.h.b16 %v103
  %v740 = vunpack.c.l.b16 %v104
  %v741 = vunpack.c.h.b16 %v104
  %v742 = vunpack.c.l.b16 %v105
  %v743 = vunpack.c.h.b16 %v105
  %v744 = vunpack.c.l.b16 %v106
  %v745 = vunpack.c.h.b16 %v106
  %v746 = vunpack.c.l.b16 %v107
  %v747 = vunpack.c.h.b16 %v107
  %v748 = vunpack.c.l.b16 %v108
  %v749 = vunpack.c.h.b16 %v108
  %v750 = vunpack.c.l.b16 %v109
  %v751 = vunpack.c.h.b16 %v109
  %v752 = vunpack.c.l.b16 %v110
  %v753 = vunpack.c.h.b16 %v110
  %v754 = vunpack.c.l.b16 %v111
  %v755 = vunpack.c.h.b16 %v111
  %v756 = vunpack.c.l.b16 %v112
  %v757 = vunpack.c.h.b16 %v112
  %v758 = vunpack.c.l.b16 %v113
  %v759 = vunpack.c.h.b16 %v113
  %v760 = vunpack.c.l.b16 %v114
  %v761 = vunpack.c.h.b16 %v114
  %v762 = vunpack.c.l.b16 %v115
  %v763 = vunpack.c.h.b16 %v115
  %v764 = vunpack.c.l.b16 %v116
  %v765 = vunpack.c.h.b16 %v116
  %v766 = vunpack.c.l.b16 %v117
  %v767 = vunpack.c.h.b16 %v117
  %v768 = vunpack.c.l.b16 %v118
  %v769 = vunpack.c.h.b16 %v118
  %v770 = vunpack.c.l.b16 %v119
  %v771 = vunpack.c.h.b16 %v119
  %v772 = vunpack.c.l.b16 %v120
  %v773 = vunpack.c.h.b16 %v120
  %v774 = vunpack.c.l.b16 %v121
  %v775 = vunpack.c.h.b16 %v121
  %v776 = vunpack.c.l.b16 %v122
  %v777 = vunpack.c.h.b16 %v122
  %v778 = vunpack.c.l.b16 %v123
  %v779 = vunpack.c.h.b16 %v123
  %v780 = vunpack.c.l.b16 %v124
  %v781 = vunpack.c.h.b16 %v124
  %v782 = vunpack.c.l.b16 %v125
  %v783 = vunpack.c.h.b16 %v125
  %v784 = vunpack.c.l.b16 %v126
  %v785 = vunpack.c.h.b16 %v126
  %v786 = vunpack.c.l.b16 %v127
  %v787 = vunpack.c.h.b16 %v127
  %v788 = vunpack.c.l.b16 %v128
  %v789 = vunpack.c.h.b16 %v128
  %v790 = vunpack.c.l.b16 %v129
  %v791 = vunpack.c.h.b16 %v129
  %v792 = vunpack.c.l.b16 %v130
  %v793 = vunpack.c.h.b16 %v130
  %v794 = vunpack.c.l.b16 %v131
  %v795 = vunpack.c.h.b16 %v131
  %v796 = vunpack.c.l.b16 %v132
  %v797 = vunpack.c.h.b16 %v132
  %v798 = vunpack.c.l.b16 %v133
  %v799 = vunpack.c.h.b16 %v133
  %v800 = vunpack.c.l.b16 %v134
  %v801 = vunpack.c.h.b16 %v134
  %v802 = vunpack.c.l.b16 %v135
  %v803 = vunpack.c.h.b16 %v135
  %v804 = vunpack.c.l.b16 %v136
  %v805 = vunpack.c.h.b16 %v136
  %v806 = vunpack.c.l.b16 %v137
  %v807 = vunpack.c.h.b16 %v137
  %v808 = vunpack.c.l.b16 %v138
  %v809 = vunpack.c.h.b16 %v138
  %v810 = vunpack.c.l.b16 %v139
  %v811 = vunpack.c.h.b16 %v139
  %v812 = vunpack.c.l.b16 %v140
  %v813 = vunpack.c.h.b16 %v140
  %v814 = vunpack.c.l.b16 %v141
  %v815 = vunpack.c.h.b16 %v141
  %v816 = vunpack.c.l.b16 %v142
  %v817 = vunpack.c.h.b16 %v142
  %v818 = vunpack.c.l.b16 %v143
  %v819 = vunpack.c.h.b16 %v143
  %v820 = vunpack.c.l.b16 %v144
  %v821 = vunpack.c.h.b16 %v144
  %v822 = vunpack.c.l.b16 %v145
  %v823 = vunpack.c.h.b16 %v145
  %v824 = vunpack.c.l.b16 %v146
  %v825 = vunpack.c.h.b16 %v146
  %v826 = vunpack.c.l.b16 %v147
  %v827 = vunpack.c.h.b16 %v147
  %v828 = vunpack.c.l.b16 %v148
  %v829 = vunpack.c.h.b16 %v148
  %v830 = vunpack.c.l.b16 %v149
  %v831 = vunpack.c.h.b16 %v149
  %v832 = vunpack.c.l.b16 %v150
  %v833 = vunpack.c.h.b16 %v150
  %v834 = vunpack.c.l.b16 %v151
  %v835 = vunpack.c.h.b16 %v151
  %v836 = vunpack.c.l.b16 %v152
  %v837 = vunpack.c.h.b16 %v152
  %v838 = vunpack.c.l.b16 %v153
  %v839 = vunpack.c.h.b16 %v153
  %v840 = vunpack.c.l.b16 %v154
  %v841 = vunpack.c.h.b16 %v154
  %v842 = vunpack.c.l.b16 %v155
  %v843 = vunpack.c.h.b16 %v155
  %v844 = vunpack.c.l.b16 %v156
  %v845 = vunpack.c.h.b16 %v156
  %v846 = vunpack.c.l.b16 %v157
  %v847 = vunpack.c.h.b16 %v157
  %v848 = vunpack.c.l.b16 %v158
  %v849 = vunpack.c.h.b16 %v158
  %v850 = vunpack.c.l.b16 %v159
  %v851 = vunpack.c.h.b16 %v159
  %v852 = vunpack.c.l.b16 %v160
  %v853 = vunpack.c.h.b16 %v160
  %v854 = vunpack.c.l.b16 %v161
  %v855 = vunpack.c.h.b16 %v161
  %v856 = vunpack.c.l.b16 %v162
  %v857 = vunpack.c.h.b16 %v162
  %v858 = vunpack.c.l.b16 %v163
  %v859 = vunpack.c.h.b16 %v163
  %v860 = vunpack.c.l.b16 %v164
  %v861 = vunpack.c.h.b16 %v164
  %v862 = vunpack.c.l.b16 %v165
  %v863 = vunpack.c.h.b16 %v165
  %v864 = vunpack.c.l.b16 %v166
  %v865 = vunpack.c.h.b16 %v166
  %v866 = vunpack.c.l.b16 %v167
  %v867 = vunpack.c.h.b16 %v167
  %v868 = vunpack.c.l.b16 %v168
  %v869 = vunpack.c.h.b16 %v168
  %v870 = vunpack.c.l.b16 %v169
  %v871 = vunpack.c.h.b16 %v169
  %v872 = vunpack.c.l.b16 %v170
  %v873 = vunpack.c.h.b16 %v170
  %v874 = vunpack.c.l.b16 %v171
  %v875 = vunpack.c.h.b16 %v171
  %v876 = vunpack.c.l.b16 %v172
  %v877 = vunpack.c.h.b16 %v172
  %v878 = vunpack.c.l.b16 %v173
  %v879 = vunpack.c.h.b16 %v173
  %v880 = vunpack.c.l.b16 %v174
  %v881 = vunpack.c.h.b16 %v174
  %v882 = vunpack.c.l.b16 %v175
  %v883 = vunpack.c.h.b16 %v175
  %v884 = vunpack.c.l.b16 %v176
  %v885 = vunpack.c.h.b16 %v176
  %v886 = vunpack.c.l.b16 %v177
  %v887 = vunpack.c.h.b16 %v177
  %v888 = vunpack.c.l.b16 %v178
  %v889 = vunpack.c.h.b16 %v178
  %v890 = vunpack.c.l.b16 %v179
  %v891 = vunpack.c.h.b16 %v179
  %v892 = vunpack.c.l.b16 %v180
  %v893 = vunpack.c.h.b16 %v180
  %v894 = vunpack.c.l.b16 %v181
  %v895 = vunpack.c.h.b16 %v181
  %v896 = vunpack.c.l.b16 %v182
  %v897 = vunpack.c.h.b16 %v182
  %v898 = vunpack.c.l.b16 %v183
  %v899 = vunpack.c.h.b16 %v183
  %v900 = vunpack.c.l.b16 %v184
  %v901 = vunpack.c.h.b16 %v184
  %v902 = vunpack.c.l.b16 %v185
  %v903 = vunpack.c.h.b16 %v185
  %v904 = vunpack.c.l.b16 %v186
  %v905 = vunpack.c.h.b16 %v186
  %v906 = vunpack.c.l.b16 %v187
  %v907 = vunpack.c.h.b16 %v187
  %v908 = vunpack.c.l.b16 %v188
  %v909 = vunpack.c.h.b16 %v188
  %v910 = vunpack.c.l.b16 %v189
  %v911 = vunpack.c.h.b16 %v189
  %v912 = vunpack.c.l.b16 %v190
  %v913 = vunpack.c.h.b16 %v190
  %v914 = vunpack.c.l.b16 %v191
  %v915 = vunpack.c.h.b16 %v191
  %v916 = vunpack.c.l.b16 %v192
  %v917 = vunpack.c.h.b16 %v192
  %v918 = vunpack.c.l.b16 %v193
  %v919 = vunpack.c.h.b16 %v193
  %v920 = vunpack.c.l.b16 %v194
  %v921 = vunpack.c.h.b16 %v194
  %v922 = vunpack.c.l.b16 %v195
  %v923 = vunpack.c.h.b16 %v195
  %v924 = vunpack.c.l.b16 %v196
  %v925 = vunpack.c.h.b16 %v196
  %v926 = vunpack.c.l.b16 %v197
  %v927 = vunpack.c.h.b16 %v197
  %v928 = vunpack.c.l.b16 %v198
  %v929 = vunpack.c.h.b16 %v198
  %v930 = vunpack.c.l.b16 %v199
  %v931 = vunpack.c.h.b16 %v199
  %v932 = vunpack.c.l.b16 %v200
  %v933 = vunpack.c.h.b16 %v200
  %v934 = vunpack.c.l.b16 %v201
  %v935 = vunpack.c.h.b16 %v201
  %v936 = vunpack.c.l.b16 %v202
  %v937 = vunpack.c.h.b16 %v202
  %v938 = vunpack.c.l.b16 %v203
  %v939 = vunpack.c.h.b16 %v203
  %v940 = vunpack.c.l.b16 %v204
  %v941 = vunpack.c.h.b16 %v204
  %v942 = vunpack.c.l.b16 %v205
  %v943 = vunpack.c.h.b16 %v205
  %v944 = vunpack.c.l.b16 %v206
  %v945 = vunpack.c.h.b16 %v206
  %v946 = vunpack.c.l.b16 %v207
  %v947 = vunpack.c.h.b16 %v207
  %v948 = vunpack.c.l.b16 %v208
  %v949 = vunpack.c.h.b16 %v208
  %v950 = vunpack.c.l.b16 %v209
  %v951 = vunpack.c.h.b16 %v209
  %v952 = vunpack.c.l.b16 %v210
  %v953 = vunpack.c.h.b16 %v210
  %v954 = vunpack.c.l.b16 %v211
  %v955 = vunpack.c.h.b16 %v211
  %v956 = vunpack.c.l.b16 %v212
  %v957 = vunpack.c.h.b16 %v212
  %v958 = vunpack.c.l.b16 %v213
  %v959 = vunpack.c.h.b16 %v213
  %v960 = vunpack.c.l.b16 %v214
  %v961 = vunpack.c.h.b16 %v214
  %v962 = vunpack.c.l.b16 %v215
  %v963 = vunpack.c.h.b16 %v215
  %v964 = vunpack.c.l.b16 %v216
  %v965 = vunpack.c.h.b16 %v216
  %v966 = vunpack.c.l.b16 %v217
  %v967 = vunpack.c.h.b16 %v217
  %v968 = vunpack.c.l.b16 %v218
  %v969 = vunpack.c.h.b16 %v218
  %v970 = vunpack.c.l.b16 %v219
  %v971 = vunpack.c.h.b16 %v219
  %v972 = vunpack.c.l.b16 %v220
  %v973 = vunpack.c.h.b16 %v220
  %v974 = vunpack.c.l.b16 %v221
  %v975 = vunpack.c.h.b16 %v221
  %v976 = vunpack.c.l.b16 %v222
  %v977 = vunpack.c.h.b16 %v222
  %v978 = vunpack.c.l.b16 %v223
  %v979 = vunpack.c.h.b16 %v223
  %v980 = vunpack.c.l.b16 %v224
  %v981 = vunpack.c.h.b16 %v224
  %v982 = vunpack.c.l.b16 %v225
  %v983 = vunpack.c.h.b16 %v225
  %v984 = vunpack.c.l.b16 %v226
  %v985 = vunpack.c.h.b16 %v226
  %v986 = vunpack.c.l.b16 %v227
  %v987 = vunpack.c.h.b16 %v227
  %v988 = vunpack.c.l.b16 %v228
  %v989 = vunpack.c.h.b16 %v228
  %v990 = vunpack.c.l.b16 %v229
  %v991 = vunpack.c.h.b16 %v229
  %v992 = vunpack.c.l.b16 %v230
  %v993 = vunpack.c.h.b16 %v230
  %v994 = vunpack.c.l.b16 %v231
  %v995 = vunpack.c.h.b16 %v231
  %v996 = vunpack.c.l.b16 %v232
  %v997 = vunpack.c.h.b16 %v232
  %v998 = vunpack.c.l.b16 %v233
  %v999 = vunpack.c.h.b16 %v233
  %v1000 = vunpack.c.l.b16 %v234
  %v1001 = vunpack.c.h.b16 %v234
  %v1002 = vunpack.c.l.b16 %v235
  %v1003 = vunpack.c.h.b16 %v235
  %v1004 = vunpack.c.l.b16 %v236
  %v1005 = vunpack.c.h.b16 %v236
  %v1006 = vunpack.c.l.b16 %v237
  %v1007 = vunpack.c.h.b16 %v237
  %v1008 = vunpack.c.l.b16 %v238
  %v1009 = vunpack.c.h.b16 %v238
  %v1010 = vunpack.c.l.b16 %v239
  %v1011 = vunpack.c.h.b16 %v239
  %v1012 = vunpack.c.l.b16 %v240
  %v1013 = vunpack.c.h.b16 %v240
  %v1014 = vunpack.c.l.b16 %v241
  %v1015 = vunpack.c.h.b16 %v241
  %v1016 = vunpack.c.l.b16 %v242
  %v1017 = vunpack.c.h.b16 %v242
  %v1018 = vunpack.c.l.b16 %v243
  %v1019 = vunpack.c.h.b16 %v243
  %v1020 = vunpack.c.l.b16 %v244
  %v1021 = vunpack.c.h.b16 %v244
  %v1022 = vunpack.c.l.b16 %v245
  %v1023 = vunpack.c.h.b16 %v245
  %v1024 = vunpack.c.l.b16 %v246
  %v1025 = vunpack.c.h.b16 %v246
  %v1026 = vunpack.c.l.b16 %v247
  %v1027 = vunpack.c.h.b16 %v247
  %v1028 = vunpack.c.l.b16 %v248
  %v1029 = vunpack.c.h.b16 %v248
  %v1030 = vunpack.c.l.b16 %v249
  %v1031 = vunpack.c.h.b16 %v249
  %v1032 = vunpack.c.l.b16 %v250
  %v1033 = vunpack.c.h.b16 %v250
  %v1034 = vunpack.c.l.b16 %v251
  %v1035 = vunpack.c.h.b16 %v251
  %v1036 = vunpack.c.l.b16 %v252
  %v1037 = vunpack.c.h.b16 %v252
  %v1038 = vunpack.c.l.b16 %v253
  %v1039 = vunpack.c.h.b16 %v253
  %v1040 = vunpack.c.l.b16 %v254
  %v1041 = vunpack.c.h.b16 %v254
  %v1042 = vunpack.c.l.b16 %v255
  %v1043 = vunpack.c.h.b16 %v255
  %v1044 = vunpack.c.l.b16 %v256
  %v1045 = vunpack.c.h.b16 %v256
  %v1046 = vunpack.c.l.b16 %v257
  %v1047 = vunpack.c.h.b16 %v257
  %v1048 = vunpack.c.l.b16 %v258
  %v1049 = vunpack.c.h.b16 %v258
  %v1050 = vunpack.c.l.b16 %v259
  %v1051 = vunpack.c.h.b16 %v259
  %v1052 = vunpack.c.l.b16 %v260
  %v1053 = vunpack.c.h.b16 %v260
  %v1054 = vunpack.c.l.b16 %v261
  %v1055 = vunpack.c.h.b16 %v261
  %v1056 = vunpack.c.l.b16 %v262
  %v1057 = vunpack.c.h.b16 %v262
  %v1058 = vunpack.c.l.b16 %v263
  %v1059 = vunpack.c.h.b16 %v263
  %v1060 = vunpack.c.l.b16 %v264
  %v1061 = vunpack.c.h.b16 %v264
  %v1062 = vunpack.c.l.b16 %v265
  %v1063 = vunpack.c.h.b16 %v265
  %v1064 = vunpack.c.l.b16 %v266
  %v1065 = vunpack.c.h.b16 %v266
  %v1066 = vunpack.c.l.b16 %v267
  %v1067 = vunpack.c.h.b16 %v267
  %v1068 = vunpack.c.l.b16 %v268
  %v1069 = vunpack.c.h.b16 %v268
  %v1070 = vunpack.c.l.b16 %v269
  %v1071 = vunpack.c.h.b16 %v269
  %v1072 = vunpack.c.l.b16 %v270
  %v1073 = vunpack.c.h.b16 %v270
  %v1074 = vunpack.c.l.b16 %v271
  %v1075 = vunpack.c.h.b16 %v271
  %v1076 = vunpack.c.l.b16 %v272
  %v1077 = vunpack.c.h.b16 %v272
  %v1078 = vunpack.c.l.b16 %v273
  %v1079 = vunpack.c.h.b16 %v273
  %v1080 = vunpack.c.l.b16 %v274
  %v1081 = vunpack.c.h.b16 %v274
  %v1082 = vunpack.c.l.b16 %v275
  %v1083 = vunpack.c.h.b16 %v275
  %v1084 = vunpack.c.l.b16 %v276
  %v1085 = vunpack.c.h.b16 %v276
  %v1086 = vunpack.c.l.b16 %v277
  %v1087 = vunpack.c.h.b16 %v277
  %v1088 = vunpack.c.l.b16 %v278
  %v1089 = vunpack.c.h.b16 %v278
  %v1090 = vunpack.c.l.b16 %v279
  %v1091 = vunpack.c.h.b16 %v279
  %v1092 = vunpack.c.l.b16 %v280
  %v1093 = vunpack.c.h.b16 %v280
  %v1094 = vunpack.c.l.b16 %v281
  %v1095 = vunpack.c.h.b16 %v281
  %v1096 = vunpack.c.l.b16 %v282
  %v1097 = vunpack.c.h.b16 %v282
  %v1098 = vunpack.c.l.b16 %v283
  %v1099 = vunpack.c.h.b16 %v283
  %v1100 = vunpack.c.l.b16 %v284
  %v1101 = vunpack.c.h.b16 %v284
  %v1102 = vunpack.c.l.b16 %v285
  %v1103 = vunpack.c.h.b16 %v285
  %v1104 = vunpack.c.l.b16 %v286
  %v1105 = vunpack.c.h.b16 %v286
  %v1106 = vunpack.c.l.b16 %v287
  %v1107 = vunpack.c.h.b16 %v287
  %v1108 = vunpack.c.l.b16 %v288
  %v1109 = vunpack.c.h.b16 %v288
  %v1110 = vunpack.c.l.b16 %v289
  %v1111 = vunpack.c.h.b16 %v289
  %v1112 = vunpack.c.l.b16 %v290
  %v1113 = vunpack.c.h.b16 %v290
  %v1114 = vunpack.c.l.b16 %v291
  %v1115 = vunpack.c.h.b16 %v291
  %v1116 = vpack.c.b16 %v606, %v604
  %v1117 = vpack.c.b16 %v607, %v605
  %v1118 = vpack.c.b16 %v610, %v608
  %v1119 = vpack.c.b16 %v611, %v609
  %v1120 = vpack.c.b16 %v614, %v612
  %v1121 = vpack.c.b16 %v615, %v613
  %v1122 = vpack.c.b16 %v618, %v616
  %v1123 = vpack.c.b16 %v619, %v617
  %v1124 = vpack.c.b16 %v622, %v620
  %v1125 = vpack.c.b16 %v623, %v621
  %v1126 = vpack.c.b16 %v626, %v624
  %v1127 = vpack.c.b16 %v627, %v625
  %v1128 = vpack.c.b16 %v630, %v628
  %v1129 = vpack.c.b16 %v631, %v629
  %v1130 = vpack.c.b16 %v634, %v632
  %v1131 = vpack.c.b16 %v635, %v633
  %v1132 = vpack.c.b16 %v638, %v636
  %v1133 = vpack.c.b16 %v639, %v637
  %v1134 = vpack.c.b16 %v642, %v640
  %v1135 = vpack.c.b16 %v643, %v641
  %v1136 = vpack.c.b16 %v646, %v644
  %v1137 = vpack.c.b16 %v647, %v645
  %v1138 = vpack.c.b16 %v650, %v648
  %v1139 = vpack.c.b16 %v651, %v649
  %v1140 = vpack.c.b16 %v654, %v652
  %v1141 = vpack.c.b16 %v655, %v653
  %v1142 = vpack.c.b16 %v658, %v656
  %v1143 = vpack.c.b16 %v659, %v657
  %v1144 = vpack.c.b16 %v662, %v660
  %v1145 = vpack.c.b16 %v663, %v661
  %v1146 = vpack.c.b16 %v666, %v664
  %v1147 = vpack.c.b16 %v667, %v665
  %v1148 = vpack.c.b16 %v670, %v668
  %v1149 = vpack.c.b16 %v671, %v669
  %v1150 = vpack.c.b16 %v674, %v672
  %v1151 = vpack.c.b16 %v675, %v673
  %v1152 = vpack.c.b16 %v678, %v676
  %v1153 = vpack.c.b16 %v679, %v677
  %v1154 = vpack.c.b16 %v682, %v680
  %v1155 = vpack.c.b16 %v683, %v681
  %v1156 = vpack.c.b16 %v686, %v684
  %v1157 = vpack.c.b16 %v687, %v685
  %v1158 = vpack.c.b16 %v690, %v688
  %v1159 = vpack.c.b16 %v691, %v689
  %v1160 = vpack.c.b16 %v694, %v692
  %v1161 = vpack.c.b16 %v695, %v693
  %v1162 = vpack.c.b16 %v698, %v696
  %v1163 = vpack.c.b16 %v699, %v697
  %v1164 = vpack.c.b16 %v702, %v700
  %v1165 = vpack.c.b16 %v703, %v701
  %v1166 = vpack.c.b16 %v706, %v704
  %v1167 = vpack.c.b16 %v707, %v705
  %v1168 = vpack.c.b16 %v710, %v708
  %v1169 = vpack.c.b16 %v711, %v709
  %v1170 = vpack.c.b16 %v714, %v712
  %v1171 = vpack.c.b16 %v715, %v713
  %v1172 = vpack.c.b16 %v718, %v716
  %v1173 = vpack.c.b16 %v719, %v717
  %v1174 = vpack.c.b16 %v722, %v720
  %v1175 = vpack.c.b16 %v723, %v721
  %v1176 = vpack.c.b16 %v726, %v724
  %v1177 = vpack.c.b16 %v727, %v725
  %v1178 = vpack.c.b16 %v730, %v728
  %v1179 = vpack.c.b16 %v731, %v729
  %v1180 = vpack.c.b16 %v734, %v732
  %v1181 = vpack.c.b16 %v735, %v733
  %v1182 = vpack.c.b16 %v738, %v736
  %v1183 = vpack.c.b16 %v739, %v737
  %v1184 = vpack.c.b16 %v742, %v740
  %v1185 = vpack.c.b16 %v743, %v741
  %v1186 = vpack.c.b16 %v746, %v744
  %v1187 = vpack.c.b16 %v747, %v745
  %v1188 = vpack.c.b16 %v750, %v748
  %v1189 = vpack.c.b16 %v751, %v749
  %v1190 = vpack.c.b16 %v754, %v752
  %v1191 = vpack.c.b16 %v755, %v753
  %v1192 = vpack.c.b16 %v758, %v756
  %v1193 = vpack.c.b16 %v759, %v757
  %v1194 = vpack.c.b16 %v762, %v760
  %v1195 = vpack.c.b16 %v763, %v761
  %v1196 = vpack.c.b16 %v766, %v764
  %v1197 = vpack.c.b16 %v767, %v765
  %v1198 = vpack.c.b16 %v770, %v768
  %v1199 = vpack.c.b16 %v771, %v769
  %v1200 = vpack.c.b16 %v774, %v772
  %v1201 = vpack.c.b16 %v775, %v773
  %v1202 = vpack.c.b16 %v778, %v776
  %v1203 = vpack.c.b16 %v779, %v777
  %v1204 = vpack.c.b16 %v782, %v780
  %v1205 = vpack.c.b16 %v783, %v781
  %v1206 = vpack.c.b16 %v786, %v784
  %v1207 = vpack.c.b16 %v787, %v785
  %v1208 = vpack.c.b16 %v790, %v788
  %v1209 = vpack.c.b16 %v791, %v789
  %v1210 = vpack.c.b16 %v794, %v792
  %v1211 = vpack.c.b16 %v795, %v793
  %v1212 = vpack.c.b16 %v798, %v796
  %v1213 = vpack.c.b16 %v799, %v797
  %v1214 = vpack.c.b16 %v802, %v800
  %v1215 = vpack.c.b16 %v803, %v801
  %v1216 = vpack.c.b16 %v806, %v804
  %v1217 = vpack.c.b16 %v807, %v805
  %v1218 = vpack.c.b16 %v810, %v808
  %v1219 = vpack.c.b16 %v811, %v809
  %v1220 = vpack.c.b16 %v814, %v812
  %v1221 = vpack.c.b16 %v815, %v813
  %v1222 = vpack.c.b16 %v818, %v816
  %v1223 = vpack.c.b16 %v819, %v817
  %v1224 = vpack.c.b16 %v822, %v820
  %v1225 = vpack.c.b16 %v823, %v821
  %v1226 = vpack.c.b16 %v826, %v824
  %v1227 = vpack.c.b16 %v827, %v825
  %v1228 = vpack.c.b16 %v830, %v828
  %v1229 = vpack.c.b16 %v831, %v829
  %v1230 = vpack.c.b16 %v834, %v832
  %v1231 = vpack.c.b16 %v835, %v833
  %v1232 = vpack.c.b16 %v838, %v836
  %v1233 = vpack.c.b16 %v839, %v837
  %v1234 = vpack.c.b16 %v842, %v840
  %v1235 = vpack.c.b16 %v843, %v841
  %v1236 = vpack.c.b16 %v846, %v844
  %v1237 = vpack.c.b16 %v847, %v845
  %v1238 = vpack.c.b16 %v850, %v848
  %v1239 = vpack.c.b16 %v851, %v849
  %v1240 = vpack.c.b16 %v854, %v852
  %v1241 = vpack.c.b16 %v855, %v853
  %v1242 = vpack.c.b16 %v858, %v856
  %v1243 = vpack.c.b16 %v859, %v857
  %v1244 = vpack.c.b16 %v862, %v860
  %v1245 = vpack.c.b16 %v863, %v861
  %v1246 = vpack.c.b16 %v866, %v864
  %v1247 = vpack.c.b16 %v867, %v865
  %v1248 = vpack.c.b16 %v870, %v868
  %v1249 = vpack.c.b16 %v871, %v869
  %v1250 = vpack.c.b16 %v874, %v872
  %v1251 = vpack.c.b16 %v875, %v873
  %v1252 = vpack.c.b16 %v878, %v876
  %v1253 = vpack.c.b16 %v879, %v877
  %v1254 = vpack.c.b16 %v882, %v880
  %v1255 = vpack.c.b16 %v883, %v881
  %v1256 = vpack.c.b16 %v886, %v884
  %v1257 = vpack.c.b16 %v887, %v885
  %v1258 = vpack.c.b16 %v890, %v888
  %v1259 = vpack.c.b16 %v891, %v889
  %v1260 = vpack.c.b16 %v894, %v892
  %v1261 = vpack.c.b16 %v895, %v893
  %v1262 = vpack.c.b16 %v898, %v896
  %v1263 = vpack.c.b16 %v899, %v897
  %v1264 = vpack.c.b16 %v902, %v900
  %v1265 = vpack.c.b16 %v903, %v901
  %v1266 = vpack.c.b16 %v906, %v904
  %v1267 = vpack.c.b16 %v907, %v905
  %v1268 = vpack.c.b16 %v910, %v908
  %v1269 = vpack.c.b16 %v911, %v909
  %v1270 = vpack.c.b16 %v914, %v912
  %v1271 = vpack.c.b16 %v915, %v913
  %v1272 = vpack.c.b16 %v918, %v916
  %v1273 = vpack.c.b16 %v919, %v917
  %v1274 = vpack.c.b16 %v922, %v920
  %v1275 = vpack.c.b16 %v923, %v921
  %v1276 = vpack.c.b16 %v926, %v924
  %v1277 = vpack.c.b16 %v927, %v925
  %v1278 = vpack.c.b16 %v930, %v928
  %v1279 = vpack.c.b16 %v931, %v929
  %v1280 = vpack.c.b16 %v934, %v932
  %v1281 = vpack.c.b16 %v935, %v933
  %v1282 = vpack.c.b16 %v938, %v936
  %v1283 = vpack.c.b16 %v939, %v937
  %v1284 = vpack.c.b16 %v942, %v940
  %v1285 = vpack.c.b16 %v943, %v941
  %v1286 = vpack.c.b16 %v946, %v944
  %v1287 = vpack.c.b16 %v947, %v945
  %v1288 = vpack.c.b16 %v950, %v948
  %v1289 = vpack.c.b16 %v951, %v949
  %v1290 = vpack.c.b16 %v954, %v952
  %v1291 = vpack.c.b16 %v955, %v953
  %v1292 = vpack.c.b16 %v958, %v956
  %v1293 = vpack.c.b16 %v959, %v957
  %v1294 = vpack.c.b16 %v962, %v960
  %v1295 = vpack.c.b16 %v963, %v961
  %v1296 = vpack.c.b16 %v966, %v964
  %v1297 = vpack.c.b16 %v967, %v965
  %v1298 = vpack.c.b16 %v970, %v968
  %v1299 = vpack.c.b16 %v971, %v969
  %v1300 = vpack.c.b16 %v974, %v972
  %v1301 = vpack.c.b16 %v975, %v973
  %v1302 = vpack.c.b16 %v978, %v976
  %v1303 = vpack.c.b16 %v979, %v977
  %v1304 = vpack.c.b16 %v982, %v980
  %v1305 = vpack.c.b16 %v983, %v981
  %v1306 = vpack.c.b16 %v986, %v984
  %v1307 = vpack.c.b16 %v987, %v985
  %v1308 = vpack.c.b16 %v990, %v988
  %v1309 = vpack.c.b16 %v991, %v989
  %v1310 = vpack.c.b16 %v994, %v992
  %v1311 = vpack.c.b16 %v995, %v993
  %v1312 = vpack.c.b16 %v998, %v996
  %v1313 = vpack.c.b16 %v999, %v997
  %v1314 = vpack.c.b16 %v1002, %v1000
  %v1315 = vpack.c.b16 %v1003, %v1001
  %v1316 = vpack.c.b16 %v1006, %v1004
  %v1317 = vpack.c.b16 %v1007, %v1005
  %v1318 = vpack.c.b16 %v1010, %v1008
  %v1319 = vpack.c.b16 %v1011, %v1009
  %v1320 = vpack.c.b16 %v1014, %v1012
  %v1321 = vpack.c.b16 %v1015, %v1013
  %v1322 = vpack.c.b16 %v1018, %v1016
  %v1323 = vpack.c.b16 %v1019, %v1017
  %v1324 = vpack.c.b16 %v1022, %v1020
  %v1325 = vpack.c.b16 %v1023, %v1021
  %v1326 = vpack.c.b16 %v1026, %v1024
  %v1327 = vpack.c.b16 %v1027, %v1025
  %v1328 = vpack.c.b16 %v1030, %v1028
  %v1329 = vpack.c.b16 %v1031, %v1029
  %v1330 = vpack.c.b16 %v1034, %v1032
  %v1331 = vpack.c.b16 %v1035, %v1033
  %v1332 = vpack.c.b16 %v1038, %v1036
  %v1333 = vpack.c.b16 %v1039, %v1037
  %v1334 = vpack.c.b16 %v1042, %v1040
  %v1335 = vpack.c.b16 %v1043, %v1041
  %v1336 = vpack.c.b16 %v1046, %v1044
  %v1337 = vpack.c.b16 %v1047, %v1045
  %v1338 = vpack.c.b16 %v1050, %v1048
  %v1339 = vpack.c.b16 %v1051, %v1049
  %v1340 = vpack.c.b16 %v1054, %v1052
  %v1341 = vpack.c.b16 %v1055, %v1053
  %v1342 = vpack.c.b16 %v1058, %v1056
  %v1343 = vpack.c.b16 %v1059, %v1057
  %v1344 = vpack.c.b16 %v1062, %v1060
  %v1345 = vpack.c.b16 %v1063, %v1061
  %v1346 = vpack.c.b16 %v1066, %v1064
  %v1347 = vpack.c.b16 %v1067, %v1065
  %v1348 = vpack.c.b16 %v1070, %v1068
  %v1349 = vpack.c.b16 %v1071, %v1069
  %v1350 = vpack.c.b16 %v1074, %v1072
  %v1351 = vpack.c.b16 %v1075, %v1073
  %v1352 = vpack.c.b16 %v1078, %v1076
  %v1353 = vpack.c.b16 %v1079, %v1077
  %v1354 = vpack.c.b16 %v1082, %v1080
  %v1355 = vpack.c.b16 %v1083, %v1081
  %v1356 = vpack.c.b16 %v1086, %v1084
  %v1357 = vpack.c.b16 %v1087, %v1085
  %v1358 = vpack.c.b16 %v1090, %v1088
  %v1359 = vpack.c.b16 %v1091, %v1089
  %v1360 = vpack.c.b16 %v1094, %v1092
  %v1361 = vpack.c.b16 %v1095, %v1093
  %v1362 = vpack.c.b16 %v1098, %v1096
  %v1363 = vpack.c.b16 %v1099, %v1097
  %v1364 = vpack.c.b16 %v1102, %v1100
  %v1365 = vpack.c.b16 %v1103, %v1101
  %v1366 = vpack.c.b16 %v1106, %v1104
  %v1367 = vpack.c.b16 %v1107, %v1105
  %v1368 = vpack.c.b16 %v1110, %v1108
  %v1369 = vpack.c.b16 %v1111, %v1109
  %v1370 = vpack.c.b16 %v1114, %v1112
  %v1371 = vpack.c.b16 %v1115, %v1113
  %1628 = vmatprep.subr.bf16.mxu0 %v1117
  %1629 = vmatpush1.bf16.msra.mxu0 %v1116
  %1630 = vmatprep.subr.bf16.mxu0 %v1119
  %1631 = vmatpush1.bf16.msra.mxu0 %v1118
  %1632 = vmatprep.subr.bf16.mxu0 %v1121
  %1633 = vmatpush1.bf16.msra.mxu0 %v1120
  %1634 = vmatprep.subr.bf16.mxu0 %v1123
  %1635 = vmatpush1.bf16.msra.mxu0 %v1122
  %1636 = vmatprep.subr.bf16.mxu0 %v1125
  %1637 = vmatpush1.bf16.msra.mxu0 %v1124
  %1638 = vmatprep.subr.bf16.mxu0 %v1127
  %1639 = vmatpush1.bf16.msra.mxu0 %v1126
  %1640 = vmatprep.subr.bf16.mxu0 %v1129
  %1641 = vmatpush1.bf16.msra.mxu0 %v1128
  %1642 = vmatprep.subr.bf16.mxu0 %v1131
  %1643 = vmatpush1.bf16.msra.mxu0 %v1130
  %1644 = vmatprep.subr.bf16.mxu0 %v1133
  %1645 = vmatpush1.bf16.msra.mxu0 %v1132
  %1646 = vmatprep.subr.bf16.mxu0 %v1135
  %1647 = vmatpush1.bf16.msra.mxu0 %v1134
  %1648 = vmatprep.subr.bf16.mxu0 %v1137
  %1649 = vmatpush1.bf16.msra.mxu0 %v1136
  %1650 = vmatprep.subr.bf16.mxu0 %v1139
  %1651 = vmatpush1.bf16.msra.mxu0 %v1138
  %1652 = vmatprep.subr.bf16.mxu0 %v1141
  %1653 = vmatpush1.bf16.msra.mxu0 %v1140
  %1654 = vmatprep.subr.bf16.mxu0 %v1143
  %1655 = vmatpush1.bf16.msra.mxu0 %v1142
  %1656 = vmatprep.subr.bf16.mxu0 %v1145
  %1657 = vmatpush1.bf16.msra.mxu0 %v1144
  %1658 = vmatprep.subr.bf16.mxu0 %v1147
  %1659 = vmatpush1.bf16.msra.mxu0 %v1146
  %1660 = vmatprep.mubr.bf16.mxu0 %v317
  %1661 = vmatmul.mubr.bf16.gmra.mrb[0].mxu0 %v316
  %v1662 = vpop.f32.mrb[0].mxu0
  %v1663 = vadd.f32 0.0, %v1662
  %v1664 = vpop.f32.mrb[0].mxu0
  %v1665 = vadd.f32 0.0, %v1664
  %v1666 = vpop.f32.mrb[0].mxu0
  %v1667 = vpop.f32.mrb[0].mxu0
  %1668 = vdwg.mxu0
  %1669 = vmatprep.subr.bf16.mxu0 %v1149
  %1670 = vmatpush1.bf16.msra.mxu0 %v1148
  %1671 = vmatprep.subr.bf16.mxu0 %v1151
  %1672 = vmatpush1.bf16.msra.mxu0 %v1150
  %1673 = vmatprep.subr.bf16.mxu0 %v1153
  %1674 = vmatpush1.bf16.msra.mxu0 %v1152
  %1675 = vmatprep.subr.bf16.mxu0 %v1155
  %1676 = vmatpush1.bf16.msra.mxu0 %v1154
  %1677 = vmatprep.subr.bf16.mxu0 %v1157
  %1678 = vmatpush1.bf16.msra.mxu0 %v1156
  %1679 = vmatprep.subr.bf16.mxu0 %v1159
  %1680 = vmatpush1.bf16.msra.mxu0 %v1158
  %1681 = vmatprep.subr.bf16.mxu0 %v1161
  %1682 = vmatpush1.bf16.msra.mxu0 %v1160
  %1683 = vmatprep.subr.bf16.mxu0 %v1163
  %1684 = vmatpush1.bf16.msra.mxu0 %v1162
  %1685 = vmatprep.subr.bf16.mxu0 %v1165
  %1686 = vmatpush1.bf16.msra.mxu0 %v1164
  %1687 = vmatprep.subr.bf16.mxu0 %v1167
  %1688 = vmatpush1.bf16.msra.mxu0 %v1166
  %1689 = vmatprep.subr.bf16.mxu0 %v1169
  %1690 = vmatpush1.bf16.msra.mxu0 %v1168
  %1691 = vmatprep.subr.bf16.mxu0 %v1171
  %1692 = vmatpush1.bf16.msra.mxu0 %v1170
  %1693 = vmatprep.subr.bf16.mxu0 %v1173
  %1694 = vmatpush1.bf16.msra.mxu0 %v1172
  %1695 = vmatprep.subr.bf16.mxu0 %v1175
  %1696 = vmatpush1.bf16.msra.mxu0 %v1174
  %1697 = vmatprep.subr.bf16.mxu0 %v1177
  %1698 = vmatpush1.bf16.msra.mxu0 %v1176
  %1699 = vmatprep.subr.bf16.mxu0 %v1179
  %1700 = vmatpush1.bf16.msra.mxu0 %v1178
  %1701 = vmatprep.mubr.bf16.mxu0 %v319
  %1702 = vmatmul.mubr.bf16.gmra.mrb[0].mxu0 %v318
  %v1703 = vpop.f32.mrb[0].mxu0
  %v1704 = vadd.f32 %v1663, %v1703
  %v1705 = vpop.f32.mrb[0].mxu0
  %v1706 = vadd.f32 %v1665, %v1705
  %v1707 = vpop.f32.mrb[0].mxu0
  %v1708 = vpop.f32.mrb[0].mxu0
  %1709 = vdwg.mxu0
  %1710 = vmatprep.subr.bf16.mxu0 %v1181
  %1711 = vmatpush1.bf16.msra.mxu0 %v1180
  %1712 = vmatprep.subr.bf16.mxu0 %v1183
  %1713 = vmatpush1.bf16.msra.mxu0 %v1182
  %1714 = vmatprep.subr.bf16.mxu0 %v1185
  %1715 = vmatpush1.bf16.msra.mxu0 %v1184
  %1716 = vmatprep.subr.bf16.mxu0 %v1187
  %1717 = vmatpush1.bf16.msra.mxu0 %v1186
  %1718 = vmatprep.subr.bf16.mxu0 %v1189
  %1719 = vmatpush1.bf16.msra.mxu0 %v1188
  %1720 = vmatprep.subr.bf16.mxu0 %v1191
  %1721 = vmatpush1.bf16.msra.mxu0 %v1190
  %1722 = vmatprep.subr.bf16.mxu0 %v1193
  %1723 = vmatpush1.bf16.msra.mxu0 %v1192
  %1724 = vmatprep.subr.bf16.mxu0 %v1195
  %1725 = vmatpush1.bf16.msra.mxu0 %v1194
  %1726 = vmatprep.subr.bf16.mxu0 %v1197
  %1727 = vmatpush1.bf16.msra.mxu0 %v1196
  %1728 = vmatprep.subr.bf16.mxu0 %v1199
  %1729 = vmatpush1.bf16.msra.mxu0 %v1198
  %1730 = vmatprep.subr.bf16.mxu0 %v1201
  %1731 = vmatpush1.bf16.msra.mxu0 %v1200
  %1732 = vmatprep.subr.bf16.mxu0 %v1203
  %1733 = vmatpush1.bf16.msra.mxu0 %v1202
  %1734 = vmatprep.subr.bf16.mxu0 %v1205
  %1735 = vmatpush1.bf16.msra.mxu0 %v1204
  %1736 = vmatprep.subr.bf16.mxu0 %v1207
  %1737 = vmatpush1.bf16.msra.mxu0 %v1206
  %1738 = vmatprep.subr.bf16.mxu0 %v1209
  %1739 = vmatpush1.bf16.msra.mxu0 %v1208
  %1740 = vmatprep.subr.bf16.mxu0 %v1211
  %1741 = vmatpush1.bf16.msra.mxu0 %v1210
  %1742 = vmatprep.mubr.bf16.mxu0 %v321
  %1743 = vmatmul.mubr.bf16.gmra.mrb[0].mxu0 %v320
  %v1744 = vpop.f32.mrb[0].mxu0
  %v1745 = vadd.f32 %v1704, %v1744
  %v1746 = vpop.f32.mrb[0].mxu0
  %v1747 = vadd.f32 %v1706, %v1746
  %v1748 = vpop.f32.mrb[0].mxu0
  %v1749 = vpop.f32.mrb[0].mxu0
  %1750 = vdwg.mxu0
  %1751 = vmatprep.subr.bf16.mxu0 %v1213
  %1752 = vmatpush1.bf16.msra.mxu0 %v1212
  %1753 = vmatprep.subr.bf16.mxu0 %v1215
  %1754 = vmatpush1.bf16.msra.mxu0 %v1214
  %1755 = vmatprep.subr.bf16.mxu0 %v1217
  %1756 = vmatpush1.bf16.msra.mxu0 %v1216
  %1757 = vmatprep.subr.bf16.mxu0 %v1219
  %1758 = vmatpush1.bf16.msra.mxu0 %v1218
  %1759 = vmatprep.subr.bf16.mxu0 %v1221
  %1760 = vmatpush1.bf16.msra.mxu0 %v1220
  %1761 = vmatprep.subr.bf16.mxu0 %v1223
  %1762 = vmatpush1.bf16.msra.mxu0 %v1222
  %1763 = vmatprep.subr.bf16.mxu0 %v1225
  %1764 = vmatpush1.bf16.msra.mxu0 %v1224
  %1765 = vmatprep.subr.bf16.mxu0 %v1227
  %1766 = vmatpush1.bf16.msra.mxu0 %v1226
  %1767 = vmatprep.subr.bf16.mxu0 %v1229
  %1768 = vmatpush1.bf16.msra.mxu0 %v1228
  %1769 = vmatprep.subr.bf16.mxu0 %v1231
  %1770 = vmatpush1.bf16.msra.mxu0 %v1230
  %1771 = vmatprep.subr.bf16.mxu0 %v1233
  %1772 = vmatpush1.bf16.msra.mxu0 %v1232
  %1773 = vmatprep.subr.bf16.mxu0 %v1235
  %1774 = vmatpush1.bf16.msra.mxu0 %v1234
  %1775 = vmatprep.subr.bf16.mxu0 %v1237
  %1776 = vmatpush1.bf16.msra.mxu0 %v1236
  %1777 = vmatprep.subr.bf16.mxu0 %v1239
  %1778 = vmatpush1.bf16.msra.mxu0 %v1238
  %1779 = vmatprep.subr.bf16.mxu0 %v1241
  %1780 = vmatpush1.bf16.msra.mxu0 %v1240
  %1781 = vmatprep.subr.bf16.mxu0 %v1243
  %1782 = vmatpush1.bf16.msra.mxu0 %v1242
  %1783 = vmatprep.mubr.bf16.mxu0 %v323
  %1784 = vmatmul.mubr.bf16.gmra.mrb[0].mxu0 %v322
  %v1785 = vpop.f32.mrb[0].mxu0
  %v1786 = vadd.f32 %v1745, %v1785
  %v1787 = vpop.f32.mrb[0].mxu0
  %v1788 = vadd.f32 %v1747, %v1787
  %v1789 = vpop.f32.mrb[0].mxu0
  %v1790 = vpop.f32.mrb[0].mxu0
  %1791 = vdwg.mxu0
  %1792 = vmatprep.subr.bf16.mxu0 %v1245
  %1793 = vmatpush1.bf16.msra.mxu0 %v1244
  %1794 = vmatprep.subr.bf16.mxu0 %v1247
  %1795 = vmatpush1.bf16.msra.mxu0 %v1246
  %1796 = vmatprep.subr.bf16.mxu0 %v1249
  %1797 = vmatpush1.bf16.msra.mxu0 %v1248
  %1798 = vmatprep.subr.bf16.mxu0 %v1251
  %1799 = vmatpush1.bf16.msra.mxu0 %v1250
  %1800 = vmatprep.subr.bf16.mxu0 %v1253
  %1801 = vmatpush1.bf16.msra.mxu0 %v1252
  %1802 = vmatprep.subr.bf16.mxu0 %v1255
  %1803 = vmatpush1.bf16.msra.mxu0 %v1254
  %1804 = vmatprep.subr.bf16.mxu0 %v1257
  %1805 = vmatpush1.bf16.msra.mxu0 %v1256
  %1806 = vmatprep.subr.bf16.mxu0 %v1259
  %1807 = vmatpush1.bf16.msra.mxu0 %v1258
  %1808 = vmatprep.subr.bf16.mxu0 %v1261
  %1809 = vmatpush1.bf16.msra.mxu0 %v1260
  %1810 = vmatprep.subr.bf16.mxu0 %v1263
  %1811 = vmatpush1.bf16.msra.mxu0 %v1262
  %1812 = vmatprep.subr.bf16.mxu0 %v1265
  %1813 = vmatpush1.bf16.msra.mxu0 %v1264
  %1814 = vmatprep.subr.bf16.mxu0 %v1267
  %1815 = vmatpush1.bf16.msra.mxu0 %v1266
  %1816 = vmatprep.subr.bf16.mxu0 %v1269
  %1817 = vmatpush1.bf16.msra.mxu0 %v1268
  %1818 = vmatprep.subr.bf16.mxu0 %v1271
  %1819 = vmatpush1.bf16.msra.mxu0 %v1270
  %1820 = vmatprep.subr.bf16.mxu0 %v1273
  %1821 = vmatpush1.bf16.msra.mxu0 %v1272
  %1822 = vmatprep.subr.bf16.mxu0 %v1275
  %1823 = vmatpush1.bf16.msra.mxu0 %v1274
  %1824 = vmatprep.mubr.bf16.mxu0 %v325
  %1825 = vmatmul.mubr.bf16.gmra.mrb[0].mxu0 %v324
  %v1826 = vpop.f32.mrb[0].mxu0
  %v1827 = vadd.f32 %v1786, %v1826
  %v1828 = vpop.f32.mrb[0].mxu0
  %v1829 = vadd.f32 %v1788, %v1828
  %v1830 = vpop.f32.mrb[0].mxu0
  %v1831 = vpop.f32.mrb[0].mxu0
  %1832 = vdwg.mxu0
  %1833 = vmatprep.subr.bf16.mxu0 %v1277
  %1834 = vmatpush1.bf16.msra.mxu0 %v1276
  %1835 = vmatprep.subr.bf16.mxu0 %v1279
  %1836 = vmatpush1.bf16.msra.mxu0 %v1278
  %1837 = vmatprep.subr.bf16.mxu0 %v1281
  %1838 = vmatpush1.bf16.msra.mxu0 %v1280
  %1839 = vmatprep.subr.bf16.mxu0 %v1283
  %1840 = vmatpush1.bf16.msra.mxu0 %v1282
  %1841 = vmatprep.subr.bf16.mxu0 %v1285
  %1842 = vmatpush1.bf16.msra.mxu0 %v1284
  %1843 = vmatprep.subr.bf16.mxu0 %v1287
  %1844 = vmatpush1.bf16.msra.mxu0 %v1286
  %1845 = vmatprep.subr.bf16.mxu0 %v1289
  %1846 = vmatpush1.bf16.msra.mxu0 %v1288
  %1847 = vmatprep.subr.bf16.mxu0 %v1291
  %1848 = vmatpush1.bf16.msra.mxu0 %v1290
  %1849 = vmatprep.subr.bf16.mxu0 %v1293
  %1850 = vmatpush1.bf16.msra.mxu0 %v1292
  %1851 = vmatprep.subr.bf16.mxu0 %v1295
  %1852 = vmatpush1.bf16.msra.mxu0 %v1294
  %1853 = vmatprep.subr.bf16.mxu0 %v1297
  %1854 = vmatpush1.bf16.msra.mxu0 %v1296
  %1855 = vmatprep.subr.bf16.mxu0 %v1299
  %1856 = vmatpush1.bf16.msra.mxu0 %v1298
  %1857 = vmatprep.subr.bf16.mxu0 %v1301
  %1858 = vmatpush1.bf16.msra.mxu0 %v1300
  %1859 = vmatprep.subr.bf16.mxu0 %v1303
  %1860 = vmatpush1.bf16.msra.mxu0 %v1302
  %1861 = vmatprep.subr.bf16.mxu0 %v1305
  %1862 = vmatpush1.bf16.msra.mxu0 %v1304
  %1863 = vmatprep.subr.bf16.mxu0 %v1307
  %1864 = vmatpush1.bf16.msra.mxu0 %v1306
  %1865 = vmatprep.mubr.bf16.mxu0 %v327
  %1866 = vmatmul.mubr.bf16.gmra.mrb[0].mxu0 %v326
  %v1867 = vpop.f32.mrb[0].mxu0
  %v1868 = vadd.f32 %v1827, %v1867
  %v1869 = vpop.f32.mrb[0].mxu0
  %v1870 = vadd.f32 %v1829, %v1869
  %v1871 = vpop.f32.mrb[0].mxu0
  %v1872 = vpop.f32.mrb[0].mxu0
  %1873 = vdwg.mxu0
  %1874 = vmatprep.subr.bf16.mxu0 %v1309
  %1875 = vmatpush1.bf16.msra.mxu0 %v1308
  %1876 = vmatprep.subr.bf16.mxu0 %v1311
  %1877 = vmatpush1.bf16.msra.mxu0 %v1310
  %1878 = vmatprep.subr.bf16.mxu0 %v1313
  %1879 = vmatpush1.bf16.msra.mxu0 %v1312
  %1880 = vmatprep.subr.bf16.mxu0 %v1315
  %1881 = vmatpush1.bf16.msra.mxu0 %v1314
  %1882 = vmatprep.subr.bf16.mxu0 %v1317
  %1883 = vmatpush1.bf16.msra.mxu0 %v1316
  %1884 = vmatprep.subr.bf16.mxu0 %v1319
  %1885 = vmatpush1.bf16.msra.mxu0 %v1318
  %1886 = vmatprep.subr.bf16.mxu0 %v1321
  %1887 = vmatpush1.bf16.msra.mxu0 %v1320
  %1888 = vmatprep.subr.bf16.mxu0 %v1323
  %1889 = vmatpush1.bf16.msra.mxu0 %v1322
  %1890 = vmatprep.subr.bf16.mxu0 %v1325
  %1891 = vmatpush1.bf16.msra.mxu0 %v1324
  %1892 = vmatprep.subr.bf16.mxu0 %v1327
  %1893 = vmatpush1.bf16.msra.mxu0 %v1326
  %1894 = vmatprep.subr.bf16.mxu0 %v1329
  %1895 = vmatpush1.bf16.msra.mxu0 %v1328
  %1896 = vmatprep.subr.bf16.mxu0 %v1331
  %1897 = vmatpush1.bf16.msra.mxu0 %v1330
  %1898 = vmatprep.subr.bf16.mxu0 %v1333
  %1899 = vmatpush1.bf16.msra.mxu0 %v1332
  %1900 = vmatprep.subr.bf16.mxu0 %v1335
  %1901 = vmatpush1.bf16.msra.mxu0 %v1334
  %1902 = vmatprep.subr.bf16.mxu0 %v1337
  %1903 = vmatpush1.bf16.msra.mxu0 %v1336
  %1904 = vmatprep.subr.bf16.mxu0 %v1339
  %1905 = vmatpush1.bf16.msra.mxu0 %v1338
  %1906 = vmatprep.mubr.bf16.mxu0 %v329
  %1907 = vmatmul.mubr.bf16.gmra.mrb[0].mxu0 %v328
  %v1908 = vpop.f32.mrb[0].mxu0
  %v1909 = vadd.f32 %v1868, %v1908
  %v1910 = vpop.f32.mrb[0].mxu0
  %v1911 = vadd.f32 %v1870, %v1910
  %v1912 = vpop.f32.mrb[0].mxu0
  %v1913 = vpop.f32.mrb[0].mxu0
  %1914 = vdwg.mxu0
  %1915 = vmatprep.subr.bf16.mxu0 %v1341
  %1916 = vmatpush1.bf16.msra.mxu0 %v1340
  %1917 = vmatprep.subr.bf16.mxu0 %v1343
  %1918 = vmatpush1.bf16.msra.mxu0 %v1342
  %1919 = vmatprep.subr.bf16.mxu0 %v1345
  %1920 = vmatpush1.bf16.msra.mxu0 %v1344
  %1921 = vmatprep.subr.bf16.mxu0 %v1347
  %1922 = vmatpush1.bf16.msra.mxu0 %v1346
  %1923 = vmatprep.subr.bf16.mxu0 %v1349
  %1924 = vmatpush1.bf16.msra.mxu0 %v1348
  %1925 = vmatprep.subr.bf16.mxu0 %v1351
  %1926 = vmatpush1.bf16.msra.mxu0 %v1350
  %1927 = vmatprep.subr.bf16.mxu0 %v1353
  %1928 = vmatpush1.bf16.msra.mxu0 %v1352
  %1929 = vmatprep.subr.bf16.mxu0 %v1355
  %1930 = vmatpush1.bf16.msra.mxu0 %v1354
  %1931 = vmatprep.subr.bf16.mxu0 %v1357
  %1932 = vmatpush1.bf16.msra.mxu0 %v1356
  %1933 = vmatprep.subr.bf16.mxu0 %v1359
  %1934 = vmatpush1.bf16.msra.mxu0 %v1358
  %1935 = vmatprep.subr.bf16.mxu0 %v1361
  %1936 = vmatpush1.bf16.msra.mxu0 %v1360
  %1937 = vmatprep.subr.bf16.mxu0 %v1363
  %1938 = vmatpush1.bf16.msra.mxu0 %v1362
  %1939 = vmatprep.subr.bf16.mxu0 %v1365
  %1940 = vmatpush1.bf16.msra.mxu0 %v1364
  %1941 = vmatprep.subr.bf16.mxu0 %v1367
  %1942 = vmatpush1.bf16.msra.mxu0 %v1366
  %1943 = vmatprep.subr.bf16.mxu0 %v1369
  %1944 = vmatpush1.bf16.msra.mxu0 %v1368
  %1945 = vmatprep.subr.bf16.mxu0 %v1371
  %1946 = vmatpush1.bf16.msra.mxu0 %v1370
  %1947 = vmatprep.mubr.bf16.mxu0 %v331
  %1948 = vmatmul.mubr.bf16.gmra.mrb[0].mxu0 %v330
  %v1949 = vpop.f32.mrb[0].mxu0
  %v1950 = vadd.f32 %v1909, %v1949
  %v1951 = vpop.f32.mrb[0].mxu0
  %v1952 = vadd.f32 %v1911, %v1951
  %v1953 = vpop.f32.mrb[0].mxu0
  %v1954 = vpop.f32.mrb[0].mxu0
  %1955 = vdwg.mxu0
  %v1956 = vrot.slane %v1950, 4
  %v1957 = vadd.f32 %v1950, %v1956
  %v1958 = vrot.slane %v1957, 2
  %v1959 = vadd.f32 %v1957, %v1958
  %v1960 = vrot.slane %v1959, 1
  %v1961 = vadd.f32 %v1959, %v1960
  %v1962 = vrot.slane %v1952, 4
  %v1963 = vadd.f32 %v1952, %v1962
  %v1964 = vrot.slane %v1963, 2
  %v1965 = vadd.f32 %v1963, %v1964
  %v1966 = vrot.slane %v1965, 1
  %v1967 = vadd.f32 %v1965, %v1966
  %v1968 = vmul.f32 %v1961, 0.125
  %v1969 = vmul.f32 %v1967, 0.125
  %v1970 = vmul.f32 %v1950, %v1950
  %v1971 = vmul.f32 %v1952, %v1952
  %v1972 = vrot.slane %v1970, 4
  %v1973 = vadd.f32 %v1970, %v1972
  %v1974 = vrot.slane %v1973, 2
  %v1975 = vadd.f32 %v1973, %v1974
  %v1976 = vrot.slane %v1975, 1
  %v1977 = vadd.f32 %v1975, %v1976
  %v1978 = vrot.slane %v1971, 4
  %v1979 = vadd.f32 %v1971, %v1978
  %v1980 = vrot.slane %v1979, 2
  %v1981 = vadd.f32 %v1979, %v1980
  %v1982 = vrot.slane %v1981, 1
  %v1983 = vadd.f32 %v1981, %v1982
  %v1984 = vmul.f32 %v1977, 0.125
  %v1985 = vmul.f32 %v1983, 0.125
  %v1986 = vmul.f32 %v1968, %v1968
  %v1987 = vmul.f32 %v1969, %v1969
  %v1988 = vsub.f32 %v1984, %v1986
  %v1989 = vsub.f32 %v1985, %v1987
  %v1990 = vmax.f32 %v1988, 0.0
  %v1991 = vmax.f32 %v1989, 0.0
  %v1992 = vld [vmem:[%s2] sm:$0x3]
  %v1993 = vadd.f32 %v1990, 1e-05
  %v1994 = vadd.f32 %v1991, 1e-05
  %v1995 = vrsqrt.pop %v1993
  %v1996 = vrsqrt.pop %v1994
  %v1999 = vcombine.low %v1995, %v1996
  %v2001 = vunpack.c.l.s4 1966171168
  %v2002 = vunpack.c.0.s8 %v2001
  %v2003 = vlaneseq
  %v2004 = vshrl.u32 %v2003, 7
  %v2005 = vsub.s32 %v2002, %v2004
  %v2006 = vrot.slane %v1999, %v2005
  %v2008 = vunpack.c.l.s4 1966171168
  %v2009 = vunpack.c.0.s8 %v2008
  %v2010 = vlaneseq
  %v2011 = vshrl.u32 %v2010, 7
  %v2012 = vsub.s32 %v2009, %v2011
  %v2013 = vrot.slane %v2006, %v2012
  %v2015 = vmul.f32 %v1992, %v2013
  %v2016 = vld [vmem:[%s3] sm:$0x3]
  %v2018 = vlaneseq
  %v2019 = vshrl.u32 %v2018, 7
  %v2020 = vsub.s32 0, %v2019
  %v2021 = vrot.slane %v2015, %v2020
  %v2022 = vlaneseq
  %v2023 = vshrl.u32 %v2022, 7
  %v2024 = vsub.s32 1, %v2023
  %v2025 = vrot.slane %v2015, %v2024
  %v2028 = vmul.f32 %v1968, %v2021
  %v2029 = vmul.f32 %v1969, %v2025
  %v2032 = vcombine.low %v2028, %v2029
  %v2034 = vunpack.c.l.s4 1966171168
  %v2035 = vunpack.c.0.s8 %v2034
  %v2036 = vlaneseq
  %v2037 = vshrl.u32 %v2036, 7
  %v2038 = vsub.s32 %v2035, %v2037
  %v2039 = vrot.slane %v2032, %v2038
  %v2041 = vunpack.c.l.s4 1966171168
  %v2042 = vunpack.c.0.s8 %v2041
  %v2043 = vlaneseq
  %v2044 = vshrl.u32 %v2043, 7
  %v2045 = vsub.s32 %v2042, %v2044
  %v2046 = vrot.slane %v2039, %v2045
  %v2048 = vsub.f32 %v2016, %v2046
  %v2049 = vmul.f32 %v1950, %v2021
  %v2050 = vmul.f32 %v1952, %v2025
  %v2052 = vlaneseq
  %v2053 = vshrl.u32 %v2052, 7
  %v2054 = vsub.s32 0, %v2053
  %v2055 = vrot.slane %v2048, %v2054
  %v2056 = vlaneseq
  %v2057 = vshrl.u32 %v2056, 7
  %v2058 = vsub.s32 1, %v2057
  %v2059 = vrot.slane %v2048, %v2058
  %v2062 = vadd.f32 %v2049, %v2055
  %v2063 = vadd.f32 %v2050, %v2059
  %v2064 = vmul.f32 %v2062, 0.2
  %v2065 = vmul.f32 %v2063, 0.2
  %v2066 = vmax.f32 %v2062, %v2064
  %v2067 = vmax.f32 %v2063, %v2065
  %v2068 = vld [vmem:[%s4] sm:$0xff]
  %v2069 = vld [vmem:[%s4 + $0x8] sm:$0xff]
  %v2070 = vmul.f32 %v2066, %v2068
  %v2071 = vmul.f32 %v2067, %v2069
  %v2072 = vld [vmem:[%s5] sm:$0x3]
  %vm2073 = vcmask 64512
  %v2075 = vsel %vm2073, %v2072, 0
  %2077 = vmatprep.subr.mxu0 %v2071
  %2078 = vmatpush1.msra.mxu0 %v2070
  %2079 = vmatprep.subr.mxu0 0.0
  %2080 = vmatpush1.msra.mxu0 0.0
  %2081 = vmatprep.subr.mxu0 0.0
  %2082 = vmatpush1.msra.mxu0 0.0
  %2083 = vmatprep.subr.mxu0 0.0
  %2084 = vmatpush1.msra.mxu0 0.0
  %2085 = vmatprep.subr.mxu0 0.0
  %2086 = vmatpush1.msra.mxu0 0.0
  %2087 = vmatprep.subr.mxu0 0.0
  %2088 = vmatpush1.msra.mxu0 0.0
  %2089 = vmatprep.subr.mxu0 0.0
  %2090 = vmatpush1.msra.mxu0 0.0
  %2091 = vmatprep.subr.mxu0 0.0
  %2092 = vmatpush1.msra.mxu0 0.0
  %2093 = vmatprep.subr.mxu0 0.0
  %2094 = vmatpush1.msra.mxu0 0.0
  %2095 = vmatprep.subr.mxu0 0.0
  %2096 = vmatpush1.msra.mxu0 0.0
  %2097 = vmatprep.subr.mxu0 0.0
  %2098 = vmatpush1.msra.mxu0 0.0
  %2099 = vmatprep.subr.mxu0 0.0
  %2100 = vmatpush1.msra.mxu0 0.0
  %2101 = vmatprep.subr.mxu0 0.0
  %2102 = vmatpush1.msra.mxu0 0.0
  %2103 = vmatprep.subr.mxu0 0.0
  %2104 = vmatpush1.msra.mxu0 0.0
  %2105 = vmatprep.subr.mxu0 0.0
  %2106 = vmatpush1.msra.mxu0 0.0
  %2107 = vmatprep.subr.mxu0 0.0
  %2108 = vmatpush1.msra.mxu0 0.0
  %2109 = vmatprep.subr.mxu0 0.0
  %2110 = vmatpush1.msra.mxu0 0.0
  %2111 = vmatprep.subr.mxu0 0.0
  %2112 = vmatpush1.msra.mxu0 0.0
  %2113 = vmatprep.subr.mxu0 0.0
  %2114 = vmatpush1.msra.mxu0 0.0
  %2115 = vmatprep.subr.mxu0 0.0
  %2116 = vmatpush1.msra.mxu0 0.0
  %2117 = vmatprep.subr.mxu0 0.0
  %2118 = vmatpush1.msra.mxu0 0.0
  %2119 = vmatprep.subr.mxu0 0.0
  %2120 = vmatpush1.msra.mxu0 0.0
  %2121 = vmatprep.subr.mxu0 0.0
  %2122 = vmatpush1.msra.mxu0 0.0
  %2123 = vmatprep.subr.mxu0 0.0
  %2124 = vmatpush1.msra.mxu0 0.0
  %2125 = vmatprep.subr.mxu0 0.0
  %2126 = vmatpush1.msra.mxu0 0.0
  %2127 = vmatprep.subr.mxu0 0.0
  %2128 = vmatpush1.msra.mxu0 0.0
  %2129 = vmatprep.subr.mxu0 0.0
  %2130 = vmatpush1.msra.mxu0 0.0
  %2131 = vmatprep.subr.mxu0 0.0
  %2132 = vmatpush1.msra.mxu0 0.0
  %2133 = vmatprep.subr.mxu0 0.0
  %2134 = vmatpush1.msra.mxu0 0.0
  %2135 = vmatprep.subr.mxu0 0.0
  %2136 = vmatpush1.msra.mxu0 0.0
  %2137 = vmatprep.subr.mxu0 0.0
  %2138 = vmatpush1.msra.mxu0 0.0
  %2139 = vmatprep.subr.mxu0 0.0
  %2140 = vmatpush1.msra.mxu0 0.0
  %2141 = vmatprep.mubr.f32.mxu0 0.0
  %2142 = vmatmul.mubr.f32.gmra.mrb[0].mxu0 %v2075
  %v2143 = vpop.f32.mrb[0].mxu0
  %v2144 = vadd.f32 0.0, %v2143
  %v2145 = vpop.f32.mrb[0].mxu0
  %v2146 = vadd.f32 0.0, %v2145
  %2147 = vdwg.mxu0
  %vm2148 = vcmask 1041408
  %v2149 = vsel %vm2148, %v2144, 0.0
  %v2150 = vsel %vm2148, %v2146, 0.0
  %v2151 = vadd.f32 %v2149, %v2150
  %2152 = vadd.xlane.f32.xlu0 %v2151
  %v2153 = vpop.xlane.xlu0 %2152
  %v2154 = vld [vmem:[#allocation2] sm:$0x1]
  %v2156 = vlaneseq
  %v2157 = vshrl.u32 %v2156, 7
  %v2158 = vsub.s32 0, %v2157
  %v2159 = vrot.slane %v2154, %v2158
  %v2161 = vadd.f32 %v2153, %v2159
  %vm2162 = vcmask 1024
  %2163 = vst.msk [vmem:[%s7] sm:$0x3] %vm2162, %v2161
  // Predicated region
  $region30: #{discriminator_forward.5} parent=0 // pred_check
    _
  $region31: #{discriminator_forward.5} parent=0 // pred_check_branch
    %2165 = sbr.rel (0) target = $region33
  $region32: #{discriminator_forward.5} parent=0 // pred_region
    _
  $region33: #{discriminator_forward.5} parent=0 // pred_fallthru
    _
  // Predicated region
  $region34: #{discriminator_forward.5} parent=0 // pred_check
    _
  $region35: #{discriminator_forward.5} parent=0 // pred_check_branch
    %2167 = sbr.rel (0) target = $region37
  $region36: #{discriminator_forward.5} parent=0 // pred_region
    _
  $region37: #{discriminator_forward.5} parent=0 // pred_fallthru
    _

</llo_original>
